<compile_context>
chip_gen: v7x
topology: tpu7x:2x2x1
jax: 0.10.0
libtpu: 0.0.40
codegen_flags: <defaults>
</compile_context>

<pallas_src>
import jax
import jax.numpy as jnp
from jax import lax
from jax.experimental import pallas as pl
from jax.experimental.pallas import tpu as pltpu
import numpy as np

BN_EPS = 1e-5


def _make_kernel(n_valid):
    inv_n = 1.0 / float(n_valid)

    def kernel(p_ref, w1_ref, gamma_ref, beta_ref, w2_ref, out_ref, acc_ref):
        # p_ref:     (1, ROWS, C1) bf16   im2col patches for conv tap k
        # w1_ref:    (1, C1, C2)   bf16   3x3 conv weights for tap k
        # gamma_ref: (1, C2) f32,  beta_ref: (1, C2) f32
        # w2_ref:    (C2, C3) bf16        1x1 conv weights
        # out_ref:   (ROWS, C3) f32
        # acc_ref:   (ROWS, C2) f32 scratch accumulator (conv1 output)
        k = pl.program_id(0)

        @pl.when(k == 0)
        def _():
            acc_ref[...] = jnp.zeros_like(acc_ref)

        # One conv tap: (ROWS, C1) @ (C1, C2) on the MXU, f32 accumulation.
        acc_ref[...] += jnp.dot(p_ref[0], w1_ref[0],
                                preferred_element_type=jnp.float32)

        @pl.when(k == pl.num_programs(0) - 1)
        def _():
            acc = acc_ref[...]
            # BatchNorm2d, training-mode batch statistics, biased variance.
            # Pad rows of `acc` are exactly zero (zero patches, no bias), so
            # sums over all ROWS rows equal sums over the n_valid real rows;
            # divide by n_valid explicitly.  Single-pass variance.
            # TODO(synk): running_mean/running_var momentum update is stateful
            # and not reproduced (does not affect the training-mode forward).
            mean = jnp.sum(acc, axis=0, keepdims=True) * inv_n
            ex2 = jnp.sum(acc * acc, axis=0, keepdims=True) * inv_n
            var = ex2 - mean * mean
            y = (acc - mean) * lax.rsqrt(var + BN_EPS)
            y = y * gamma_ref[...] + beta_ref[...]
            y = jnp.maximum(y, 0.0)
            # 1x1 conv == channel matmul; bf16 inputs, f32 result.
            out_ref[...] = jnp.dot(y.astype(jnp.bfloat16), w2_ref[...],
                                   preferred_element_type=jnp.float32)

    return kernel


def forward(x_nchw, w1_oihw, gamma, beta, w2_oihw):
    """x_nchw: (N, C1, H, W). Returns (N, C3, H, W) float32."""
    N, C1, H, W = x_nchw.shape
    C2 = w1_oihw.shape[0]
    C3 = w2_oihw.shape[0]

    n_valid = N * H * W                       # 49 for the module's shapes
    rows = ((n_valid + 63) // 64) * 64        # pad to a sublane/MXU friendly 64

    # ---- wrapper glue (tiny vs. the weight DMA) --------------------------
    # ReLU + zero-pad + im2col.  relu(pad(x)) == pad(relu(x)) since pad is 0.
    x_nhwc = jnp.transpose(x_nchw, (0, 2, 3, 1)).astype(jnp.float32)
    x_relu = jnp.maximum(x_nhwc, 0.0)
    xp = jnp.pad(x_relu, ((0, 0), (1, 1), (1, 1), (0, 0)))
    taps = []
    for ky in range(3):
        for kx in range(3):
            taps.append(xp[:, ky:ky + H, kx:kx + W, :].reshape(n_valid, C1))
    patches = jnp.stack(taps, axis=0)                          # (9, 49, C1)
    patches = jnp.pad(patches, ((0, 0), (0, rows - n_valid), (0, 0)))
    patches = patches.astype(jnp.bfloat16)                     # (9, rows, C1)

    # Weights: OIHW -> (tap = ky*3+kx, Cin, Cout); (C3, C2, 1, 1) -> (C2, C3).
    w1_k = jnp.transpose(w1_oihw, (2, 3, 1, 0)).reshape(9, C1, C2)
    w1_k = w1_k.astype(jnp.bfloat16)
    w2_k = jnp.transpose(w2_oihw[:, :, 0, 0], (1, 0)).astype(jnp.bfloat16)
    gamma_k = gamma.reshape(1, C2).astype(jnp.float32)
    beta_k = beta.reshape(1, C2).astype(jnp.float32)

    kernel = _make_kernel(n_valid)
    out_rows = pl.pallas_call(
        kernel,
        out_shape=jax.ShapeDtypeStruct((rows, C3), jnp.float32),
        grid_spec=pltpu.PrefetchScalarGridSpec(
            num_scalar_prefetch=0,
            grid=(9,),
            in_specs=[
                pl.BlockSpec((1, rows, C1), lambda k: (k, 0, 0)),   # patches
                pl.BlockSpec((1, C1, C2), lambda k: (k, 0, 0)),     # w1 tap k
                pl.BlockSpec((1, C2), lambda k: (0, 0)),            # gamma
                pl.BlockSpec((1, C2), lambda k: (0, 0)),            # beta
                pl.BlockSpec((C2, C3), lambda k: (0, 0)),           # w2
            ],
            out_specs=pl.BlockSpec((rows, C3), lambda k: (0, 0)),
            scratch_shapes=[pltpu.VMEM((rows, C2), jnp.float32)],
        ),
        compiler_params=pltpu.CompilerParams(
            dimension_semantics=("arbitrary",),
            vmem_limit_bytes=32 * 1024 * 1024,
        ),
    )(patches, w1_k, gamma_k, beta_k, w2_k)

    out = out_rows[:n_valid].reshape(N, H, W, C3)
    return jnp.transpose(out, (0, 3, 1, 2))


def reference(x_nchw, w1_oihw, gamma, beta, w2_oihw):
    """Pure-JAX f32 reference matching PyTorch training-mode semantics."""
    dn = ("NCHW", "OIHW", "NCHW")
    y = jnp.maximum(x_nchw, 0.0)
    y = lax.conv_general_dilated(y, w1_oihw, (1, 1), ((1, 1), (1, 1)),
                                 dimension_numbers=dn)
    mean = jnp.mean(y, axis=(0, 2, 3), keepdims=True)
    var = jnp.mean((y - mean) ** 2, axis=(0, 2, 3), keepdims=True)
    y = (y - mean) / jnp.sqrt(var + BN_EPS)
    y = y * gamma.reshape(1, -1, 1, 1) + beta.reshape(1, -1, 1, 1)
    y = jnp.maximum(y, 0.0)
    y = lax.conv_general_dilated(y, w2_oihw, (1, 1), "VALID",
                                 dimension_numbers=dn)
    return y


if __name__ == "__main__":
    key = jax.random.PRNGKey(0)
    k1, k2, k3, k4, k5 = jax.random.split(key, 5)

    # Shapes implied by the module's forward: x504 = randn(1, 512, 7, 7)
    N, C1, H, W = 1, 512, 7, 7
    C2, C3 = 512, 2048

    x = jax.random.normal(k1, (N, C1, H, W), jnp.float32)
    w1 = jax.random.normal(k2, (C2, C1, 3, 3), jnp.float32) * 0.05
    w2 = jax.random.normal(k3, (C3, C2, 1, 1), jnp.float32) * 0.05
    gamma = jax.random.uniform(k4, (C2,), jnp.float32, 0.5, 1.5)
    beta = jax.random.normal(k5, (C2,), jnp.float32) * 0.1

    out = forward(x, w1, gamma, beta, w2)
    out = jax.block_until_ready(out)
    assert out.shape == (N, C3, H, W), out.shape

    ref = reference(x, w1, gamma, beta, w2)
    # bf16 matmul inputs with f32 accumulation: allow a little extra slack.
    np.testing.assert_allclose(np.asarray(out), np.asarray(ref),
                               rtol=2e-2, atol=2e-2)
    print("KERNEL_OK")
</pallas_src>

<mosaic_0001>
module attributes {stable_mosaic.version = 11 : i64} {
  func.func @kernel(%arg0: i32, %arg1: memref<1x64x512xbf16, #tpu.memory_space<vmem>>, %arg2: memref<1x512x512xbf16, #tpu.memory_space<vmem>>, %arg3: memref<1x512xf32, #tpu.memory_space<vmem>>, %arg4: memref<1x512xf32, #tpu.memory_space<vmem>>, %arg5: memref<512x2048xbf16, #tpu.memory_space<vmem>>, %arg6: memref<64x2048xf32, #tpu.memory_space<vmem>>, %arg7: memref<64x512xf32, #tpu.memory_space<vmem>>) attributes {dimension_semantics = [#tpu.dimension_semantics<arbitrary>], iteration_bounds = array<i64: 9>, scalar_prefetch = 0 : i64, scratch_operands = 1 : i64, tpu.core_type = #tpu.core_type<tc>, window_params = [{transform_indices = @transform_0, window_bounds = array<i64: 1, 64, 512>}, {transform_indices = @transform_1, window_bounds = array<i64: 1, 512, 512>}, {pipeline_mode = #tpu.pipeline_mode<synchronous>, transform_indices = @transform_2, window_bounds = array<i64: 1, 512>}, {pipeline_mode = #tpu.pipeline_mode<synchronous>, transform_indices = @transform_3, window_bounds = array<i64: 1, 512>}, {pipeline_mode = #tpu.pipeline_mode<synchronous>, transform_indices = @transform_4, window_bounds = array<i64: 512, 2048>}, {pipeline_mode = #tpu.pipeline_mode<synchronous>, transform_indices = @transform_5, window_bounds = array<i64: 64, 2048>}]} {
    %c0_i32 = arith.constant 0 : i32
    %0 = arith.cmpi eq, %arg0, %c0_i32 : i32
    %1 = arith.extui %0 : i1 to i32
    %c0_i32_0 = arith.constant 0 : i32
    %2 = arith.cmpi ne, %1, %c0_i32_0 : i32
    scf.if %2 {
      %cst_11 = arith.constant 0.000000e+00 : f32
      %14 = vector.broadcast %cst_11 : f32 to vector<64x512xf32>
      %c0_12 = arith.constant 0 : index
      %c0_13 = arith.constant 0 : index
      %15 = vector.load %arg7[%c0_12, %c0_13] : memref<64x512xf32, #tpu.memory_space<vmem>>, vector<64x512xf32>
      tpu.vector_store %arg7[%c0_12, %c0_13], %14 {strides = array<i32>} : memref<64x512xf32, #tpu.memory_space<vmem>>, vector<64x512xf32>,
    } else {
    }
    %c0 = arith.constant 0 : index
    %c0_1 = arith.constant 0 : index
    %3 = vector.load %arg7[%c0, %c0_1] : memref<64x512xf32, #tpu.memory_space<vmem>>, vector<64x512xf32>
    %c0_2 = arith.constant 0 : index
    %c0_3 = arith.constant 0 : index
    %c0_4 = arith.constant 0 : index
    %4 = vector.load %arg1[%c0_2, %c0_3, %c0_4] : memref<1x64x512xbf16, #tpu.memory_space<vmem>>, vector<1x64x512xbf16>
    %5 = vector.shape_cast %4 : vector<1x64x512xbf16> to vector<64x512xbf16>
    %c0_5 = arith.constant 0 : index
    %c0_6 = arith.constant 0 : index
    %c0_7 = arith.constant 0 : index
    %6 = vector.load %arg2[%c0_5, %c0_6, %c0_7] : memref<1x512x512xbf16, #tpu.memory_space<vmem>>, vector<1x512x512xbf16>
    %7 = vector.shape_cast %6 : vector<1x512x512xbf16> to vector<512x512xbf16>
    %cst = arith.constant dense<0.000000e+00> : vector<64x512xf32>
    %8 = tpu.matmul %5, %7, %cst {dimension_numbers = #tpu.dot_dimension_numbers<[1], [0], [0], [1], [0, 0, 1, 1], [], []>} : vector<64x512xbf16>, vector<512x512xbf16>, vector<64x512xf32> -> vector<64x512xf32>
    %9 = arith.addf %3, %8 : vector<64x512xf32>
    %c0_8 = arith.constant 0 : index
    %c0_9 = arith.constant 0 : index
    %10 = vector.load %arg7[%c0_8, %c0_9] : memref<64x512xf32, #tpu.memory_space<vmem>>, vector<64x512xf32>
    tpu.vector_store %arg7[%c0_8, %c0_9], %9 {strides = array<i32>} : memref<64x512xf32, #tpu.memory_space<vmem>>, vector<64x512xf32>,
    %c8_i32 = arith.constant 8 : i32
    %11 = arith.cmpi eq, %arg0, %c8_i32 : i32
    %12 = arith.extui %11 : i1 to i32
    %c0_i32_10 = arith.constant 0 : i32
    %13 = arith.cmpi ne, %12, %c0_i32_10 : i32
    scf.if %13 {
      %c0_11 = arith.constant 0 : index
      %c0_12 = arith.constant 0 : index
      %14 = vector.load %arg7[%c0_11, %c0_12] : memref<64x512xf32, #tpu.memory_space<vmem>>, vector<64x512xf32>
      %cst_13 = arith.constant dense<0.000000e+00> : vector<512xf32>
      %15 = vector.multi_reduction <add>, %14, %cst_13 [0] : vector<64x512xf32> to vector<512xf32>
      %16 = vector.shape_cast %15 : vector<512xf32> to vector<1x512xf32>
      %cst_14 = arith.constant 0.0204081628 : f32
      %17 = vector.broadcast %cst_14 : f32 to vector<1x512xf32>
      %18 = arith.mulf %16, %17 : vector<1x512xf32>
      %19 = arith.mulf %14, %14 : vector<64x512xf32>
      %cst_15 = arith.constant dense<0.000000e+00> : vector<512xf32>
      %20 = vector.multi_reduction <add>, %19, %cst_15 [0] : vector<64x512xf32> to vector<512xf32>
      %21 = vector.shape_cast %20 : vector<512xf32> to vector<1x512xf32>
      %cst_16 = arith.constant 0.0204081628 : f32
      %22 = vector.broadcast %cst_16 : f32 to vector<1x512xf32>
      %23 = arith.mulf %21, %22 : vector<1x512xf32>
      %24 = arith.mulf %18, %18 : vector<1x512xf32>
      %25 = arith.subf %23, %24 : vector<1x512xf32>
      %26 = vector.broadcast %18 : vector<1x512xf32> to vector<64x512xf32>
      %27 = arith.subf %14, %26 : vector<64x512xf32>
      %cst_17 = arith.constant 9.99999974E-6 : f32
      %28 = vector.broadcast %cst_17 : f32 to vector<1x512xf32>
      %29 = arith.addf %25, %28 : vector<1x512xf32>
      %30 = math.rsqrt %29 : vector<1x512xf32>
      %31 = vector.broadcast %30 : vector<1x512xf32> to vector<64x512xf32>
      %32 = arith.mulf %27, %31 : vector<64x512xf32>
      %c0_18 = arith.constant 0 : index
      %c0_19 = arith.constant 0 : index
      %33 = vector.load %arg3[%c0_18, %c0_19] : memref<1x512xf32, #tpu.memory_space<vmem>>, vector<1x512xf32>
      %34 = vector.broadcast %33 : vector<1x512xf32> to vector<64x512xf32>
      %35 = arith.mulf %32, %34 : vector<64x512xf32>
      %c0_20 = arith.constant 0 : index
      %c0_21 = arith.constant 0 : index
      %36 = vector.load %arg4[%c0_20, %c0_21] : memref<1x512xf32, #tpu.memory_space<vmem>>, vector<1x512xf32>
      %37 = vector.broadcast %36 : vector<1x512xf32> to vector<64x512xf32>
      %38 = arith.addf %35, %37 : vector<64x512xf32>
      %cst_22 = arith.constant 0.000000e+00 : f32
      %39 = vector.broadcast %cst_22 : f32 to vector<64x512xf32>
      %40 = arith.maximumf %38, %39 : vector<64x512xf32>
      %41 = arith.truncf %40 : vector<64x512xf32> to vector<64x512xbf16>
      %c0_23 = arith.constant 0 : index
      %c0_24 = arith.constant 0 : index
      %42 = vector.load %arg5[%c0_23, %c0_24] : memref<512x2048xbf16, #tpu.memory_space<vmem>>, vector<512x2048xbf16>
      %cst_25 = arith.constant dense<0.000000e+00> : vector<64x2048xf32>
      %43 = tpu.matmul %41, %42, %cst_25 {dimension_numbers = #tpu.dot_dimension_numbers<[1], [0], [0], [1], [0, 0, 1, 1], [], []>} : vector<64x512xbf16>, vector<512x2048xbf16>, vector<64x2048xf32> -> vector<64x2048xf32>
      %c0_26 = arith.constant 0 : index
      %c0_27 = arith.constant 0 : index
      %44 = vector.load %arg6[%c0_26, %c0_27] : memref<64x2048xf32, #tpu.memory_space<vmem>>, vector<64x2048xf32>
      tpu.vector_store %arg6[%c0_26, %c0_27], %43 {strides = array<i32>} : memref<64x2048xf32, #tpu.memory_space<vmem>>, vector<64x2048xf32>,
    } else {
    }
    return
  }
  func.func @transform_0(%arg0: i32) -> (i32, i32, i32) {
    %c0_i32 = arith.constant 0 : i32
    %c0_i32_0 = arith.constant 0 : i32
    %c0_i32_1 = arith.constant 0 : i32
    return %arg0, %c0_i32, %c0_i32_0 : i32, i32, i32
  }
  func.func @transform_1(%arg0: i32) -> (i32, i32, i32) {
    %c0_i32 = arith.constant 0 : i32
    %c0_i32_0 = arith.constant 0 : i32
    %c0_i32_1 = arith.constant 0 : i32
    return %arg0, %c0_i32, %c0_i32_0 : i32, i32, i32
  }
  func.func @transform_2(%arg0: i32) -> (i32, i32) {
    %c0_i32 = arith.constant 0 : i32
    %c0_i32_0 = arith.constant 0 : i32
    %c0_i32_1 = arith.constant 0 : i32
    return %c0_i32, %c0_i32_0 : i32, i32
  }
  func.func @transform_3(%arg0: i32) -> (i32, i32) {
    %c0_i32 = arith.constant 0 : i32
    %c0_i32_0 = arith.constant 0 : i32
    %c0_i32_1 = arith.constant 0 : i32
    return %c0_i32, %c0_i32_0 : i32, i32
  }
  func.func @transform_4(%arg0: i32) -> (i32, i32) {
    %c0_i32 = arith.constant 0 : i32
    %c0_i32_0 = arith.constant 0 : i32
    %c0_i32_1 = arith.constant 0 : i32
    return %c0_i32, %c0_i32_0 : i32, i32
  }
  func.func @transform_5(%arg0: i32) -> (i32, i32) {
    %c0_i32 = arith.constant 0 : i32
    %c0_i32_0 = arith.constant 0 : i32
    %c0_i32_1 = arith.constant 0 : i32
    return %c0_i32, %c0_i32_0 : i32, i32
  }
}

</mosaic_0001>

<llo_original>
// kernel: tpu_custom_call.1
$region0: #{tpu_custom_call.1}
  #allocation0 [shape = 'u32[]', space=smem, size = 0x4, offset = 0x4, fixed_abs, tag = 'smem constant byte address 0x4 - core index']
  #allocation1 [shape = 'u32[144,128]{1,0:T(1,128)}', space=vmem, size = 0x12000, scoped, tag = 'internal scratch']
  #allocation2 [shape = 'f32[64,512]{1,0:T(8,128)}', space=vmem, size = 0x20000, scoped, tag = 'scratch operand']
  %s0 = inlined_call_operand.hbm [shape: bf16[9,64,512], index: 0, kind: input, shape index: {}]
  %s1 = inlined_call_operand.hbm [shape: bf16[9,512,512], index: 1, kind: input, shape index: {}]
  %s2 = inlined_call_operand.hbm [shape: f32[1,512], index: 2, kind: input, shape index: {}]
  %s3 = inlined_call_operand.hbm [shape: f32[1,512], index: 3, kind: input, shape index: {}]
  %s4 = inlined_call_operand.hbm [shape: bf16[512,2048], index: 4, kind: input, shape index: {}]
  %s5 = inlined_call_operand.hbm [shape: f32[64,2048], index: 5, kind: output, shape index: {}]
  %s6 = sld [smem:[#allocation0]]
  $region81: #{tpu_custom_call.1} parent=0
    _
  %s8 = ssub.s32 1, %s6
  %s9 = scalar_select 0, %s8, %s6
  $region1: #{tpu_custom_call.1} parent=0
    #allocation3 [shape = 'u8[131072]{0}', space=vmem, size = 0x20000, scoped, tag = 'input window, operand 0']
    #allocation4 [shape = 's32[2]{0}', space=sflag, size = 0x8, scoped, tag = 'scoped memory for tpu_custom_call.1']
    #allocation5 [shape = 's32[2]{0}', space=sflag, size = 0x8, scoped, tag = 'scoped memory for tpu_custom_call.1']
    #allocation6 [shape = 'u8[1048576]{0}', space=vmem, size = 0x100000, scoped, tag = 'input window, operand 1']
    #allocation7 [shape = 's32[2]{0}', space=sflag, size = 0x8, scoped, tag = 'scoped memory for tpu_custom_call.1']
    #allocation8 [shape = 'u8[2048]{0}', space=vmem, size = 0x800, scoped, tag = 'input window, operand 2, single buffered']
    #allocation9 [shape = 'u8[2048]{0}', space=vmem, size = 0x800, scoped, tag = 'input window, operand 3, single buffered']
    #allocation10 [shape = 's32[1]{0}', space=sflag, size = 0x4, scoped, tag = 'scoped memory for tpu_custom_call.1']
    #allocation11 [shape = 'u8[2097152]{0}', space=vmem, size = 0x200000, scoped, tag = 'input window, operand 4, single buffered']
    #allocation12 [shape = 'u8[524288]{0}', space=vmem, size = 0x80000, scoped, tag = 'output window, operand 0, single buffered']
    %10 = vsyncpa [#allocation4], 0
    %s11 = scalar_lea.sflag [#allocation4], 1
    %12 = vsyncpa %s11, 0
    %13 = vsyncpa [#allocation7], 0
    %s14 = scalar_lea.sflag [#allocation7], 1
    %15 = vsyncpa %s14, 0
    %16 = vsyncpa [#allocation10], 0
    %17 = vsyncpa [#allocation5], 0
    loop: start=0, step=1, limit=11
    $region2: #{tpu_custom_call.1} parent=1 // loop_pre_header
      _
    $region3: #{tpu_custom_call.1} parent=1 // loop_header
      %s19 = sphi 0, %s23
      %p20 = scmp.ge.s32.totalorder %s19, 11
      %s29 = sphi 0, %s31
      %s32 = sphi 0, %s29
      %s33 = sphi 0, %s32
      %s49 = sphi 0, %s33
      %s55 = sphi 0, %s57
      %s58 = sphi 0, %s55
      %s59 = sphi 0, %s58
      %s75 = sphi 0, %s59
      %s79 = sphi 0, %s79
      %s81 = sphi 0, %s79
      %s82 = sphi 0, %s81
      %s96 = sphi 0, %s82
      %s100 = sphi 0, %s100
      %s102 = sphi 0, %s100
      %s103 = sphi 0, %s102
      %s117 = sphi 0, %s103
      %s121 = sphi 0, %s121
      %s123 = sphi 0, %s121
      %s124 = sphi 0, %s123
      %s138 = sphi 0, %s124
      %s142 = sphi 0, %s142
      %s144 = sphi 0, %s142
      %s145 = sphi 0, %s144
      %s159 = sphi 0, %s145
    $region4: #{tpu_custom_call.1} parent=1 // loop_header_branch
      %22 = sbr.rel (%p20) target = $region8
    $region5: #{tpu_custom_call.1} parent=1 // loop_body
      %s24 = ssub.s32 %s19, 1
      %s25 = ssub.s32 %s19, 2
      %s26 = sadd.s32 %s19, 1
      %s27 = ssub.s32 %s19, %s26
      %p28 = scmp.eq.s32.totalorder %s27, 0
      %s30 = sadd.s32 %s29, 1
      %s31 = scalar_select %p28, %s29, %s30
      %p34 = pneg %p28
      %p35 = scmp.eq.s32.totalorder %s19, 8
      %p36 = por %p34, %p35
      %p37 = scmp.ne.s32.totalorder %s29, %s32
      %p38 = scmp.eq.s32.totalorder %s19, 0
      %p39 = por %p37, %p38
      %p40 = scmp.ne.s32.totalorder %s29, %s32
      %p41 = scmp.eq.s32.totalorder %s24, 8
      %p42 = por %p40, %p41
      %p43 = scmp.ne.s32.totalorder %s32, %s33
      %p44 = scmp.eq.s32.totalorder %s24, 0
      %p45 = por %p43, %p44
      %p46 = scmp.ne.s32.totalorder %s32, %s33
      %p47 = scmp.eq.s32.totalorder %s25, 8
      %p48 = por %p46, %p47
      %p50 = scmp.ne.s32.totalorder %s33, %s49
      %p51 = scmp.eq.s32.totalorder %s25, 0
      %p52 = por %p50, %p51
      %s53 = ssub.s32 %s19, %s26
      %p54 = scmp.eq.s32.totalorder %s53, 0
      %s56 = sadd.s32 %s55, 1
      %s57 = scalar_select %p54, %s55, %s56
      %p60 = pneg %p54
      %p61 = scmp.eq.s32.totalorder %s19, 8
      %p62 = por %p60, %p61
      %p63 = scmp.ne.s32.totalorder %s55, %s58
      %p64 = scmp.eq.s32.totalorder %s19, 0
      %p65 = por %p63, %p64
      %p66 = scmp.ne.s32.totalorder %s55, %s58
      %p67 = scmp.eq.s32.totalorder %s24, 8
      %p68 = por %p66, %p67
      %p69 = scmp.ne.s32.totalorder %s58, %s59
      %p70 = scmp.eq.s32.totalorder %s24, 0
      %p71 = por %p69, %p70
      %p72 = scmp.ne.s32.totalorder %s58, %s59
      %p73 = scmp.eq.s32.totalorder %s25, 8
      %p74 = por %p72, %p73
      %p76 = scmp.ne.s32.totalorder %s59, %s75
      %p77 = scmp.eq.s32.totalorder %s25, 0
      %p78 = por %p76, %p77
      %s80 = sadd.s32 %s79, 1
      %p83 = scmp.eq.s32.totalorder %s19, 8
      %p84 = scmp.ne.s32.totalorder %s79, %s81
      %p85 = scmp.eq.s32.totalorder %s19, 0
      %p86 = por %p84, %p85
      %p87 = scmp.ne.s32.totalorder %s79, %s81
      %p88 = scmp.eq.s32.totalorder %s24, 8
      %p89 = por %p87, %p88
      %p90 = scmp.ne.s32.totalorder %s81, %s82
      %p91 = scmp.eq.s32.totalorder %s24, 0
      %p92 = por %p90, %p91
      %p93 = scmp.ne.s32.totalorder %s81, %s82
      %p94 = scmp.eq.s32.totalorder %s25, 8
      %p95 = por %p93, %p94
      %p97 = scmp.ne.s32.totalorder %s82, %s96
      %p98 = scmp.eq.s32.totalorder %s25, 0
      %p99 = por %p97, %p98
      %s101 = sadd.s32 %s100, 1
      %p104 = scmp.eq.s32.totalorder %s19, 8
      %p105 = scmp.ne.s32.totalorder %s100, %s102
      %p106 = scmp.eq.s32.totalorder %s19, 0
      %p107 = por %p105, %p106
      %p108 = scmp.ne.s32.totalorder %s100, %s102
      %p109 = scmp.eq.s32.totalorder %s24, 8
      %p110 = por %p108, %p109
      %p111 = scmp.ne.s32.totalorder %s102, %s103
      %p112 = scmp.eq.s32.totalorder %s24, 0
      %p113 = por %p111, %p112
      %p114 = scmp.ne.s32.totalorder %s102, %s103
      %p115 = scmp.eq.s32.totalorder %s25, 8
      %p116 = por %p114, %p115
      %p118 = scmp.ne.s32.totalorder %s103, %s117
      %p119 = scmp.eq.s32.totalorder %s25, 0
      %p120 = por %p118, %p119
      %s122 = sadd.s32 %s121, 1
      %p125 = scmp.eq.s32.totalorder %s19, 8
      %p126 = scmp.ne.s32.totalorder %s121, %s123
      %p127 = scmp.eq.s32.totalorder %s19, 0
      %p128 = por %p126, %p127
      %p129 = scmp.ne.s32.totalorder %s121, %s123
      %p130 = scmp.eq.s32.totalorder %s24, 8
      %p131 = por %p129, %p130
      %p132 = scmp.ne.s32.totalorder %s123, %s124
      %p133 = scmp.eq.s32.totalorder %s24, 0
      %p134 = por %p132, %p133
      %p135 = scmp.ne.s32.totalorder %s123, %s124
      %p136 = scmp.eq.s32.totalorder %s25, 8
      %p137 = por %p135, %p136
      %p139 = scmp.ne.s32.totalorder %s124, %s138
      %p140 = scmp.eq.s32.totalorder %s25, 0
      %p141 = por %p139, %p140
      %s143 = sadd.s32 %s142, 1
      %p146 = scmp.eq.s32.totalorder %s19, 8
      %p147 = scmp.ne.s32.totalorder %s142, %s144
      %p148 = scmp.eq.s32.totalorder %s19, 0
      %p149 = por %p147, %p148
      %p150 = scmp.ne.s32.totalorder %s142, %s144
      %p151 = scmp.eq.s32.totalorder %s24, 8
      %p152 = por %p150, %p151
      %p153 = scmp.ne.s32.totalorder %s144, %s145
      %p154 = scmp.eq.s32.totalorder %s24, 0
      %p155 = por %p153, %p154
      %p156 = scmp.ne.s32.totalorder %s144, %s145
      %p157 = scmp.eq.s32.totalorder %s25, 8
      %p158 = por %p156, %p157
      %p160 = scmp.ne.s32.totalorder %s145, %s159
      %p161 = scmp.eq.s32.totalorder %s25, 0
      %p162 = por %p160, %p161
      %p163 = scmp.le.s32.totalorder 1, %s19
      %p164 = scmp.lt.s32.totalorder %s19, 10
      %p165 = pnand %p163, %p164
      %p166 = pneg %p165
      // Predicated region
      $region9: #{tpu_custom_call.1} parent=5 // pred_check
        _
      $region10: #{tpu_custom_call.1} parent=5 // pred_check_branch
        %168 = sbr.rel (%p165) target = $region12
      $region11: #{tpu_custom_call.1} parent=5 // pred_region
        %s169 = ssub.s32 %s19, 1
        // Predicated region
        $region13: #{tpu_custom_call.1} parent=11 // pred_check
          %p170 = pneg %p92
        $region14: #{tpu_custom_call.1} parent=11 // pred_check_branch
          %172 = sbr.rel (%p170) target = $region16
        $region15: #{tpu_custom_call.1} parent=11 // pred_region
          %s174 = ssub.s32 64, 64
          %175 = vsyncadd [#allocation7], %s174
          %s177 = sshll.u32 [#allocation8], 4
          %s178 = int_to_ptr.vmem [resolvable:$true] %s177
          %180 = dma.hbm_to_vmem [thread:$0]  %s2, 64, %s178, [#allocation7]
        $region16: #{tpu_custom_call.1} parent=11 // pred_fallthru
          _
        // Predicated region
        $region17: #{tpu_custom_call.1} parent=11 // pred_check
          %p181 = pneg %p113
        $region18: #{tpu_custom_call.1} parent=11 // pred_check_branch
          %183 = sbr.rel (%p181) target = $region20
        $region19: #{tpu_custom_call.1} parent=11 // pred_region
          %s185 = ssub.s32 64, 64
          %186 = vsyncadd [#allocation10], %s185
          %s188 = sshll.u32 [#allocation9], 4
          %s189 = int_to_ptr.vmem [resolvable:$true] %s188
          %191 = dma.hbm_to_vmem [thread:$0]  %s3, 64, %s189, [#allocation10]
        $region20: #{tpu_custom_call.1} parent=11 // pred_fallthru
          _
        // Predicated region
        $region21: #{tpu_custom_call.1} parent=11 // pred_check
          %p192 = pneg %p134
        $region22: #{tpu_custom_call.1} parent=11 // pred_check_branch
          %194 = sbr.rel (%p192) target = $region24
        $region23: #{tpu_custom_call.1} parent=11 // pred_region
          %s196 = ssub.s32 65536, 65536
          %197 = vsyncadd [#allocation10], %s196
          %s198 = sshll.u32 [#allocation11], 4
          %s199 = int_to_ptr.vmem [resolvable:$true] %s198
          %204 = dma.hbm_to_vmem [thread:$0]  %s4, 65536, %s199, [#allocation10], 1024, 1024, 64
        $region24: #{tpu_custom_call.1} parent=11 // pred_fallthru
          _
      $region12: #{tpu_custom_call.1} parent=5 // pred_fallthru
        _
      %p205 = scmp.lt.s32.totalorder %s19, 9
      // Predicated region
      $region25: #{tpu_custom_call.1} parent=5 // pred_check
        %p206 = pneg %p205
      $region26: #{tpu_custom_call.1} parent=5 // pred_check_branch
        %208 = sbr.rel (%p206) target = $region28
      $region27: #{tpu_custom_call.1} parent=5 // pred_region
        // Predicated region
        $region29: #{tpu_custom_call.1} parent=27 // pred_check
          %p209 = pneg %p39
        $region30: #{tpu_custom_call.1} parent=27 // pred_check_branch
          %211 = sbr.rel (%p209) target = $region32
        $region31: #{tpu_custom_call.1} parent=27 // pred_region
          %s212 = sand.u32 %s29, 1
          %s213 = scalar_lea.sflag [#allocation4], %s212
          %s214 = sand.u32 %s29, 1
          %s215 = smul.addr %s214, 128
          %s216 = scalar_lea.vmem [#allocation3], %s215
          %s218 = ssub.s32 2048, 2048
          %219 = vsyncadd %s213, %s218
          %s220 = smul.addr %s19, 32
          %s221 = smul.addr %s220, 64
          %s222 = scalar_lea.hbm %s0, %s221
          %s223 = sshll.u32 %s216, 4
          %s224 = int_to_ptr.vmem [resolvable:$true] %s223
          %229 = dma.hbm_to_vmem [thread:$0]  %s222, 2048, %s224, %s213, 256, 256, 16
        $region32: #{tpu_custom_call.1} parent=27 // pred_fallthru
          _
        // Predicated region
        $region33: #{tpu_custom_call.1} parent=27 // pred_check
          %p230 = pneg %p65
        $region34: #{tpu_custom_call.1} parent=27 // pred_check_branch
          %232 = sbr.rel (%p230) target = $region36
        $region35: #{tpu_custom_call.1} parent=27 // pred_region
          %s233 = sand.u32 %s19, 1
          %s234 = scalar_lea.sflag [#allocation7], %s233
          %s235 = sand.u32 %s55, 1
          %s236 = smul.addr %s235, 1024
          %s237 = scalar_lea.vmem [#allocation6], %s236
          %s239 = ssub.s32 16384, 16384
          %240 = vsyncadd %s234, %s239
          %s241 = smul.addr %s19, 256
          %s242 = smul.addr %s241, 64
          %s243 = scalar_lea.hbm %s1, %s242
          %s244 = sshll.u32 %s237, 4
          %s245 = int_to_ptr.vmem [resolvable:$true] %s244
          %250 = dma.hbm_to_vmem [thread:$0]  %s243, 16384, %s245, %s234, 256, 256, 16
        $region36: #{tpu_custom_call.1} parent=27 // pred_fallthru
          _
      $region28: #{tpu_custom_call.1} parent=5 // pred_fallthru
        _
      %p251 = scmp.le.s32.totalorder 1, %s19
      %p252 = scmp.lt.s32.totalorder %s19, 10
      %p253 = pnand %p251, %p252
      %p254 = pneg %p253
      // Predicated region
      $region37: #{tpu_custom_call.1} parent=5 // pred_check
        _
      $region38: #{tpu_custom_call.1} parent=5 // pred_check_branch
        %256 = sbr.rel (%p253) target = $region40
      $region39: #{tpu_custom_call.1} parent=5 // pred_region
        %s257 = ssub.s32 %s19, 1
        %s258 = sand.u32 %s32, 1
        %s259 = scalar_lea.sflag [#allocation4], %s258
        %s260 = sand.u32 %s32, 1
        %s261 = smul.addr %s260, 128
        %s262 = scalar_lea.vmem [#allocation3], %s261
        // Predicated region
        $region41: #{tpu_custom_call.1} parent=39 // pred_check
          %p263 = pneg %p45
        $region42: #{tpu_custom_call.1} parent=39 // pred_check_branch
          %265 = sbr.rel (%p263) target = $region44
        $region43: #{tpu_custom_call.1} parent=39 // pred_region
          %266 = dma.done %s259, 2048
        $region44: #{tpu_custom_call.1} parent=39 // pred_fallthru
          _
        %s267 = sand.u32 %s24, 1
        %s268 = scalar_lea.sflag [#allocation7], %s267
        %s269 = sand.u32 %s58, 1
        %s270 = smul.addr %s269, 1024
        %s271 = scalar_lea.vmem [#allocation6], %s270
        // Predicated region
        $region45: #{tpu_custom_call.1} parent=39 // pred_check
          %p272 = pneg %p71
        $region46: #{tpu_custom_call.1} parent=39 // pred_check_branch
          %274 = sbr.rel (%p272) target = $region48
        $region47: #{tpu_custom_call.1} parent=39 // pred_region
          %275 = dma.done %s268, 16384
        $region48: #{tpu_custom_call.1} parent=39 // pred_fallthru
          _
        // Predicated region
        $region49: #{tpu_custom_call.1} parent=39 // pred_check
          %p276 = pneg %p92
        $region50: #{tpu_custom_call.1} parent=39 // pred_check_branch
          %278 = sbr.rel (%p276) target = $region52
        $region51: #{tpu_custom_call.1} parent=39 // pred_region
          %279 = dma.done [#allocation7], 64
        $region52: #{tpu_custom_call.1} parent=39 // pred_fallthru
          _
        // Predicated region
        $region53: #{tpu_custom_call.1} parent=39 // pred_check
          %p280 = pneg %p113
        $region54: #{tpu_custom_call.1} parent=39 // pred_check_branch
          %282 = sbr.rel (%p280) target = $region56
        $region55: #{tpu_custom_call.1} parent=39 // pred_region
          %283 = dma.done [#allocation10], 64
        $region56: #{tpu_custom_call.1} parent=39 // pred_fallthru
          _
        // Predicated region
        $region57: #{tpu_custom_call.1} parent=39 // pred_check
          %p284 = pneg %p134
        $region58: #{tpu_custom_call.1} parent=39 // pred_check_branch
          %286 = sbr.rel (%p284) target = $region60
        $region59: #{tpu_custom_call.1} parent=39 // pred_region
          %287 = dma.done [#allocation10], 65536
        $region60: #{tpu_custom_call.1} parent=39 // pred_fallthru
          _
        %s288 = sand.u32 %s32, 1
        %s289 = scalar_lea.sflag [#allocation4], %s288
        %s290 = sand.u32 %s32, 1
        %s291 = smul.addr %s290, 128
        %s292 = scalar_lea.vmem [#allocation3], %s291
        %p293 = pneg %p45
        %p294 = pneg %p42
        %s295 = sand.u32 %s24, 1
        %s296 = scalar_lea.sflag [#allocation7], %s295
        %s297 = sand.u32 %s58, 1
        %s298 = smul.addr %s297, 1024
        %s299 = scalar_lea.vmem [#allocation6], %s298
        %p300 = pneg %p71
        %p301 = pneg %p68
        %p302 = pneg %p92
        %p303 = pneg %p89
        %p304 = pneg %p113
        %p305 = pneg %p110
        %p306 = pneg %p134
        %p307 = pneg %p131
        %p308 = pneg %p155
        %p309 = pneg %p152
        %p310 = scmp.eq.s32.totalorder %s24, 0
        // Predicated region
        $region61: #{tpu_custom_call.1} parent=39 // pred_check
          %p311 = pneg %p310
        $region62: #{tpu_custom_call.1} parent=39 // pred_check_branch
          %313 = sbr.rel (%p311) target = $region64
        $region63: #{tpu_custom_call.1} parent=39 // pred_region
          %314 = vst [vmem:[#allocation2] sm:$0xff] 0.0
          %315 = vst [vmem:[#allocation2 + $0x8] sm:$0xff] 0.0
          %316 = vst [vmem:[#allocation2 + $0x10] sm:$0xff] 0.0
          %317 = vst [vmem:[#allocation2 + $0x18] sm:$0xff] 0.0
          %318 = vst [vmem:[#allocation2 + $0x20] sm:$0xff] 0.0
          %319 = vst [vmem:[#allocation2 + $0x28] sm:$0xff] 0.0
          %320 = vst [vmem:[#allocation2 + $0x30] sm:$0xff] 0.0
          %321 = vst [vmem:[#allocation2 + $0x38] sm:$0xff] 0.0
          %322 = vst [vmem:[#allocation2 + $0x40] sm:$0xff] 0.0
          %323 = vst [vmem:[#allocation2 + $0x48] sm:$0xff] 0.0
          %324 = vst [vmem:[#allocation2 + $0x50] sm:$0xff] 0.0
          %325 = vst [vmem:[#allocation2 + $0x58] sm:$0xff] 0.0
          %326 = vst [vmem:[#allocation2 + $0x60] sm:$0xff] 0.0
          %327 = vst [vmem:[#allocation2 + $0x68] sm:$0xff] 0.0
          %328 = vst [vmem:[#allocation2 + $0x70] sm:$0xff] 0.0
          %329 = vst [vmem:[#allocation2 + $0x78] sm:$0xff] 0.0
          %330 = vst [vmem:[#allocation2 + $0x80] sm:$0xff] 0.0
          %331 = vst [vmem:[#allocation2 + $0x88] sm:$0xff] 0.0
          %332 = vst [vmem:[#allocation2 + $0x90] sm:$0xff] 0.0
          %333 = vst [vmem:[#allocation2 + $0x98] sm:$0xff] 0.0
          %334 = vst [vmem:[#allocation2 + $0xa0] sm:$0xff] 0.0
          %335 = vst [vmem:[#allocation2 + $0xa8] sm:$0xff] 0.0
          %336 = vst [vmem:[#allocation2 + $0xb0] sm:$0xff] 0.0
          %337 = vst [vmem:[#allocation2 + $0xb8] sm:$0xff] 0.0
          %338 = vst [vmem:[#allocation2 + $0xc0] sm:$0xff] 0.0
          %339 = vst [vmem:[#allocation2 + $0xc8] sm:$0xff] 0.0
          %340 = vst [vmem:[#allocation2 + $0xd0] sm:$0xff] 0.0
          %341 = vst [vmem:[#allocation2 + $0xd8] sm:$0xff] 0.0
          %342 = vst [vmem:[#allocation2 + $0xe0] sm:$0xff] 0.0
          %343 = vst [vmem:[#allocation2 + $0xe8] sm:$0xff] 0.0
          %344 = vst [vmem:[#allocation2 + $0xf0] sm:$0xff] 0.0
          %345 = vst [vmem:[#allocation2 + $0xf8] sm:$0xff] 0.0
        $region64: #{tpu_custom_call.1} parent=39 // pred_fallthru
          _
        %v346 = vld [vmem:[#allocation2] sm:$0xff]
        %v347 = vld [vmem:[#allocation2 + $0x8] sm:$0xff]
        %v348 = vld [vmem:[#allocation2 + $0x10] sm:$0xff]
        %v349 = vld [vmem:[#allocation2 + $0x18] sm:$0xff]
        %v350 = vld [vmem:[#allocation2 + $0x20] sm:$0xff]
        %v351 = vld [vmem:[#allocation2 + $0x28] sm:$0xff]
        %v352 = vld [vmem:[#allocation2 + $0x30] sm:$0xff]
        %v353 = vld [vmem:[#allocation2 + $0x38] sm:$0xff]
        %v354 = vld [vmem:[#allocation2 + $0x40] sm:$0xff]
        %v355 = vld [vmem:[#allocation2 + $0x48] sm:$0xff]
        %v356 = vld [vmem:[#allocation2 + $0x50] sm:$0xff]
        %v357 = vld [vmem:[#allocation2 + $0x58] sm:$0xff]
        %v358 = vld [vmem:[#allocation2 + $0x60] sm:$0xff]
        %v359 = vld [vmem:[#allocation2 + $0x68] sm:$0xff]
        %v360 = vld [vmem:[#allocation2 + $0x70] sm:$0xff]
        %v361 = vld [vmem:[#allocation2 + $0x78] sm:$0xff]
        %v362 = vld [vmem:[#allocation2 + $0x80] sm:$0xff]
        %v363 = vld [vmem:[#allocation2 + $0x88] sm:$0xff]
        %v364 = vld [vmem:[#allocation2 + $0x90] sm:$0xff]
        %v365 = vld [vmem:[#allocation2 + $0x98] sm:$0xff]
        %v366 = vld [vmem:[#allocation2 + $0xa0] sm:$0xff]
        %v367 = vld [vmem:[#allocation2 + $0xa8] sm:$0xff]
        %v368 = vld [vmem:[#allocation2 + $0xb0] sm:$0xff]
        %v369 = vld [vmem:[#allocation2 + $0xb8] sm:$0xff]
        %v370 = vld [vmem:[#allocation2 + $0xc0] sm:$0xff]
        %v371 = vld [vmem:[#allocation2 + $0xc8] sm:$0xff]
        %v372 = vld [vmem:[#allocation2 + $0xd0] sm:$0xff]
        %v373 = vld [vmem:[#allocation2 + $0xd8] sm:$0xff]
        %v374 = vld [vmem:[#allocation2 + $0xe0] sm:$0xff]
        %v375 = vld [vmem:[#allocation2 + $0xe8] sm:$0xff]
        %v376 = vld [vmem:[#allocation2 + $0xf0] sm:$0xff]
        %v377 = vld [vmem:[#allocation2 + $0xf8] sm:$0xff]
        %v378 = vld [vmem:[%s262] sm:$0xff]
        %v379 = vld [vmem:[%s262 + $0x8] sm:$0xff]
        %v380 = vld [vmem:[%s262 + $0x10] sm:$0xff]
        %v381 = vld [vmem:[%s262 + $0x18] sm:$0xff]
        %v382 = vld [vmem:[%s262 + $0x20] sm:$0xff]
        %v383 = vld [vmem:[%s262 + $0x28] sm:$0xff]
        %v384 = vld [vmem:[%s262 + $0x30] sm:$0xff]
        %v385 = vld [vmem:[%s262 + $0x38] sm:$0xff]
        %v386 = vld [vmem:[%s262 + $0x40] sm:$0xff]
        %v387 = vld [vmem:[%s262 + $0x48] sm:$0xff]
        %v388 = vld [vmem:[%s262 + $0x50] sm:$0xff]
        %v389 = vld [vmem:[%s262 + $0x58] sm:$0xff]
        %v390 = vld [vmem:[%s262 + $0x60] sm:$0xff]
        %v391 = vld [vmem:[%s262 + $0x68] sm:$0xff]
        %v392 = vld [vmem:[%s262 + $0x70] sm:$0xff]
        %v393 = vld [vmem:[%s262 + $0x78] sm:$0xff]
        %v394 = vld [vmem:[%s271] sm:$0xff]
        %v395 = vld [vmem:[%s271 + $0x8] sm:$0xff]
        %v396 = vld [vmem:[%s271 + $0x10] sm:$0xff]
        %v397 = vld [vmem:[%s271 + $0x18] sm:$0xff]
        %v398 = vld [vmem:[%s271 + $0x20] sm:$0xff]
        %v399 = vld [vmem:[%s271 + $0x28] sm:$0xff]
        %v400 = vld [vmem:[%s271 + $0x30] sm:$0xff]
        %v401 = vld [vmem:[%s271 + $0x38] sm:$0xff]
        %v402 = vld [vmem:[%s271 + $0x40] sm:$0xff]
        %v403 = vld [vmem:[%s271 + $0x48] sm:$0xff]
        %v404 = vld [vmem:[%s271 + $0x50] sm:$0xff]
        %v405 = vld [vmem:[%s271 + $0x58] sm:$0xff]
        %v406 = vld [vmem:[%s271 + $0x60] sm:$0xff]
        %v407 = vld [vmem:[%s271 + $0x68] sm:$0xff]
        %v408 = vld [vmem:[%s271 + $0x70] sm:$0xff]
        %v409 = vld [vmem:[%s271 + $0x78] sm:$0xff]
        %v410 = vld [vmem:[%s271 + $0x80] sm:$0xff]
        %v411 = vld [vmem:[%s271 + $0x88] sm:$0xff]
        %v412 = vld [vmem:[%s271 + $0x90] sm:$0xff]
        %v413 = vld [vmem:[%s271 + $0x98] sm:$0xff]
        %v414 = vld [vmem:[%s271 + $0xa0] sm:$0xff]
        %v415 = vld [vmem:[%s271 + $0xa8] sm:$0xff]
        %v416 = vld [vmem:[%s271 + $0xb0] sm:$0xff]
        %v417 = vld [vmem:[%s271 + $0xb8] sm:$0xff]
        %v418 = vld [vmem:[%s271 + $0xc0] sm:$0xff]
        %v419 = vld [vmem:[%s271 + $0xc8] sm:$0xff]
        %v420 = vld [vmem:[%s271 + $0xd0] sm:$0xff]
        %v421 = vld [vmem:[%s271 + $0xd8] sm:$0xff]
        %v422 = vld [vmem:[%s271 + $0xe0] sm:$0xff]
        %v423 = vld [vmem:[%s271 + $0xe8] sm:$0xff]
        %v424 = vld [vmem:[%s271 + $0xf0] sm:$0xff]
        %v425 = vld [vmem:[%s271 + $0xf8] sm:$0xff]
        %v426 = vld [vmem:[%s271 + $0x100] sm:$0xff]
        %v427 = vld [vmem:[%s271 + $0x108] sm:$0xff]
        %v428 = vld [vmem:[%s271 + $0x110] sm:$0xff]
        %v429 = vld [vmem:[%s271 + $0x118] sm:$0xff]
        %v430 = vld [vmem:[%s271 + $0x120] sm:$0xff]
        %v431 = vld [vmem:[%s271 + $0x128] sm:$0xff]
        %v432 = vld [vmem:[%s271 + $0x130] sm:$0xff]
        %v433 = vld [vmem:[%s271 + $0x138] sm:$0xff]
        %v434 = vld [vmem:[%s271 + $0x140] sm:$0xff]
        %v435 = vld [vmem:[%s271 + $0x148] sm:$0xff]
        %v436 = vld [vmem:[%s271 + $0x150] sm:$0xff]
        %v437 = vld [vmem:[%s271 + $0x158] sm:$0xff]
        %v438 = vld [vmem:[%s271 + $0x160] sm:$0xff]
        %v439 = vld [vmem:[%s271 + $0x168] sm:$0xff]
        %v440 = vld [vmem:[%s271 + $0x170] sm:$0xff]
        %v441 = vld [vmem:[%s271 + $0x178] sm:$0xff]
        %v442 = vld [vmem:[%s271 + $0x180] sm:$0xff]
        %v443 = vld [vmem:[%s271 + $0x188] sm:$0xff]
        %v444 = vld [vmem:[%s271 + $0x190] sm:$0xff]
        %v445 = vld [vmem:[%s271 + $0x198] sm:$0xff]
        %v446 = vld [vmem:[%s271 + $0x1a0] sm:$0xff]
        %v447 = vld [vmem:[%s271 + $0x1a8] sm:$0xff]
        %v448 = vld [vmem:[%s271 + $0x1b0] sm:$0xff]
        %v449 = vld [vmem:[%s271 + $0x1b8] sm:$0xff]
        %v450 = vld [vmem:[%s271 + $0x1c0] sm:$0xff]
        %v451 = vld [vmem:[%s271 + $0x1c8] sm:$0xff]
        %v452 = vld [vmem:[%s271 + $0x1d0] sm:$0xff]
        %v453 = vld [vmem:[%s271 + $0x1d8] sm:$0xff]
        %v454 = vld [vmem:[%s271 + $0x1e0] sm:$0xff]
        %v455 = vld [vmem:[%s271 + $0x1e8] sm:$0xff]
        %v456 = vld [vmem:[%s271 + $0x1f0] sm:$0xff]
        %v457 = vld [vmem:[%s271 + $0x1f8] sm:$0xff]
        %v458 = vld [vmem:[%s271 + $0x200] sm:$0xff]
        %v459 = vld [vmem:[%s271 + $0x208] sm:$0xff]
        %v460 = vld [vmem:[%s271 + $0x210] sm:$0xff]
        %v461 = vld [vmem:[%s271 + $0x218] sm:$0xff]
        %v462 = vld [vmem:[%s271 + $0x220] sm:$0xff]
        %v463 = vld [vmem:[%s271 + $0x228] sm:$0xff]
        %v464 = vld [vmem:[%s271 + $0x230] sm:$0xff]
        %v465 = vld [vmem:[%s271 + $0x238] sm:$0xff]
        %v466 = vld [vmem:[%s271 + $0x240] sm:$0xff]
        %v467 = vld [vmem:[%s271 + $0x248] sm:$0xff]
        %v468 = vld [vmem:[%s271 + $0x250] sm:$0xff]
        %v469 = vld [vmem:[%s271 + $0x258] sm:$0xff]
        %v470 = vld [vmem:[%s271 + $0x260] sm:$0xff]
        %v471 = vld [vmem:[%s271 + $0x268] sm:$0xff]
        %v472 = vld [vmem:[%s271 + $0x270] sm:$0xff]
        %v473 = vld [vmem:[%s271 + $0x278] sm:$0xff]
        %v474 = vld [vmem:[%s271 + $0x280] sm:$0xff]
        %v475 = vld [vmem:[%s271 + $0x288] sm:$0xff]
        %v476 = vld [vmem:[%s271 + $0x290] sm:$0xff]
        %v477 = vld [vmem:[%s271 + $0x298] sm:$0xff]
        %v478 = vld [vmem:[%s271 + $0x2a0] sm:$0xff]
        %v479 = vld [vmem:[%s271 + $0x2a8] sm:$0xff]
        %v480 = vld [vmem:[%s271 + $0x2b0] sm:$0xff]
        %v481 = vld [vmem:[%s271 + $0x2b8] sm:$0xff]
        %v482 = vld [vmem:[%s271 + $0x2c0] sm:$0xff]
        %v483 = vld [vmem:[%s271 + $0x2c8] sm:$0xff]
        %v484 = vld [vmem:[%s271 + $0x2d0] sm:$0xff]
        %v485 = vld [vmem:[%s271 + $0x2d8] sm:$0xff]
        %v486 = vld [vmem:[%s271 + $0x2e0] sm:$0xff]
        %v487 = vld [vmem:[%s271 + $0x2e8] sm:$0xff]
        %v488 = vld [vmem:[%s271 + $0x2f0] sm:$0xff]
        %v489 = vld [vmem:[%s271 + $0x2f8] sm:$0xff]
        %v490 = vld [vmem:[%s271 + $0x300] sm:$0xff]
        %v491 = vld [vmem:[%s271 + $0x308] sm:$0xff]
        %v492 = vld [vmem:[%s271 + $0x310] sm:$0xff]
        %v493 = vld [vmem:[%s271 + $0x318] sm:$0xff]
        %v494 = vld [vmem:[%s271 + $0x320] sm:$0xff]
        %v495 = vld [vmem:[%s271 + $0x328] sm:$0xff]
        %v496 = vld [vmem:[%s271 + $0x330] sm:$0xff]
        %v497 = vld [vmem:[%s271 + $0x338] sm:$0xff]
        %v498 = vld [vmem:[%s271 + $0x340] sm:$0xff]
        %v499 = vld [vmem:[%s271 + $0x348] sm:$0xff]
        %v500 = vld [vmem:[%s271 + $0x350] sm:$0xff]
        %v501 = vld [vmem:[%s271 + $0x358] sm:$0xff]
        %v502 = vld [vmem:[%s271 + $0x360] sm:$0xff]
        %v503 = vld [vmem:[%s271 + $0x368] sm:$0xff]
        %v504 = vld [vmem:[%s271 + $0x370] sm:$0xff]
        %v505 = vld [vmem:[%s271 + $0x378] sm:$0xff]
        %v506 = vld [vmem:[%s271 + $0x380] sm:$0xff]
        %v507 = vld [vmem:[%s271 + $0x388] sm:$0xff]
        %v508 = vld [vmem:[%s271 + $0x390] sm:$0xff]
        %v509 = vld [vmem:[%s271 + $0x398] sm:$0xff]
        %v510 = vld [vmem:[%s271 + $0x3a0] sm:$0xff]
        %v511 = vld [vmem:[%s271 + $0x3a8] sm:$0xff]
        %v512 = vld [vmem:[%s271 + $0x3b0] sm:$0xff]
        %v513 = vld [vmem:[%s271 + $0x3b8] sm:$0xff]
        %v514 = vld [vmem:[%s271 + $0x3c0] sm:$0xff]
        %v515 = vld [vmem:[%s271 + $0x3c8] sm:$0xff]
        %v516 = vld [vmem:[%s271 + $0x3d0] sm:$0xff]
        %v517 = vld [vmem:[%s271 + $0x3d8] sm:$0xff]
        %v518 = vld [vmem:[%s271 + $0x3e0] sm:$0xff]
        %v519 = vld [vmem:[%s271 + $0x3e8] sm:$0xff]
        %v520 = vld [vmem:[%s271 + $0x3f0] sm:$0xff]
        %v521 = vld [vmem:[%s271 + $0x3f8] sm:$0xff]
        %v538 = vunpack.c.l.b16 %v378
        %v539 = vunpack.c.h.b16 %v378
        %v540 = vunpack.c.l.b16 %v379
        %v541 = vunpack.c.h.b16 %v379
        %v542 = vunpack.c.l.b16 %v380
        %v543 = vunpack.c.h.b16 %v380
        %v544 = vunpack.c.l.b16 %v381
        %v545 = vunpack.c.h.b16 %v381
        %v546 = vunpack.c.l.b16 %v382
        %v547 = vunpack.c.h.b16 %v382
        %v548 = vunpack.c.l.b16 %v383
        %v549 = vunpack.c.h.b16 %v383
        %v550 = vunpack.c.l.b16 %v384
        %v551 = vunpack.c.h.b16 %v384
        %v552 = vunpack.c.l.b16 %v385
        %v553 = vunpack.c.h.b16 %v385
        %v554 = vunpack.c.l.b16 %v386
        %v555 = vunpack.c.h.b16 %v386
        %v556 = vunpack.c.l.b16 %v387
        %v557 = vunpack.c.h.b16 %v387
        %v558 = vunpack.c.l.b16 %v388
        %v559 = vunpack.c.h.b16 %v388
        %v560 = vunpack.c.l.b16 %v389
        %v561 = vunpack.c.h.b16 %v389
        %v562 = vunpack.c.l.b16 %v390
        %v563 = vunpack.c.h.b16 %v390
        %v564 = vunpack.c.l.b16 %v391
        %v565 = vunpack.c.h.b16 %v391
        %v566 = vunpack.c.l.b16 %v392
        %v567 = vunpack.c.h.b16 %v392
        %v568 = vunpack.c.l.b16 %v393
        %v569 = vunpack.c.h.b16 %v393
        %v570 = vpack.c.b16 %v542, %v538
        %v571 = vpack.c.b16 %v543, %v539
        %v572 = vpack.c.b16 %v544, %v540
        %v573 = vpack.c.b16 %v545, %v541
        %v574 = vpack.c.b16 %v550, %v546
        %v575 = vpack.c.b16 %v551, %v547
        %v576 = vpack.c.b16 %v552, %v548
        %v577 = vpack.c.b16 %v553, %v549
        %v578 = vpack.c.b16 %v558, %v554
        %v579 = vpack.c.b16 %v559, %v555
        %v580 = vpack.c.b16 %v560, %v556
        %v581 = vpack.c.b16 %v561, %v557
        %v582 = vpack.c.b16 %v566, %v562
        %v583 = vpack.c.b16 %v567, %v563
        %v584 = vpack.c.b16 %v568, %v564
        %v585 = vpack.c.b16 %v569, %v565
        %v730 = vunpack.c.l.b16 %v394
        %v731 = vunpack.c.h.b16 %v394
        %v732 = vunpack.c.l.b16 %v395
        %v733 = vunpack.c.h.b16 %v395
        %v734 = vunpack.c.l.b16 %v396
        %v735 = vunpack.c.h.b16 %v396
        %v736 = vunpack.c.l.b16 %v397
        %v737 = vunpack.c.h.b16 %v397
        %v738 = vunpack.c.l.b16 %v398
        %v739 = vunpack.c.h.b16 %v398
        %v740 = vunpack.c.l.b16 %v399
        %v741 = vunpack.c.h.b16 %v399
        %v742 = vunpack.c.l.b16 %v400
        %v743 = vunpack.c.h.b16 %v400
        %v744 = vunpack.c.l.b16 %v401
        %v745 = vunpack.c.h.b16 %v401
        %v746 = vunpack.c.l.b16 %v402
        %v747 = vunpack.c.h.b16 %v402
        %v748 = vunpack.c.l.b16 %v403
        %v749 = vunpack.c.h.b16 %v403
        %v750 = vunpack.c.l.b16 %v404
        %v751 = vunpack.c.h.b16 %v404
        %v752 = vunpack.c.l.b16 %v405
        %v753 = vunpack.c.h.b16 %v405
        %v754 = vunpack.c.l.b16 %v406
        %v755 = vunpack.c.h.b16 %v406
        %v756 = vunpack.c.l.b16 %v407
        %v757 = vunpack.c.h.b16 %v407
        %v758 = vunpack.c.l.b16 %v408
        %v759 = vunpack.c.h.b16 %v408
        %v760 = vunpack.c.l.b16 %v409
        %v761 = vunpack.c.h.b16 %v409
        %v762 = vunpack.c.l.b16 %v410
        %v763 = vunpack.c.h.b16 %v410
        %v764 = vunpack.c.l.b16 %v411
        %v765 = vunpack.c.h.b16 %v411
        %v766 = vunpack.c.l.b16 %v412
        %v767 = vunpack.c.h.b16 %v412
        %v768 = vunpack.c.l.b16 %v413
        %v769 = vunpack.c.h.b16 %v413
        %v770 = vunpack.c.l.b16 %v414
        %v771 = vunpack.c.h.b16 %v414
        %v772 = vunpack.c.l.b16 %v415
        %v773 = vunpack.c.h.b16 %v415
        %v774 = vunpack.c.l.b16 %v416
        %v775 = vunpack.c.h.b16 %v416
        %v776 = vunpack.c.l.b16 %v417
        %v777 = vunpack.c.h.b16 %v417
        %v778 = vunpack.c.l.b16 %v418
        %v779 = vunpack.c.h.b16 %v418
        %v780 = vunpack.c.l.b16 %v419
        %v781 = vunpack.c.h.b16 %v419
        %v782 = vunpack.c.l.b16 %v420
        %v783 = vunpack.c.h.b16 %v420
        %v784 = vunpack.c.l.b16 %v421
        %v785 = vunpack.c.h.b16 %v421
        %v786 = vunpack.c.l.b16 %v422
        %v787 = vunpack.c.h.b16 %v422
        %v788 = vunpack.c.l.b16 %v423
        %v789 = vunpack.c.h.b16 %v423
        %v790 = vunpack.c.l.b16 %v424
        %v791 = vunpack.c.h.b16 %v424
        %v792 = vunpack.c.l.b16 %v425
        %v793 = vunpack.c.h.b16 %v425
        %v794 = vunpack.c.l.b16 %v426
        %v795 = vunpack.c.h.b16 %v426
        %v796 = vunpack.c.l.b16 %v427
        %v797 = vunpack.c.h.b16 %v427
        %v798 = vunpack.c.l.b16 %v428
        %v799 = vunpack.c.h.b16 %v428
        %v800 = vunpack.c.l.b16 %v429
        %v801 = vunpack.c.h.b16 %v429
        %v802 = vunpack.c.l.b16 %v430
        %v803 = vunpack.c.h.b16 %v430
        %v804 = vunpack.c.l.b16 %v431
        %v805 = vunpack.c.h.b16 %v431
        %v806 = vunpack.c.l.b16 %v432
        %v807 = vunpack.c.h.b16 %v432
        %v808 = vunpack.c.l.b16 %v433
        %v809 = vunpack.c.h.b16 %v433
        %v810 = vunpack.c.l.b16 %v434
        %v811 = vunpack.c.h.b16 %v434
        %v812 = vunpack.c.l.b16 %v435
        %v813 = vunpack.c.h.b16 %v435
        %v814 = vunpack.c.l.b16 %v436
        %v815 = vunpack.c.h.b16 %v436
        %v816 = vunpack.c.l.b16 %v437
        %v817 = vunpack.c.h.b16 %v437
        %v818 = vunpack.c.l.b16 %v438
        %v819 = vunpack.c.h.b16 %v438
        %v820 = vunpack.c.l.b16 %v439
        %v821 = vunpack.c.h.b16 %v439
        %v822 = vunpack.c.l.b16 %v440
        %v823 = vunpack.c.h.b16 %v440
        %v824 = vunpack.c.l.b16 %v441
        %v825 = vunpack.c.h.b16 %v441
        %v826 = vunpack.c.l.b16 %v442
        %v827 = vunpack.c.h.b16 %v442
        %v828 = vunpack.c.l.b16 %v443
        %v829 = vunpack.c.h.b16 %v443
        %v830 = vunpack.c.l.b16 %v444
        %v831 = vunpack.c.h.b16 %v444
        %v832 = vunpack.c.l.b16 %v445
        %v833 = vunpack.c.h.b16 %v445
        %v834 = vunpack.c.l.b16 %v446
        %v835 = vunpack.c.h.b16 %v446
        %v836 = vunpack.c.l.b16 %v447
        %v837 = vunpack.c.h.b16 %v447
        %v838 = vunpack.c.l.b16 %v448
        %v839 = vunpack.c.h.b16 %v448
        %v840 = vunpack.c.l.b16 %v449
        %v841 = vunpack.c.h.b16 %v449
        %v842 = vunpack.c.l.b16 %v450
        %v843 = vunpack.c.h.b16 %v450
        %v844 = vunpack.c.l.b16 %v451
        %v845 = vunpack.c.h.b16 %v451
        %v846 = vunpack.c.l.b16 %v452
        %v847 = vunpack.c.h.b16 %v452
        %v848 = vunpack.c.l.b16 %v453
        %v849 = vunpack.c.h.b16 %v453
        %v850 = vunpack.c.l.b16 %v454
        %v851 = vunpack.c.h.b16 %v454
        %v852 = vunpack.c.l.b16 %v455
        %v853 = vunpack.c.h.b16 %v455
        %v854 = vunpack.c.l.b16 %v456
        %v855 = vunpack.c.h.b16 %v456
        %v856 = vunpack.c.l.b16 %v457
        %v857 = vunpack.c.h.b16 %v457
        %v858 = vunpack.c.l.b16 %v458
        %v859 = vunpack.c.h.b16 %v458
        %v860 = vunpack.c.l.b16 %v459
        %v861 = vunpack.c.h.b16 %v459
        %v862 = vunpack.c.l.b16 %v460
        %v863 = vunpack.c.h.b16 %v460
        %v864 = vunpack.c.l.b16 %v461
        %v865 = vunpack.c.h.b16 %v461
        %v866 = vunpack.c.l.b16 %v462
        %v867 = vunpack.c.h.b16 %v462
        %v868 = vunpack.c.l.b16 %v463
        %v869 = vunpack.c.h.b16 %v463
        %v870 = vunpack.c.l.b16 %v464
        %v871 = vunpack.c.h.b16 %v464
        %v872 = vunpack.c.l.b16 %v465
        %v873 = vunpack.c.h.b16 %v465
        %v874 = vunpack.c.l.b16 %v466
        %v875 = vunpack.c.h.b16 %v466
        %v876 = vunpack.c.l.b16 %v467
        %v877 = vunpack.c.h.b16 %v467
        %v878 = vunpack.c.l.b16 %v468
        %v879 = vunpack.c.h.b16 %v468
        %v880 = vunpack.c.l.b16 %v469
        %v881 = vunpack.c.h.b16 %v469
        %v882 = vunpack.c.l.b16 %v470
        %v883 = vunpack.c.h.b16 %v470
        %v884 = vunpack.c.l.b16 %v471
        %v885 = vunpack.c.h.b16 %v471
        %v886 = vunpack.c.l.b16 %v472
        %v887 = vunpack.c.h.b16 %v472
        %v888 = vunpack.c.l.b16 %v473
        %v889 = vunpack.c.h.b16 %v473
        %v890 = vunpack.c.l.b16 %v474
        %v891 = vunpack.c.h.b16 %v474
        %v892 = vunpack.c.l.b16 %v475
        %v893 = vunpack.c.h.b16 %v475
        %v894 = vunpack.c.l.b16 %v476
        %v895 = vunpack.c.h.b16 %v476
        %v896 = vunpack.c.l.b16 %v477
        %v897 = vunpack.c.h.b16 %v477
        %v898 = vunpack.c.l.b16 %v478
        %v899 = vunpack.c.h.b16 %v478
        %v900 = vunpack.c.l.b16 %v479
        %v901 = vunpack.c.h.b16 %v479
        %v902 = vunpack.c.l.b16 %v480
        %v903 = vunpack.c.h.b16 %v480
        %v904 = vunpack.c.l.b16 %v481
        %v905 = vunpack.c.h.b16 %v481
        %v906 = vunpack.c.l.b16 %v482
        %v907 = vunpack.c.h.b16 %v482
        %v908 = vunpack.c.l.b16 %v483
        %v909 = vunpack.c.h.b16 %v483
        %v910 = vunpack.c.l.b16 %v484
        %v911 = vunpack.c.h.b16 %v484
        %v912 = vunpack.c.l.b16 %v485
        %v913 = vunpack.c.h.b16 %v485
        %v914 = vunpack.c.l.b16 %v486
        %v915 = vunpack.c.h.b16 %v486
        %v916 = vunpack.c.l.b16 %v487
        %v917 = vunpack.c.h.b16 %v487
        %v918 = vunpack.c.l.b16 %v488
        %v919 = vunpack.c.h.b16 %v488
        %v920 = vunpack.c.l.b16 %v489
        %v921 = vunpack.c.h.b16 %v489
        %v922 = vunpack.c.l.b16 %v490
        %v923 = vunpack.c.h.b16 %v490
        %v924 = vunpack.c.l.b16 %v491
        %v925 = vunpack.c.h.b16 %v491
        %v926 = vunpack.c.l.b16 %v492
        %v927 = vunpack.c.h.b16 %v492
        %v928 = vunpack.c.l.b16 %v493
        %v929 = vunpack.c.h.b16 %v493
        %v930 = vunpack.c.l.b16 %v494
        %v931 = vunpack.c.h.b16 %v494
        %v932 = vunpack.c.l.b16 %v495
        %v933 = vunpack.c.h.b16 %v495
        %v934 = vunpack.c.l.b16 %v496
        %v935 = vunpack.c.h.b16 %v496
        %v936 = vunpack.c.l.b16 %v497
        %v937 = vunpack.c.h.b16 %v497
        %v938 = vunpack.c.l.b16 %v498
        %v939 = vunpack.c.h.b16 %v498
        %v940 = vunpack.c.l.b16 %v499
        %v941 = vunpack.c.h.b16 %v499
        %v942 = vunpack.c.l.b16 %v500
        %v943 = vunpack.c.h.b16 %v500
        %v944 = vunpack.c.l.b16 %v501
        %v945 = vunpack.c.h.b16 %v501
        %v946 = vunpack.c.l.b16 %v502
        %v947 = vunpack.c.h.b16 %v502
        %v948 = vunpack.c.l.b16 %v503
        %v949 = vunpack.c.h.b16 %v503
        %v950 = vunpack.c.l.b16 %v504
        %v951 = vunpack.c.h.b16 %v504
        %v952 = vunpack.c.l.b16 %v505
        %v953 = vunpack.c.h.b16 %v505
        %v954 = vunpack.c.l.b16 %v506
        %v955 = vunpack.c.h.b16 %v506
        %v956 = vunpack.c.l.b16 %v507
        %v957 = vunpack.c.h.b16 %v507
        %v958 = vunpack.c.l.b16 %v508
        %v959 = vunpack.c.h.b16 %v508
        %v960 = vunpack.c.l.b16 %v509
        %v961 = vunpack.c.h.b16 %v509
        %v962 = vunpack.c.l.b16 %v510
        %v963 = vunpack.c.h.b16 %v510
        %v964 = vunpack.c.l.b16 %v511
        %v965 = vunpack.c.h.b16 %v511
        %v966 = vunpack.c.l.b16 %v512
        %v967 = vunpack.c.h.b16 %v512
        %v968 = vunpack.c.l.b16 %v513
        %v969 = vunpack.c.h.b16 %v513
        %v970 = vunpack.c.l.b16 %v514
        %v971 = vunpack.c.h.b16 %v514
        %v972 = vunpack.c.l.b16 %v515
        %v973 = vunpack.c.h.b16 %v515
        %v974 = vunpack.c.l.b16 %v516
        %v975 = vunpack.c.h.b16 %v516
        %v976 = vunpack.c.l.b16 %v517
        %v977 = vunpack.c.h.b16 %v517
        %v978 = vunpack.c.l.b16 %v518
        %v979 = vunpack.c.h.b16 %v518
        %v980 = vunpack.c.l.b16 %v519
        %v981 = vunpack.c.h.b16 %v519
        %v982 = vunpack.c.l.b16 %v520
        %v983 = vunpack.c.h.b16 %v520
        %v984 = vunpack.c.l.b16 %v521
        %v985 = vunpack.c.h.b16 %v521
        %v986 = vpack.c.b16 %v734, %v730
        %v987 = vpack.c.b16 %v735, %v731
        %v988 = vpack.c.b16 %v736, %v732
        %v989 = vpack.c.b16 %v737, %v733
        %v990 = vpack.c.b16 %v742, %v738
        %v991 = vpack.c.b16 %v743, %v739
        %v992 = vpack.c.b16 %v744, %v740
        %v993 = vpack.c.b16 %v745, %v741
        %v994 = vpack.c.b16 %v750, %v746
        %v995 = vpack.c.b16 %v751, %v747
        %v996 = vpack.c.b16 %v752, %v748
        %v997 = vpack.c.b16 %v753, %v749
        %v998 = vpack.c.b16 %v758, %v754
        %v999 = vpack.c.b16 %v759, %v755
        %v1000 = vpack.c.b16 %v760, %v756
        %v1001 = vpack.c.b16 %v761, %v757
        %v1002 = vpack.c.b16 %v766, %v762
        %v1003 = vpack.c.b16 %v767, %v763
        %v1004 = vpack.c.b16 %v768, %v764
        %v1005 = vpack.c.b16 %v769, %v765
        %v1006 = vpack.c.b16 %v774, %v770
        %v1007 = vpack.c.b16 %v775, %v771
        %v1008 = vpack.c.b16 %v776, %v772
        %v1009 = vpack.c.b16 %v777, %v773
        %v1010 = vpack.c.b16 %v782, %v778
        %v1011 = vpack.c.b16 %v783, %v779
        %v1012 = vpack.c.b16 %v784, %v780
        %v1013 = vpack.c.b16 %v785, %v781
        %v1014 = vpack.c.b16 %v790, %v786
        %v1015 = vpack.c.b16 %v791, %v787
        %v1016 = vpack.c.b16 %v792, %v788
        %v1017 = vpack.c.b16 %v793, %v789
        %v1018 = vpack.c.b16 %v798, %v794
        %v1019 = vpack.c.b16 %v799, %v795
        %v1020 = vpack.c.b16 %v800, %v796
        %v1021 = vpack.c.b16 %v801, %v797
        %v1022 = vpack.c.b16 %v806, %v802
        %v1023 = vpack.c.b16 %v807, %v803
        %v1024 = vpack.c.b16 %v808, %v804
        %v1025 = vpack.c.b16 %v809, %v805
        %v1026 = vpack.c.b16 %v814, %v810
        %v1027 = vpack.c.b16 %v815, %v811
        %v1028 = vpack.c.b16 %v816, %v812
        %v1029 = vpack.c.b16 %v817, %v813
        %v1030 = vpack.c.b16 %v822, %v818
        %v1031 = vpack.c.b16 %v823, %v819
        %v1032 = vpack.c.b16 %v824, %v820
        %v1033 = vpack.c.b16 %v825, %v821
        %v1034 = vpack.c.b16 %v830, %v826
        %v1035 = vpack.c.b16 %v831, %v827
        %v1036 = vpack.c.b16 %v832, %v828
        %v1037 = vpack.c.b16 %v833, %v829
        %v1038 = vpack.c.b16 %v838, %v834
        %v1039 = vpack.c.b16 %v839, %v835
        %v1040 = vpack.c.b16 %v840, %v836
        %v1041 = vpack.c.b16 %v841, %v837
        %v1042 = vpack.c.b16 %v846, %v842
        %v1043 = vpack.c.b16 %v847, %v843
        %v1044 = vpack.c.b16 %v848, %v844
        %v1045 = vpack.c.b16 %v849, %v845
        %v1046 = vpack.c.b16 %v854, %v850
        %v1047 = vpack.c.b16 %v855, %v851
        %v1048 = vpack.c.b16 %v856, %v852
        %v1049 = vpack.c.b16 %v857, %v853
        %v1050 = vpack.c.b16 %v862, %v858
        %v1051 = vpack.c.b16 %v863, %v859
        %v1052 = vpack.c.b16 %v864, %v860
        %v1053 = vpack.c.b16 %v865, %v861
        %v1054 = vpack.c.b16 %v870, %v866
        %v1055 = vpack.c.b16 %v871, %v867
        %v1056 = vpack.c.b16 %v872, %v868
        %v1057 = vpack.c.b16 %v873, %v869
        %v1058 = vpack.c.b16 %v878, %v874
        %v1059 = vpack.c.b16 %v879, %v875
        %v1060 = vpack.c.b16 %v880, %v876
        %v1061 = vpack.c.b16 %v881, %v877
        %v1062 = vpack.c.b16 %v886, %v882
        %v1063 = vpack.c.b16 %v887, %v883
        %v1064 = vpack.c.b16 %v888, %v884
        %v1065 = vpack.c.b16 %v889, %v885
        %v1066 = vpack.c.b16 %v894, %v890
        %v1067 = vpack.c.b16 %v895, %v891
        %v1068 = vpack.c.b16 %v896, %v892
        %v1069 = vpack.c.b16 %v897, %v893
        %v1070 = vpack.c.b16 %v902, %v898
        %v1071 = vpack.c.b16 %v903, %v899
        %v1072 = vpack.c.b16 %v904, %v900
        %v1073 = vpack.c.b16 %v905, %v901
        %v1074 = vpack.c.b16 %v910, %v906
        %v1075 = vpack.c.b16 %v911, %v907
        %v1076 = vpack.c.b16 %v912, %v908
        %v1077 = vpack.c.b16 %v913, %v909
        %v1078 = vpack.c.b16 %v918, %v914
        %v1079 = vpack.c.b16 %v919, %v915
        %v1080 = vpack.c.b16 %v920, %v916
        %v1081 = vpack.c.b16 %v921, %v917
        %v1082 = vpack.c.b16 %v926, %v922
        %v1083 = vpack.c.b16 %v927, %v923
        %v1084 = vpack.c.b16 %v928, %v924
        %v1085 = vpack.c.b16 %v929, %v925
        %v1086 = vpack.c.b16 %v934, %v930
        %v1087 = vpack.c.b16 %v935, %v931
        %v1088 = vpack.c.b16 %v936, %v932
        %v1089 = vpack.c.b16 %v937, %v933
        %v1090 = vpack.c.b16 %v942, %v938
        %v1091 = vpack.c.b16 %v943, %v939
        %v1092 = vpack.c.b16 %v944, %v940
        %v1093 = vpack.c.b16 %v945, %v941
        %v1094 = vpack.c.b16 %v950, %v946
        %v1095 = vpack.c.b16 %v951, %v947
        %v1096 = vpack.c.b16 %v952, %v948
        %v1097 = vpack.c.b16 %v953, %v949
        %v1098 = vpack.c.b16 %v958, %v954
        %v1099 = vpack.c.b16 %v959, %v955
        %v1100 = vpack.c.b16 %v960, %v956
        %v1101 = vpack.c.b16 %v961, %v957
        %v1102 = vpack.c.b16 %v966, %v962
        %v1103 = vpack.c.b16 %v967, %v963
        %v1104 = vpack.c.b16 %v968, %v964
        %v1105 = vpack.c.b16 %v969, %v965
        %v1106 = vpack.c.b16 %v974, %v970
        %v1107 = vpack.c.b16 %v975, %v971
        %v1108 = vpack.c.b16 %v976, %v972
        %v1109 = vpack.c.b16 %v977, %v973
        %v1110 = vpack.c.b16 %v982, %v978
        %v1111 = vpack.c.b16 %v983, %v979
        %v1112 = vpack.c.b16 %v984, %v980
        %v1113 = vpack.c.b16 %v985, %v981
        %1242 = vmatprep.subr.bf16.mxu0 %v987
        %1243 = vmatpush1.bf16.msra.mxu0 %v986
        %1244 = vmatprep.subr.bf16.mxu0 %v991
        %1245 = vmatpush1.bf16.msra.mxu0 %v990
        %1246 = vmatprep.subr.bf16.mxu0 %v995
        %1247 = vmatpush1.bf16.msra.mxu0 %v994
        %1248 = vmatprep.subr.bf16.mxu0 %v999
        %1249 = vmatpush1.bf16.msra.mxu0 %v998
        %1250 = vmatprep.subr.bf16.mxu0 %v1003
        %1251 = vmatpush1.bf16.msra.mxu0 %v1002
        %1252 = vmatprep.subr.bf16.mxu0 %v1007
        %1253 = vmatpush1.bf16.msra.mxu0 %v1006
        %1254 = vmatprep.subr.bf16.mxu0 %v1011
        %1255 = vmatpush1.bf16.msra.mxu0 %v1010
        %1256 = vmatprep.subr.bf16.mxu0 %v1015
        %1257 = vmatpush1.bf16.msra.mxu0 %v1014
        %1258 = vmatprep.subr.bf16.mxu0 %v1019
        %1259 = vmatpush1.bf16.msra.mxu0 %v1018
        %1260 = vmatprep.subr.bf16.mxu0 %v1023
        %1261 = vmatpush1.bf16.msra.mxu0 %v1022
        %1262 = vmatprep.subr.bf16.mxu0 %v1027
        %1263 = vmatpush1.bf16.msra.mxu0 %v1026
        %1264 = vmatprep.subr.bf16.mxu0 %v1031
        %1265 = vmatpush1.bf16.msra.mxu0 %v1030
        %1266 = vmatprep.subr.bf16.mxu0 %v1035
        %1267 = vmatpush1.bf16.msra.mxu0 %v1034
        %1268 = vmatprep.subr.bf16.mxu0 %v1039
        %1269 = vmatpush1.bf16.msra.mxu0 %v1038
        %1270 = vmatprep.subr.bf16.mxu0 %v1043
        %1271 = vmatpush1.bf16.msra.mxu0 %v1042
        %1272 = vmatprep.subr.bf16.mxu0 %v1047
        %1273 = vmatpush1.bf16.msra.mxu0 %v1046
        %1274 = vmatprep.mubr.bf16.mxu0 %v571
        %1275 = vmatmul.mubr.bf16.gmra.mrb[0].mxu0 %v570
        %v1276 = vpop.f32.mrb[0].mxu0
        %v1277 = vadd.f32 0.0, %v1276
        %v1278 = vpop.f32.mrb[0].mxu0
        %v1279 = vadd.f32 0.0, %v1278
        %v1280 = vpop.f32.mrb[0].mxu0
        %v1281 = vadd.f32 0.0, %v1280
        %v1282 = vpop.f32.mrb[0].mxu0
        %v1283 = vadd.f32 0.0, %v1282
        %1284 = vmatprep.mubr.bf16.mxu0 %v575
        %1285 = vmatmul.mubr.bf16.gmra.mrb[0].mxu0 %v574
        %v1286 = vpop.f32.mrb[0].mxu0
        %v1287 = vadd.f32 0.0, %v1286
        %v1288 = vpop.f32.mrb[0].mxu0
        %v1289 = vadd.f32 0.0, %v1288
        %v1290 = vpop.f32.mrb[0].mxu0
        %v1291 = vadd.f32 0.0, %v1290
        %v1292 = vpop.f32.mrb[0].mxu0
        %v1293 = vadd.f32 0.0, %v1292
        %1294 = vmatprep.mubr.bf16.mxu0 %v579
        %1295 = vmatmul.mubr.bf16.gmra.mrb[0].mxu0 %v578
        %v1296 = vpop.f32.mrb[0].mxu0
        %v1297 = vadd.f32 0.0, %v1296
        %v1298 = vpop.f32.mrb[0].mxu0
        %v1299 = vadd.f32 0.0, %v1298
        %v1300 = vpop.f32.mrb[0].mxu0
        %v1301 = vadd.f32 0.0, %v1300
        %v1302 = vpop.f32.mrb[0].mxu0
        %v1303 = vadd.f32 0.0, %v1302
        %1304 = vmatprep.mubr.bf16.mxu0 %v583
        %1305 = vmatmul.mubr.bf16.gmra.mrb[0].mxu0 %v582
        %v1306 = vpop.f32.mrb[0].mxu0
        %v1307 = vadd.f32 0.0, %v1306
        %v1308 = vpop.f32.mrb[0].mxu0
        %v1309 = vadd.f32 0.0, %v1308
        %v1310 = vpop.f32.mrb[0].mxu0
        %v1311 = vadd.f32 0.0, %v1310
        %v1312 = vpop.f32.mrb[0].mxu0
        %v1313 = vadd.f32 0.0, %v1312
        %1314 = vdwg.mxu0
        %1315 = vmatprep.subr.bf16.mxu0 %v1051
        %1316 = vmatpush1.bf16.msra.mxu0 %v1050
        %1317 = vmatprep.subr.bf16.mxu0 %v1055
        %1318 = vmatpush1.bf16.msra.mxu0 %v1054
        %1319 = vmatprep.subr.bf16.mxu0 %v1059
        %1320 = vmatpush1.bf16.msra.mxu0 %v1058
        %1321 = vmatprep.subr.bf16.mxu0 %v1063
        %1322 = vmatpush1.bf16.msra.mxu0 %v1062
        %1323 = vmatprep.subr.bf16.mxu0 %v1067
        %1324 = vmatpush1.bf16.msra.mxu0 %v1066
        %1325 = vmatprep.subr.bf16.mxu0 %v1071
        %1326 = vmatpush1.bf16.msra.mxu0 %v1070
        %1327 = vmatprep.subr.bf16.mxu0 %v1075
        %1328 = vmatpush1.bf16.msra.mxu0 %v1074
        %1329 = vmatprep.subr.bf16.mxu0 %v1079
        %1330 = vmatpush1.bf16.msra.mxu0 %v1078
        %1331 = vmatprep.subr.bf16.mxu0 %v1083
        %1332 = vmatpush1.bf16.msra.mxu0 %v1082
        %1333 = vmatprep.subr.bf16.mxu0 %v1087
        %1334 = vmatpush1.bf16.msra.mxu0 %v1086
        %1335 = vmatprep.subr.bf16.mxu0 %v1091
        %1336 = vmatpush1.bf16.msra.mxu0 %v1090
        %1337 = vmatprep.subr.bf16.mxu0 %v1095
        %1338 = vmatpush1.bf16.msra.mxu0 %v1094
        %1339 = vmatprep.subr.bf16.mxu0 %v1099
        %1340 = vmatpush1.bf16.msra.mxu0 %v1098
        %1341 = vmatprep.subr.bf16.mxu0 %v1103
        %1342 = vmatpush1.bf16.msra.mxu0 %v1102
        %1343 = vmatprep.subr.bf16.mxu0 %v1107
        %1344 = vmatpush1.bf16.msra.mxu0 %v1106
        %1345 = vmatprep.subr.bf16.mxu0 %v1111
        %1346 = vmatpush1.bf16.msra.mxu0 %v1110
        %1347 = vmatprep.mubr.bf16.mxu0 %v573
        %1348 = vmatmul.mubr.bf16.gmra.mrb[0].mxu0 %v572
        %v1349 = vpop.f32.mrb[0].mxu0
        %v1350 = vadd.f32 %v1277, %v1349
        %v1351 = vpop.f32.mrb[0].mxu0
        %v1352 = vadd.f32 %v1279, %v1351
        %v1353 = vpop.f32.mrb[0].mxu0
        %v1354 = vadd.f32 %v1281, %v1353
        %v1355 = vpop.f32.mrb[0].mxu0
        %v1356 = vadd.f32 %v1283, %v1355
        %1357 = vmatprep.mubr.bf16.mxu0 %v577
        %1358 = vmatmul.mubr.bf16.gmra.mrb[0].mxu0 %v576
        %v1359 = vpop.f32.mrb[0].mxu0
        %v1360 = vadd.f32 %v1287, %v1359
        %v1361 = vpop.f32.mrb[0].mxu0
        %v1362 = vadd.f32 %v1289, %v1361
        %v1363 = vpop.f32.mrb[0].mxu0
        %v1364 = vadd.f32 %v1291, %v1363
        %v1365 = vpop.f32.mrb[0].mxu0
        %v1366 = vadd.f32 %v1293, %v1365
        %1367 = vmatprep.mubr.bf16.mxu0 %v581
        %1368 = vmatmul.mubr.bf16.gmra.mrb[0].mxu0 %v580
        %v1369 = vpop.f32.mrb[0].mxu0
        %v1370 = vadd.f32 %v1297, %v1369
        %v1371 = vpop.f32.mrb[0].mxu0
        %v1372 = vadd.f32 %v1299, %v1371
        %v1373 = vpop.f32.mrb[0].mxu0
        %v1374 = vadd.f32 %v1301, %v1373
        %v1375 = vpop.f32.mrb[0].mxu0
        %v1376 = vadd.f32 %v1303, %v1375
        %1377 = vmatprep.mubr.bf16.mxu0 %v585
        %1378 = vmatmul.mubr.bf16.gmra.mrb[0].mxu0 %v584
        %v1379 = vpop.f32.mrb[0].mxu0
        %v1380 = vadd.f32 %v1307, %v1379
        %v1381 = vpop.f32.mrb[0].mxu0
        %v1382 = vadd.f32 %v1309, %v1381
        %v1383 = vpop.f32.mrb[0].mxu0
        %v1384 = vadd.f32 %v1311, %v1383
        %v1385 = vpop.f32.mrb[0].mxu0
        %v1386 = vadd.f32 %v1313, %v1385
        %1387 = vdwg.mxu0
        %1388 = vmatprep.subr.bf16.mxu0 %v989
        %1389 = vmatpush1.bf16.msra.mxu0 %v988
        %1390 = vmatprep.subr.bf16.mxu0 %v993
        %1391 = vmatpush1.bf16.msra.mxu0 %v992
        %1392 = vmatprep.subr.bf16.mxu0 %v997
        %1393 = vmatpush1.bf16.msra.mxu0 %v996
        %1394 = vmatprep.subr.bf16.mxu0 %v1001
        %1395 = vmatpush1.bf16.msra.mxu0 %v1000
        %1396 = vmatprep.subr.bf16.mxu0 %v1005
        %1397 = vmatpush1.bf16.msra.mxu0 %v1004
        %1398 = vmatprep.subr.bf16.mxu0 %v1009
        %1399 = vmatpush1.bf16.msra.mxu0 %v1008
        %1400 = vmatprep.subr.bf16.mxu0 %v1013
        %1401 = vmatpush1.bf16.msra.mxu0 %v1012
        %1402 = vmatprep.subr.bf16.mxu0 %v1017
        %1403 = vmatpush1.bf16.msra.mxu0 %v1016
        %1404 = vmatprep.subr.bf16.mxu0 %v1021
        %1405 = vmatpush1.bf16.msra.mxu0 %v1020
        %1406 = vmatprep.subr.bf16.mxu0 %v1025
        %1407 = vmatpush1.bf16.msra.mxu0 %v1024
        %1408 = vmatprep.subr.bf16.mxu0 %v1029
        %1409 = vmatpush1.bf16.msra.mxu0 %v1028
        %1410 = vmatprep.subr.bf16.mxu0 %v1033
        %1411 = vmatpush1.bf16.msra.mxu0 %v1032
        %1412 = vmatprep.subr.bf16.mxu0 %v1037
        %1413 = vmatpush1.bf16.msra.mxu0 %v1036
        %1414 = vmatprep.subr.bf16.mxu0 %v1041
        %1415 = vmatpush1.bf16.msra.mxu0 %v1040
        %1416 = vmatprep.subr.bf16.mxu0 %v1045
        %1417 = vmatpush1.bf16.msra.mxu0 %v1044
        %1418 = vmatprep.subr.bf16.mxu0 %v1049
        %1419 = vmatpush1.bf16.msra.mxu0 %v1048
        %1420 = vmatprep.mubr.bf16.mxu0 %v571
        %1421 = vmatmul.mubr.bf16.gmra.mrb[0].mxu0 %v570
        %v1422 = vpop.f32.mrb[0].mxu0
        %v1423 = vadd.f32 0.0, %v1422
        %v1424 = vpop.f32.mrb[0].mxu0
        %v1425 = vadd.f32 0.0, %v1424
        %v1426 = vpop.f32.mrb[0].mxu0
        %v1427 = vadd.f32 0.0, %v1426
        %v1428 = vpop.f32.mrb[0].mxu0
        %v1429 = vadd.f32 0.0, %v1428
        %1430 = vmatprep.mubr.bf16.mxu0 %v575
        %1431 = vmatmul.mubr.bf16.gmra.mrb[0].mxu0 %v574
        %v1432 = vpop.f32.mrb[0].mxu0
        %v1433 = vadd.f32 0.0, %v1432
        %v1434 = vpop.f32.mrb[0].mxu0
        %v1435 = vadd.f32 0.0, %v1434
        %v1436 = vpop.f32.mrb[0].mxu0
        %v1437 = vadd.f32 0.0, %v1436
        %v1438 = vpop.f32.mrb[0].mxu0
        %v1439 = vadd.f32 0.0, %v1438
        %1440 = vmatprep.mubr.bf16.mxu0 %v579
        %1441 = vmatmul.mubr.bf16.gmra.mrb[0].mxu0 %v578
        %v1442 = vpop.f32.mrb[0].mxu0
        %v1443 = vadd.f32 0.0, %v1442
        %v1444 = vpop.f32.mrb[0].mxu0
        %v1445 = vadd.f32 0.0, %v1444
        %v1446 = vpop.f32.mrb[0].mxu0
        %v1447 = vadd.f32 0.0, %v1446
        %v1448 = vpop.f32.mrb[0].mxu0
        %v1449 = vadd.f32 0.0, %v1448
        %1450 = vmatprep.mubr.bf16.mxu0 %v583
        %1451 = vmatmul.mubr.bf16.gmra.mrb[0].mxu0 %v582
        %v1452 = vpop.f32.mrb[0].mxu0
        %v1453 = vadd.f32 0.0, %v1452
        %v1454 = vpop.f32.mrb[0].mxu0
        %v1455 = vadd.f32 0.0, %v1454
        %v1456 = vpop.f32.mrb[0].mxu0
        %v1457 = vadd.f32 0.0, %v1456
        %v1458 = vpop.f32.mrb[0].mxu0
        %v1459 = vadd.f32 0.0, %v1458
        %1460 = vdwg.mxu0
        %1461 = vmatprep.subr.bf16.mxu0 %v1053
        %1462 = vmatpush1.bf16.msra.mxu0 %v1052
        %1463 = vmatprep.subr.bf16.mxu0 %v1057
        %1464 = vmatpush1.bf16.msra.mxu0 %v1056
        %1465 = vmatprep.subr.bf16.mxu0 %v1061
        %1466 = vmatpush1.bf16.msra.mxu0 %v1060
        %1467 = vmatprep.subr.bf16.mxu0 %v1065
        %1468 = vmatpush1.bf16.msra.mxu0 %v1064
        %1469 = vmatprep.subr.bf16.mxu0 %v1069
        %1470 = vmatpush1.bf16.msra.mxu0 %v1068
        %1471 = vmatprep.subr.bf16.mxu0 %v1073
        %1472 = vmatpush1.bf16.msra.mxu0 %v1072
        %1473 = vmatprep.subr.bf16.mxu0 %v1077
        %1474 = vmatpush1.bf16.msra.mxu0 %v1076
        %1475 = vmatprep.subr.bf16.mxu0 %v1081
        %1476 = vmatpush1.bf16.msra.mxu0 %v1080
        %1477 = vmatprep.subr.bf16.mxu0 %v1085
        %1478 = vmatpush1.bf16.msra.mxu0 %v1084
        %1479 = vmatprep.subr.bf16.mxu0 %v1089
        %1480 = vmatpush1.bf16.msra.mxu0 %v1088
        %1481 = vmatprep.subr.bf16.mxu0 %v1093
        %1482 = vmatpush1.bf16.msra.mxu0 %v1092
        %1483 = vmatprep.subr.bf16.mxu0 %v1097
        %1484 = vmatpush1.bf16.msra.mxu0 %v1096
        %1485 = vmatprep.subr.bf16.mxu0 %v1101
        %1486 = vmatpush1.bf16.msra.mxu0 %v1100
        %1487 = vmatprep.subr.bf16.mxu0 %v1105
        %1488 = vmatpush1.bf16.msra.mxu0 %v1104
        %1489 = vmatprep.subr.bf16.mxu0 %v1109
        %1490 = vmatpush1.bf16.msra.mxu0 %v1108
        %1491 = vmatprep.subr.bf16.mxu0 %v1113
        %1492 = vmatpush1.bf16.msra.mxu0 %v1112
        %1493 = vmatprep.mubr.bf16.mxu0 %v573
        %1494 = vmatmul.mubr.bf16.gmra.mrb[0].mxu0 %v572
        %v1495 = vpop.f32.mrb[0].mxu0
        %v1496 = vadd.f32 %v1423, %v1495
        %v1497 = vpop.f32.mrb[0].mxu0
        %v1498 = vadd.f32 %v1425, %v1497
        %v1499 = vpop.f32.mrb[0].mxu0
        %v1500 = vadd.f32 %v1427, %v1499
        %v1501 = vpop.f32.mrb[0].mxu0
        %v1502 = vadd.f32 %v1429, %v1501
        %1503 = vmatprep.mubr.bf16.mxu0 %v577
        %1504 = vmatmul.mubr.bf16.gmra.mrb[0].mxu0 %v576
        %v1505 = vpop.f32.mrb[0].mxu0
        %v1506 = vadd.f32 %v1433, %v1505
        %v1507 = vpop.f32.mrb[0].mxu0
        %v1508 = vadd.f32 %v1435, %v1507
        %v1509 = vpop.f32.mrb[0].mxu0
        %v1510 = vadd.f32 %v1437, %v1509
        %v1511 = vpop.f32.mrb[0].mxu0
        %v1512 = vadd.f32 %v1439, %v1511
        %1513 = vmatprep.mubr.bf16.mxu0 %v581
        %1514 = vmatmul.mubr.bf16.gmra.mrb[0].mxu0 %v580
        %v1515 = vpop.f32.mrb[0].mxu0
        %v1516 = vadd.f32 %v1443, %v1515
        %v1517 = vpop.f32.mrb[0].mxu0
        %v1518 = vadd.f32 %v1445, %v1517
        %v1519 = vpop.f32.mrb[0].mxu0
        %v1520 = vadd.f32 %v1447, %v1519
        %v1521 = vpop.f32.mrb[0].mxu0
        %v1522 = vadd.f32 %v1449, %v1521
        %1523 = vmatprep.mubr.bf16.mxu0 %v585
        %1524 = vmatmul.mubr.bf16.gmra.mrb[0].mxu0 %v584
        %v1525 = vpop.f32.mrb[0].mxu0
        %v1526 = vadd.f32 %v1453, %v1525
        %v1527 = vpop.f32.mrb[0].mxu0
        %v1528 = vadd.f32 %v1455, %v1527
        %v1529 = vpop.f32.mrb[0].mxu0
        %v1530 = vadd.f32 %v1457, %v1529
        %v1531 = vpop.f32.mrb[0].mxu0
        %v1532 = vadd.f32 %v1459, %v1531
        %1533 = vdwg.mxu0
        %v1534 = vadd.f32 %v346, %v1350
        %v1535 = vadd.f32 %v347, %v1352
        %v1536 = vadd.f32 %v348, %v1496
        %v1537 = vadd.f32 %v349, %v1498
        %v1538 = vadd.f32 %v350, %v1354
        %v1539 = vadd.f32 %v351, %v1356
        %v1540 = vadd.f32 %v352, %v1500
        %v1541 = vadd.f32 %v353, %v1502
        %v1542 = vadd.f32 %v354, %v1360
        %v1543 = vadd.f32 %v355, %v1362
        %v1544 = vadd.f32 %v356, %v1506
        %v1545 = vadd.f32 %v357, %v1508
        %v1546 = vadd.f32 %v358, %v1364
        %v1547 = vadd.f32 %v359, %v1366
        %v1548 = vadd.f32 %v360, %v1510
        %v1549 = vadd.f32 %v361, %v1512
        %v1550 = vadd.f32 %v362, %v1370
        %v1551 = vadd.f32 %v363, %v1372
        %v1552 = vadd.f32 %v364, %v1516
        %v1553 = vadd.f32 %v365, %v1518
        %v1554 = vadd.f32 %v366, %v1374
        %v1555 = vadd.f32 %v367, %v1376
        %v1556 = vadd.f32 %v368, %v1520
        %v1557 = vadd.f32 %v369, %v1522
        %v1558 = vadd.f32 %v370, %v1380
        %v1559 = vadd.f32 %v371, %v1382
        %v1560 = vadd.f32 %v372, %v1526
        %v1561 = vadd.f32 %v373, %v1528
        %v1562 = vadd.f32 %v374, %v1384
        %v1563 = vadd.f32 %v375, %v1386
        %v1564 = vadd.f32 %v376, %v1530
        %v1565 = vadd.f32 %v377, %v1532
        %1566 = vst [vmem:[#allocation2] sm:$0xff] %v1534
        %1567 = vst [vmem:[#allocation2 + $0x8] sm:$0xff] %v1535
        %1568 = vst [vmem:[#allocation2 + $0x10] sm:$0xff] %v1536
        %1569 = vst [vmem:[#allocation2 + $0x18] sm:$0xff] %v1537
        %1570 = vst [vmem:[#allocation2 + $0x20] sm:$0xff] %v1538
        %1571 = vst [vmem:[#allocation2 + $0x28] sm:$0xff] %v1539
        %1572 = vst [vmem:[#allocation2 + $0x30] sm:$0xff] %v1540
        %1573 = vst [vmem:[#allocation2 + $0x38] sm:$0xff] %v1541
        %1574 = vst [vmem:[#allocation2 + $0x40] sm:$0xff] %v1542
        %1575 = vst [vmem:[#allocation2 + $0x48] sm:$0xff] %v1543
        %1576 = vst [vmem:[#allocation2 + $0x50] sm:$0xff] %v1544
        %1577 = vst [vmem:[#allocation2 + $0x58] sm:$0xff] %v1545
        %1578 = vst [vmem:[#allocation2 + $0x60] sm:$0xff] %v1546
        %1579 = vst [vmem:[#allocation2 + $0x68] sm:$0xff] %v1547
        %1580 = vst [vmem:[#allocation2 + $0x70] sm:$0xff] %v1548
        %1581 = vst [vmem:[#allocation2 + $0x78] sm:$0xff] %v1549
        %1582 = vst [vmem:[#allocation2 + $0x80] sm:$0xff] %v1550
        %1583 = vst [vmem:[#allocation2 + $0x88] sm:$0xff] %v1551
        %1584 = vst [vmem:[#allocation2 + $0x90] sm:$0xff] %v1552
        %1585 = vst [vmem:[#allocation2 + $0x98] sm:$0xff] %v1553
        %1586 = vst [vmem:[#allocation2 + $0xa0] sm:$0xff] %v1554
        %1587 = vst [vmem:[#allocation2 + $0xa8] sm:$0xff] %v1555
        %1588 = vst [vmem:[#allocation2 + $0xb0] sm:$0xff] %v1556
        %1589 = vst [vmem:[#allocation2 + $0xb8] sm:$0xff] %v1557
        %1590 = vst [vmem:[#allocation2 + $0xc0] sm:$0xff] %v1558
        %1591 = vst [vmem:[#allocation2 + $0xc8] sm:$0xff] %v1559
        %1592 = vst [vmem:[#allocation2 + $0xd0] sm:$0xff] %v1560
        %1593 = vst [vmem:[#allocation2 + $0xd8] sm:$0xff] %v1561
        %1594 = vst [vmem:[#allocation2 + $0xe0] sm:$0xff] %v1562
        %1595 = vst [vmem:[#allocation2 + $0xe8] sm:$0xff] %v1563
        %1596 = vst [vmem:[#allocation2 + $0xf0] sm:$0xff] %v1564
        %1597 = vst [vmem:[#allocation2 + $0xf8] sm:$0xff] %v1565
        %p1598 = scmp.eq.s32.totalorder %s24, 8
        // Predicated region
        $region65: #{tpu_custom_call.1} parent=39 // pred_check
          %p1599 = pneg %p1598
        $region66: #{tpu_custom_call.1} parent=39 // pred_check_branch
          %1601 = sbr.rel (%p1599) target = $region68
        $region67: #{tpu_custom_call.1} parent=39 // pred_region
          %v1602 = vld [vmem:[#allocation2] sm:$0xff]
          %v1603 = vld [vmem:[#allocation2 + $0x8] sm:$0xff]
          %v1604 = vld [vmem:[#allocation2 + $0x10] sm:$0xff]
          %v1605 = vld [vmem:[#allocation2 + $0x18] sm:$0xff]
          %v1606 = vld [vmem:[#allocation2 + $0x20] sm:$0xff]
          %v1607 = vld [vmem:[#allocation2 + $0x28] sm:$0xff]
          %v1608 = vld [vmem:[#allocation2 + $0x30] sm:$0xff]
          %v1609 = vld [vmem:[#allocation2 + $0x38] sm:$0xff]
          %v1610 = vld [vmem:[#allocation2 + $0x40] sm:$0xff]
          %v1611 = vld [vmem:[#allocation2 + $0x48] sm:$0xff]
          %v1612 = vld [vmem:[#allocation2 + $0x50] sm:$0xff]
          %v1613 = vld [vmem:[#allocation2 + $0x58] sm:$0xff]
          %v1614 = vld [vmem:[#allocation2 + $0x60] sm:$0xff]
          %v1615 = vld [vmem:[#allocation2 + $0x68] sm:$0xff]
          %v1616 = vld [vmem:[#allocation2 + $0x70] sm:$0xff]
          %v1617 = vld [vmem:[#allocation2 + $0x78] sm:$0xff]
          %v1618 = vld [vmem:[#allocation2 + $0x80] sm:$0xff]
          %v1619 = vld [vmem:[#allocation2 + $0x88] sm:$0xff]
          %v1620 = vld [vmem:[#allocation2 + $0x90] sm:$0xff]
          %v1621 = vld [vmem:[#allocation2 + $0x98] sm:$0xff]
          %v1622 = vld [vmem:[#allocation2 + $0xa0] sm:$0xff]
          %v1623 = vld [vmem:[#allocation2 + $0xa8] sm:$0xff]
          %v1624 = vld [vmem:[#allocation2 + $0xb0] sm:$0xff]
          %v1625 = vld [vmem:[#allocation2 + $0xb8] sm:$0xff]
          %v1626 = vld [vmem:[#allocation2 + $0xc0] sm:$0xff]
          %v1627 = vld [vmem:[#allocation2 + $0xc8] sm:$0xff]
          %v1628 = vld [vmem:[#allocation2 + $0xd0] sm:$0xff]
          %v1629 = vld [vmem:[#allocation2 + $0xd8] sm:$0xff]
          %v1630 = vld [vmem:[#allocation2 + $0xe0] sm:$0xff]
          %v1631 = vld [vmem:[#allocation2 + $0xe8] sm:$0xff]
          %v1632 = vld [vmem:[#allocation2 + $0xf0] sm:$0xff]
          %v1633 = vld [vmem:[#allocation2 + $0xf8] sm:$0xff]
          %v1634 = vadd.f32 %v1602, %v1606
          %v1635 = vadd.f32 %v1634, %v1610
          %v1636 = vadd.f32 %v1635, %v1614
          %v1637 = vadd.f32 %v1636, %v1618
          %v1638 = vadd.f32 %v1637, %v1622
          %v1639 = vadd.f32 %v1638, %v1626
          %v1640 = vadd.f32 %v1639, %v1630
          %v1641 = vrot.slane %v1640, 4
          %v1642 = vadd.f32 %v1640, %v1641
          %v1643 = vrot.slane %v1642, 2
          %v1644 = vadd.f32 %v1642, %v1643
          %v1645 = vrot.slane %v1644, 1
          %v1646 = vadd.f32 %v1644, %v1645
          %v1647 = vadd.f32 %v1603, %v1607
          %v1648 = vadd.f32 %v1647, %v1611
          %v1649 = vadd.f32 %v1648, %v1615
          %v1650 = vadd.f32 %v1649, %v1619
          %v1651 = vadd.f32 %v1650, %v1623
          %v1652 = vadd.f32 %v1651, %v1627
          %v1653 = vadd.f32 %v1652, %v1631
          %v1654 = vrot.slane %v1653, 4
          %v1655 = vadd.f32 %v1653, %v1654
          %v1656 = vrot.slane %v1655, 2
          %v1657 = vadd.f32 %v1655, %v1656
          %v1658 = vrot.slane %v1657, 1
          %v1659 = vadd.f32 %v1657, %v1658
          %v1660 = vadd.f32 %v1604, %v1608
          %v1661 = vadd.f32 %v1660, %v1612
          %v1662 = vadd.f32 %v1661, %v1616
          %v1663 = vadd.f32 %v1662, %v1620
          %v1664 = vadd.f32 %v1663, %v1624
          %v1665 = vadd.f32 %v1664, %v1628
          %v1666 = vadd.f32 %v1665, %v1632
          %v1667 = vrot.slane %v1666, 4
          %v1668 = vadd.f32 %v1666, %v1667
          %v1669 = vrot.slane %v1668, 2
          %v1670 = vadd.f32 %v1668, %v1669
          %v1671 = vrot.slane %v1670, 1
          %v1672 = vadd.f32 %v1670, %v1671
          %v1673 = vadd.f32 %v1605, %v1609
          %v1674 = vadd.f32 %v1673, %v1613
          %v1675 = vadd.f32 %v1674, %v1617
          %v1676 = vadd.f32 %v1675, %v1621
          %v1677 = vadd.f32 %v1676, %v1625
          %v1678 = vadd.f32 %v1677, %v1629
          %v1679 = vadd.f32 %v1678, %v1633
          %v1680 = vrot.slane %v1679, 4
          %v1681 = vadd.f32 %v1679, %v1680
          %v1682 = vrot.slane %v1681, 2
          %v1683 = vadd.f32 %v1681, %v1682
          %v1684 = vrot.slane %v1683, 1
          %v1685 = vadd.f32 %v1683, %v1684
          %v1686 = vmul.f32 %v1646, 0.020408163
          %v1687 = vmul.f32 %v1659, 0.020408163
          %v1688 = vmul.f32 %v1672, 0.020408163
          %v1689 = vmul.f32 %v1685, 0.020408163
          %v1690 = vmul.f32 %v1602, %v1602
          %v1691 = vmul.f32 %v1603, %v1603
          %v1692 = vmul.f32 %v1604, %v1604
          %v1693 = vmul.f32 %v1605, %v1605
          %v1694 = vmul.f32 %v1606, %v1606
          %v1695 = vmul.f32 %v1607, %v1607
          %v1696 = vmul.f32 %v1608, %v1608
          %v1697 = vmul.f32 %v1609, %v1609
          %v1698 = vmul.f32 %v1610, %v1610
          %v1699 = vmul.f32 %v1611, %v1611
          %v1700 = vmul.f32 %v1612, %v1612
          %v1701 = vmul.f32 %v1613, %v1613
          %v1702 = vmul.f32 %v1614, %v1614
          %v1703 = vmul.f32 %v1615, %v1615
          %v1704 = vmul.f32 %v1616, %v1616
          %v1705 = vmul.f32 %v1617, %v1617
          %v1706 = vmul.f32 %v1618, %v1618
          %v1707 = vmul.f32 %v1619, %v1619
          %v1708 = vmul.f32 %v1620, %v1620
          %v1709 = vmul.f32 %v1621, %v1621
          %v1710 = vmul.f32 %v1622, %v1622
          %v1711 = vmul.f32 %v1623, %v1623
          %v1712 = vmul.f32 %v1624, %v1624
          %v1713 = vmul.f32 %v1625, %v1625
          %v1714 = vmul.f32 %v1626, %v1626
          %v1715 = vmul.f32 %v1627, %v1627
          %v1716 = vmul.f32 %v1628, %v1628
          %v1717 = vmul.f32 %v1629, %v1629
          %v1718 = vmul.f32 %v1630, %v1630
          %v1719 = vmul.f32 %v1631, %v1631
          %v1720 = vmul.f32 %v1632, %v1632
          %v1721 = vmul.f32 %v1633, %v1633
          %v1722 = vadd.f32 %v1690, %v1694
          %v1723 = vadd.f32 %v1722, %v1698
          %v1724 = vadd.f32 %v1723, %v1702
          %v1725 = vadd.f32 %v1724, %v1706
          %v1726 = vadd.f32 %v1725, %v1710
          %v1727 = vadd.f32 %v1726, %v1714
          %v1728 = vadd.f32 %v1727, %v1718
          %v1729 = vrot.slane %v1728, 4
          %v1730 = vadd.f32 %v1728, %v1729
          %v1731 = vrot.slane %v1730, 2
          %v1732 = vadd.f32 %v1730, %v1731
          %v1733 = vrot.slane %v1732, 1
          %v1734 = vadd.f32 %v1732, %v1733
          %v1735 = vadd.f32 %v1691, %v1695
          %v1736 = vadd.f32 %v1735, %v1699
          %v1737 = vadd.f32 %v1736, %v1703
          %v1738 = vadd.f32 %v1737, %v1707
          %v1739 = vadd.f32 %v1738, %v1711
          %v1740 = vadd.f32 %v1739, %v1715
          %v1741 = vadd.f32 %v1740, %v1719
          %v1742 = vrot.slane %v1741, 4
          %v1743 = vadd.f32 %v1741, %v1742
          %v1744 = vrot.slane %v1743, 2
          %v1745 = vadd.f32 %v1743, %v1744
          %v1746 = vrot.slane %v1745, 1
          %v1747 = vadd.f32 %v1745, %v1746
          %v1748 = vadd.f32 %v1692, %v1696
          %v1749 = vadd.f32 %v1748, %v1700
          %v1750 = vadd.f32 %v1749, %v1704
          %v1751 = vadd.f32 %v1750, %v1708
          %v1752 = vadd.f32 %v1751, %v1712
          %v1753 = vadd.f32 %v1752, %v1716
          %v1754 = vadd.f32 %v1753, %v1720
          %v1755 = vrot.slane %v1754, 4
          %v1756 = vadd.f32 %v1754, %v1755
          %v1757 = vrot.slane %v1756, 2
          %v1758 = vadd.f32 %v1756, %v1757
          %v1759 = vrot.slane %v1758, 1
          %v1760 = vadd.f32 %v1758, %v1759
          %v1761 = vadd.f32 %v1693, %v1697
          %v1762 = vadd.f32 %v1761, %v1701
          %v1763 = vadd.f32 %v1762, %v1705
          %v1764 = vadd.f32 %v1763, %v1709
          %v1765 = vadd.f32 %v1764, %v1713
          %v1766 = vadd.f32 %v1765, %v1717
          %v1767 = vadd.f32 %v1766, %v1721
          %v1768 = vrot.slane %v1767, 4
          %v1769 = vadd.f32 %v1767, %v1768
          %v1770 = vrot.slane %v1769, 2
          %v1771 = vadd.f32 %v1769, %v1770
          %v1772 = vrot.slane %v1771, 1
          %v1773 = vadd.f32 %v1771, %v1772
          %v1774 = vmul.f32 %v1734, 0.020408163
          %v1775 = vmul.f32 %v1747, 0.020408163
          %v1776 = vmul.f32 %v1760, 0.020408163
          %v1777 = vmul.f32 %v1773, 0.020408163
          %v1778 = vmul.f32 %v1686, %v1686
          %v1779 = vmul.f32 %v1687, %v1687
          %v1780 = vmul.f32 %v1688, %v1688
          %v1781 = vmul.f32 %v1689, %v1689
          %v1782 = vsub.f32 %v1774, %v1778
          %v1783 = vsub.f32 %v1775, %v1779
          %v1784 = vsub.f32 %v1776, %v1780
          %v1785 = vsub.f32 %v1777, %v1781
          %v1786 = vsub.f32 %v1602, %v1686
          %v1787 = vsub.f32 %v1603, %v1687
          %v1788 = vsub.f32 %v1604, %v1688
          %v1789 = vsub.f32 %v1605, %v1689
          %v1790 = vsub.f32 %v1606, %v1686
          %v1791 = vsub.f32 %v1607, %v1687
          %v1792 = vsub.f32 %v1608, %v1688
          %v1793 = vsub.f32 %v1609, %v1689
          %v1794 = vsub.f32 %v1610, %v1686
          %v1795 = vsub.f32 %v1611, %v1687
          %v1796 = vsub.f32 %v1612, %v1688
          %v1797 = vsub.f32 %v1613, %v1689
          %v1798 = vsub.f32 %v1614, %v1686
          %v1799 = vsub.f32 %v1615, %v1687
          %v1800 = vsub.f32 %v1616, %v1688
          %v1801 = vsub.f32 %v1617, %v1689
          %v1802 = vsub.f32 %v1618, %v1686
          %v1803 = vsub.f32 %v1619, %v1687
          %v1804 = vsub.f32 %v1620, %v1688
          %v1805 = vsub.f32 %v1621, %v1689
          %v1806 = vsub.f32 %v1622, %v1686
          %v1807 = vsub.f32 %v1623, %v1687
          %v1808 = vsub.f32 %v1624, %v1688
          %v1809 = vsub.f32 %v1625, %v1689
          %v1810 = vsub.f32 %v1626, %v1686
          %v1811 = vsub.f32 %v1627, %v1687
          %v1812 = vsub.f32 %v1628, %v1688
          %v1813 = vsub.f32 %v1629, %v1689
          %v1814 = vsub.f32 %v1630, %v1686
          %v1815 = vsub.f32 %v1631, %v1687
          %v1816 = vsub.f32 %v1632, %v1688
          %v1817 = vsub.f32 %v1633, %v1689
          %v1818 = vadd.f32 %v1782, 1e-05
          %v1819 = vadd.f32 %v1783, 1e-05
          %v1820 = vadd.f32 %v1784, 1e-05
          %v1821 = vadd.f32 %v1785, 1e-05
          %v1822 = vrsqrt.pop %v1818
          %v1823 = vrsqrt.pop %v1819
          %v1824 = vrsqrt.pop %v1820
          %v1825 = vrsqrt.pop %v1821
          %v1826 = vmul.f32 %v1786, %v1822
          %v1827 = vmul.f32 %v1787, %v1823
          %v1828 = vmul.f32 %v1788, %v1824
          %v1829 = vmul.f32 %v1789, %v1825
          %v1830 = vmul.f32 %v1790, %v1822
          %v1831 = vmul.f32 %v1791, %v1823
          %v1832 = vmul.f32 %v1792, %v1824
          %v1833 = vmul.f32 %v1793, %v1825
          %v1834 = vmul.f32 %v1794, %v1822
          %v1835 = vmul.f32 %v1795, %v1823
          %v1836 = vmul.f32 %v1796, %v1824
          %v1837 = vmul.f32 %v1797, %v1825
          %v1838 = vmul.f32 %v1798, %v1822
          %v1839 = vmul.f32 %v1799, %v1823
          %v1840 = vmul.f32 %v1800, %v1824
          %v1841 = vmul.f32 %v1801, %v1825
          %v1842 = vmul.f32 %v1802, %v1822
          %v1843 = vmul.f32 %v1803, %v1823
          %v1844 = vmul.f32 %v1804, %v1824
          %v1845 = vmul.f32 %v1805, %v1825
          %v1846 = vmul.f32 %v1806, %v1822
          %v1847 = vmul.f32 %v1807, %v1823
          %v1848 = vmul.f32 %v1808, %v1824
          %v1849 = vmul.f32 %v1809, %v1825
          %v1850 = vmul.f32 %v1810, %v1822
          %v1851 = vmul.f32 %v1811, %v1823
          %v1852 = vmul.f32 %v1812, %v1824
          %v1853 = vmul.f32 %v1813, %v1825
          %v1854 = vmul.f32 %v1814, %v1822
          %v1855 = vmul.f32 %v1815, %v1823
          %v1856 = vmul.f32 %v1816, %v1824
          %v1857 = vmul.f32 %v1817, %v1825
          %v1858 = vld [vmem:[#allocation8] sm:$0xf]
          %v1860 = vlaneseq
          %v1861 = vshrl.u32 %v1860, 7
          %v1862 = vsub.s32 0, %v1861
          %v1863 = vrot.slane %v1858, %v1862
          %v1864 = vlaneseq
          %v1865 = vshrl.u32 %v1864, 7
          %v1866 = vsub.s32 1, %v1865
          %v1867 = vrot.slane %v1858, %v1866
          %v1868 = vlaneseq
          %v1869 = vshrl.u32 %v1868, 7
          %v1870 = vsub.s32 2, %v1869
          %v1871 = vrot.slane %v1858, %v1870
          %v1872 = vlaneseq
          %v1873 = vshrl.u32 %v1872, 7
          %v1874 = vsub.s32 3, %v1873
          %v1875 = vrot.slane %v1858, %v1874
          %v1880 = vmul.f32 %v1826, %v1863
          %v1881 = vmul.f32 %v1827, %v1867
          %v1882 = vmul.f32 %v1828, %v1871
          %v1883 = vmul.f32 %v1829, %v1875
          %v1884 = vmul.f32 %v1830, %v1863
          %v1885 = vmul.f32 %v1831, %v1867
          %v1886 = vmul.f32 %v1832, %v1871
          %v1887 = vmul.f32 %v1833, %v1875
          %v1888 = vmul.f32 %v1834, %v1863
          %v1889 = vmul.f32 %v1835, %v1867
          %v1890 = vmul.f32 %v1836, %v1871
          %v1891 = vmul.f32 %v1837, %v1875
          %v1892 = vmul.f32 %v1838, %v1863
          %v1893 = vmul.f32 %v1839, %v1867
          %v1894 = vmul.f32 %v1840, %v1871
          %v1895 = vmul.f32 %v1841, %v1875
          %v1896 = vmul.f32 %v1842, %v1863
          %v1897 = vmul.f32 %v1843, %v1867
          %v1898 = vmul.f32 %v1844, %v1871
          %v1899 = vmul.f32 %v1845, %v1875
          %v1900 = vmul.f32 %v1846, %v1863
          %v1901 = vmul.f32 %v1847, %v1867
          %v1902 = vmul.f32 %v1848, %v1871
          %v1903 = vmul.f32 %v1849, %v1875
          %v1904 = vmul.f32 %v1850, %v1863
          %v1905 = vmul.f32 %v1851, %v1867
          %v1906 = vmul.f32 %v1852, %v1871
          %v1907 = vmul.f32 %v1853, %v1875
          %v1908 = vmul.f32 %v1854, %v1863
          %v1909 = vmul.f32 %v1855, %v1867
          %v1910 = vmul.f32 %v1856, %v1871
          %v1911 = vmul.f32 %v1857, %v1875
          %v1912 = vld [vmem:[#allocation9] sm:$0xf]
          %v1914 = vlaneseq
          %v1915 = vshrl.u32 %v1914, 7
          %v1916 = vsub.s32 0, %v1915
          %v1917 = vrot.slane %v1912, %v1916
          %v1918 = vlaneseq
          %v1919 = vshrl.u32 %v1918, 7
          %v1920 = vsub.s32 1, %v1919
          %v1921 = vrot.slane %v1912, %v1920
          %v1922 = vlaneseq
          %v1923 = vshrl.u32 %v1922, 7
          %v1924 = vsub.s32 2, %v1923
          %v1925 = vrot.slane %v1912, %v1924
          %v1926 = vlaneseq
          %v1927 = vshrl.u32 %v1926, 7
          %v1928 = vsub.s32 3, %v1927
          %v1929 = vrot.slane %v1912, %v1928
          %v1934 = vadd.f32 %v1880, %v1917
          %v1935 = vadd.f32 %v1881, %v1921
          %v1936 = vadd.f32 %v1882, %v1925
          %v1937 = vadd.f32 %v1883, %v1929
          %v1938 = vadd.f32 %v1884, %v1917
          %v1939 = vadd.f32 %v1885, %v1921
          %v1940 = vadd.f32 %v1886, %v1925
          %v1941 = vadd.f32 %v1887, %v1929
          %v1942 = vadd.f32 %v1888, %v1917
          %v1943 = vadd.f32 %v1889, %v1921
          %v1944 = vadd.f32 %v1890, %v1925
          %v1945 = vadd.f32 %v1891, %v1929
          %v1946 = vadd.f32 %v1892, %v1917
          %v1947 = vadd.f32 %v1893, %v1921
          %v1948 = vadd.f32 %v1894, %v1925
          %v1949 = vadd.f32 %v1895, %v1929
          %v1950 = vadd.f32 %v1896, %v1917
          %v1951 = vadd.f32 %v1897, %v1921
          %v1952 = vadd.f32 %v1898, %v1925
          %v1953 = vadd.f32 %v1899, %v1929
          %v1954 = vadd.f32 %v1900, %v1917
          %v1955 = vadd.f32 %v1901, %v1921
          %v1956 = vadd.f32 %v1902, %v1925
          %v1957 = vadd.f32 %v1903, %v1929
          %v1958 = vadd.f32 %v1904, %v1917
          %v1959 = vadd.f32 %v1905, %v1921
          %v1960 = vadd.f32 %v1906, %v1925
          %v1961 = vadd.f32 %v1907, %v1929
          %v1962 = vadd.f32 %v1908, %v1917
          %v1963 = vadd.f32 %v1909, %v1921
          %v1964 = vadd.f32 %v1910, %v1925
          %v1965 = vadd.f32 %v1911, %v1929
          %v1966 = vmax.f32 %v1934, 0.0
          %v1967 = vmax.f32 %v1935, 0.0
          %v1968 = vmax.f32 %v1936, 0.0
          %v1969 = vmax.f32 %v1937, 0.0
          %v1970 = vmax.f32 %v1938, 0.0
          %v1971 = vmax.f32 %v1939, 0.0
          %v1972 = vmax.f32 %v1940, 0.0
          %v1973 = vmax.f32 %v1941, 0.0
          %v1974 = vmax.f32 %v1942, 0.0
          %v1975 = vmax.f32 %v1943, 0.0
          %v1976 = vmax.f32 %v1944, 0.0
          %v1977 = vmax.f32 %v1945, 0.0
          %v1978 = vmax.f32 %v1946, 0.0
          %v1979 = vmax.f32 %v1947, 0.0
          %v1980 = vmax.f32 %v1948, 0.0
          %v1981 = vmax.f32 %v1949, 0.0
          %v1982 = vmax.f32 %v1950, 0.0
          %v1983 = vmax.f32 %v1951, 0.0
          %v1984 = vmax.f32 %v1952, 0.0
          %v1985 = vmax.f32 %v1953, 0.0
          %v1986 = vmax.f32 %v1954, 0.0
          %v1987 = vmax.f32 %v1955, 0.0
          %v1988 = vmax.f32 %v1956, 0.0
          %v1989 = vmax.f32 %v1957, 0.0
          %v1990 = vmax.f32 %v1958, 0.0
          %v1991 = vmax.f32 %v1959, 0.0
          %v1992 = vmax.f32 %v1960, 0.0
          %v1993 = vmax.f32 %v1961, 0.0
          %v1994 = vmax.f32 %v1962, 0.0
          %v1995 = vmax.f32 %v1963, 0.0
          %v1996 = vmax.f32 %v1964, 0.0
          %v1997 = vmax.f32 %v1965, 0.0
          %v1998 = vpack.c.bf16 %v1970, %v1966
          %v1999 = vpack.c.bf16 %v1971, %v1967
          %v2000 = vpack.c.bf16 %v1972, %v1968
          %v2001 = vpack.c.bf16 %v1973, %v1969
          %v2002 = vpack.c.bf16 %v1978, %v1974
          %v2003 = vpack.c.bf16 %v1979, %v1975
          %v2004 = vpack.c.bf16 %v1980, %v1976
          %v2005 = vpack.c.bf16 %v1981, %v1977
          %v2006 = vpack.c.bf16 %v1986, %v1982
          %v2007 = vpack.c.bf16 %v1987, %v1983
          %v2008 = vpack.c.bf16 %v1988, %v1984
          %v2009 = vpack.c.bf16 %v1989, %v1985
          %v2010 = vpack.c.bf16 %v1994, %v1990
          %v2011 = vpack.c.bf16 %v1995, %v1991
          %v2012 = vpack.c.bf16 %v1996, %v1992
          %v2013 = vpack.c.bf16 %v1997, %v1993
          %v2014 = vld [vmem:[#allocation11] sm:$0xff]
          %v2015 = vld [vmem:[#allocation11 + $0x8] sm:$0xff]
          %v2016 = vld [vmem:[#allocation11 + $0x10] sm:$0xff]
          %v2017 = vld [vmem:[#allocation11 + $0x18] sm:$0xff]
          %v2018 = vld [vmem:[#allocation11 + $0x20] sm:$0xff]
          %v2019 = vld [vmem:[#allocation11 + $0x28] sm:$0xff]
          %v2020 = vld [vmem:[#allocation11 + $0x30] sm:$0xff]
          %v2021 = vld [vmem:[#allocation11 + $0x38] sm:$0xff]
          %v2022 = vld [vmem:[#allocation11 + $0x40] sm:$0xff]
          %v2023 = vld [vmem:[#allocation11 + $0x48] sm:$0xff]
          %v2024 = vld [vmem:[#allocation11 + $0x50] sm:$0xff]
          %v2025 = vld [vmem:[#allocation11 + $0x58] sm:$0xff]
          %v2026 = vld [vmem:[#allocation11 + $0x60] sm:$0xff]
          %v2027 = vld [vmem:[#allocation11 + $0x68] sm:$0xff]
          %v2028 = vld [vmem:[#allocation11 + $0x70] sm:$0xff]
          %v2029 = vld [vmem:[#allocation11 + $0x78] sm:$0xff]
          %v2030 = vld [vmem:[#allocation11 + $0x80] sm:$0xff]
          %v2031 = vld [vmem:[#allocation11 + $0x88] sm:$0xff]
          %v2032 = vld [vmem:[#allocation11 + $0x90] sm:$0xff]
          %v2033 = vld [vmem:[#allocation11 + $0x98] sm:$0xff]
          %v2034 = vld [vmem:[#allocation11 + $0xa0] sm:$0xff]
          %v2035 = vld [vmem:[#allocation11 + $0xa8] sm:$0xff]
          %v2036 = vld [vmem:[#allocation11 + $0xb0] sm:$0xff]
          %v2037 = vld [vmem:[#allocation11 + $0xb8] sm:$0xff]
          %v2038 = vld [vmem:[#allocation11 + $0xc0] sm:$0xff]
          %v2039 = vld [vmem:[#allocation11 + $0xc8] sm:$0xff]
          %v2040 = vld [vmem:[#allocation11 + $0xd0] sm:$0xff]
          %v2041 = vld [vmem:[#allocation11 + $0xd8] sm:$0xff]
          %v2042 = vld [vmem:[#allocation11 + $0xe0] sm:$0xff]
          %v2043 = vld [vmem:[#allocation11 + $0xe8] sm:$0xff]
          %v2044 = vld [vmem:[#allocation11 + $0xf0] sm:$0xff]
          %v2045 = vld [vmem:[#allocation11 + $0xf8] sm:$0xff]
          %v2046 = vld [vmem:[#allocation11 + $0x100] sm:$0xff]
          %v2047 = vld [vmem:[#allocation11 + $0x108] sm:$0xff]
          %v2048 = vld [vmem:[#allocation11 + $0x110] sm:$0xff]
          %v2049 = vld [vmem:[#allocation11 + $0x118] sm:$0xff]
          %v2050 = vld [vmem:[#allocation11 + $0x120] sm:$0xff]
          %v2051 = vld [vmem:[#allocation11 + $0x128] sm:$0xff]
          %v2052 = vld [vmem:[#allocation11 + $0x130] sm:$0xff]
          %v2053 = vld [vmem:[#allocation11 + $0x138] sm:$0xff]
          %v2054 = vld [vmem:[#allocation11 + $0x140] sm:$0xff]
          %v2055 = vld [vmem:[#allocation11 + $0x148] sm:$0xff]
          %v2056 = vld [vmem:[#allocation11 + $0x150] sm:$0xff]
          %v2057 = vld [vmem:[#allocation11 + $0x158] sm:$0xff]
          %v2058 = vld [vmem:[#allocation11 + $0x160] sm:$0xff]
          %v2059 = vld [vmem:[#allocation11 + $0x168] sm:$0xff]
          %v2060 = vld [vmem:[#allocation11 + $0x170] sm:$0xff]
          %v2061 = vld [vmem:[#allocation11 + $0x178] sm:$0xff]
          %v2062 = vld [vmem:[#allocation11 + $0x180] sm:$0xff]
          %v2063 = vld [vmem:[#allocation11 + $0x188] sm:$0xff]
          %v2064 = vld [vmem:[#allocation11 + $0x190] sm:$0xff]
          %v2065 = vld [vmem:[#allocation11 + $0x198] sm:$0xff]
          %v2066 = vld [vmem:[#allocation11 + $0x1a0] sm:$0xff]
          %v2067 = vld [vmem:[#allocation11 + $0x1a8] sm:$0xff]
          %v2068 = vld [vmem:[#allocation11 + $0x1b0] sm:$0xff]
          %v2069 = vld [vmem:[#allocation11 + $0x1b8] sm:$0xff]
          %v2070 = vld [vmem:[#allocation11 + $0x1c0] sm:$0xff]
          %v2071 = vld [vmem:[#allocation11 + $0x1c8] sm:$0xff]
          %v2072 = vld [vmem:[#allocation11 + $0x1d0] sm:$0xff]
          %v2073 = vld [vmem:[#allocation11 + $0x1d8] sm:$0xff]
          %v2074 = vld [vmem:[#allocation11 + $0x1e0] sm:$0xff]
          %v2075 = vld [vmem:[#allocation11 + $0x1e8] sm:$0xff]
          %v2076 = vld [vmem:[#allocation11 + $0x1f0] sm:$0xff]
          %v2077 = vld [vmem:[#allocation11 + $0x1f8] sm:$0xff]
          %v2078 = vld [vmem:[#allocation11 + $0x200] sm:$0xff]
          %v2079 = vld [vmem:[#allocation11 + $0x208] sm:$0xff]
          %v2080 = vld [vmem:[#allocation11 + $0x210] sm:$0xff]
          %v2081 = vld [vmem:[#allocation11 + $0x218] sm:$0xff]
          %v2082 = vld [vmem:[#allocation11 + $0x220] sm:$0xff]
          %v2083 = vld [vmem:[#allocation11 + $0x228] sm:$0xff]
          %v2084 = vld [vmem:[#allocation11 + $0x230] sm:$0xff]
          %v2085 = vld [vmem:[#allocation11 + $0x238] sm:$0xff]
          %v2086 = vld [vmem:[#allocation11 + $0x240] sm:$0xff]
          %v2087 = vld [vmem:[#allocation11 + $0x248] sm:$0xff]
          %v2088 = vld [vmem:[#allocation11 + $0x250] sm:$0xff]
          %v2089 = vld [vmem:[#allocation11 + $0x258] sm:$0xff]
          %v2090 = vld [vmem:[#allocation11 + $0x260] sm:$0xff]
          %v2091 = vld [vmem:[#allocation11 + $0x268] sm:$0xff]
          %v2092 = vld [vmem:[#allocation11 + $0x270] sm:$0xff]
          %v2093 = vld [vmem:[#allocation11 + $0x278] sm:$0xff]
          %v2094 = vld [vmem:[#allocation11 + $0x280] sm:$0xff]
          %v2095 = vld [vmem:[#allocation11 + $0x288] sm:$0xff]
          %v2096 = vld [vmem:[#allocation11 + $0x290] sm:$0xff]
          %v2097 = vld [vmem:[#allocation11 + $0x298] sm:$0xff]
          %v2098 = vld [vmem:[#allocation11 + $0x2a0] sm:$0xff]
          %v2099 = vld [vmem:[#allocation11 + $0x2a8] sm:$0xff]
          %v2100 = vld [vmem:[#allocation11 + $0x2b0] sm:$0xff]
          %v2101 = vld [vmem:[#allocation11 + $0x2b8] sm:$0xff]
          %v2102 = vld [vmem:[#allocation11 + $0x2c0] sm:$0xff]
          %v2103 = vld [vmem:[#allocation11 + $0x2c8] sm:$0xff]
          %v2104 = vld [vmem:[#allocation11 + $0x2d0] sm:$0xff]
          %v2105 = vld [vmem:[#allocation11 + $0x2d8] sm:$0xff]
          %v2106 = vld [vmem:[#allocation11 + $0x2e0] sm:$0xff]
          %v2107 = vld [vmem:[#allocation11 + $0x2e8] sm:$0xff]
          %v2108 = vld [vmem:[#allocation11 + $0x2f0] sm:$0xff]
          %v2109 = vld [vmem:[#allocation11 + $0x2f8] sm:$0xff]
          %v2110 = vld [vmem:[#allocation11 + $0x300] sm:$0xff]
          %v2111 = vld [vmem:[#allocation11 + $0x308] sm:$0xff]
          %v2112 = vld [vmem:[#allocation11 + $0x310] sm:$0xff]
          %v2113 = vld [vmem:[#allocation11 + $0x318] sm:$0xff]
          %v2114 = vld [vmem:[#allocation11 + $0x320] sm:$0xff]
          %v2115 = vld [vmem:[#allocation11 + $0x328] sm:$0xff]
          %v2116 = vld [vmem:[#allocation11 + $0x330] sm:$0xff]
          %v2117 = vld [vmem:[#allocation11 + $0x338] sm:$0xff]
          %v2118 = vld [vmem:[#allocation11 + $0x340] sm:$0xff]
          %v2119 = vld [vmem:[#allocation11 + $0x348] sm:$0xff]
          %v2120 = vld [vmem:[#allocation11 + $0x350] sm:$0xff]
          %v2121 = vld [vmem:[#allocation11 + $0x358] sm:$0xff]
          %v2122 = vld [vmem:[#allocation11 + $0x360] sm:$0xff]
          %v2123 = vld [vmem:[#allocation11 + $0x368] sm:$0xff]
          %v2124 = vld [vmem:[#allocation11 + $0x370] sm:$0xff]
          %v2125 = vld [vmem:[#allocation11 + $0x378] sm:$0xff]
          %v2126 = vld [vmem:[#allocation11 + $0x380] sm:$0xff]
          %v2127 = vld [vmem:[#allocation11 + $0x388] sm:$0xff]
          %v2128 = vld [vmem:[#allocation11 + $0x390] sm:$0xff]
          %v2129 = vld [vmem:[#allocation11 + $0x398] sm:$0xff]
          %v2130 = vld [vmem:[#allocation11 + $0x3a0] sm:$0xff]
          %v2131 = vld [vmem:[#allocation11 + $0x3a8] sm:$0xff]
          %v2132 = vld [vmem:[#allocation11 + $0x3b0] sm:$0xff]
          %v2133 = vld [vmem:[#allocation11 + $0x3b8] sm:$0xff]
          %v2134 = vld [vmem:[#allocation11 + $0x3c0] sm:$0xff]
          %v2135 = vld [vmem:[#allocation11 + $0x3c8] sm:$0xff]
          %v2136 = vld [vmem:[#allocation11 + $0x3d0] sm:$0xff]
          %v2137 = vld [vmem:[#allocation11 + $0x3d8] sm:$0xff]
          %v2138 = vld [vmem:[#allocation11 + $0x3e0] sm:$0xff]
          %v2139 = vld [vmem:[#allocation11 + $0x3e8] sm:$0xff]
          %v2140 = vld [vmem:[#allocation11 + $0x3f0] sm:$0xff]
          %v2141 = vld [vmem:[#allocation11 + $0x3f8] sm:$0xff]
          %v2142 = vld [vmem:[#allocation11 + $0x400] sm:$0xff]
          %v2143 = vld [vmem:[#allocation11 + $0x408] sm:$0xff]
          %v2144 = vld [vmem:[#allocation11 + $0x410] sm:$0xff]
          %v2145 = vld [vmem:[#allocation11 + $0x418] sm:$0xff]
          %v2146 = vld [vmem:[#allocation11 + $0x420] sm:$0xff]
          %v2147 = vld [vmem:[#allocation11 + $0x428] sm:$0xff]
          %v2148 = vld [vmem:[#allocation11 + $0x430] sm:$0xff]
          %v2149 = vld [vmem:[#allocation11 + $0x438] sm:$0xff]
          %v2150 = vld [vmem:[#allocation11 + $0x440] sm:$0xff]
          %v2151 = vld [vmem:[#allocation11 + $0x448] sm:$0xff]
          %v2152 = vld [vmem:[#allocation11 + $0x450] sm:$0xff]
          %v2153 = vld [vmem:[#allocation11 + $0x458] sm:$0xff]
          %v2154 = vld [vmem:[#allocation11 + $0x460] sm:$0xff]
          %v2155 = vld [vmem:[#allocation11 + $0x468] sm:$0xff]
          %v2156 = vld [vmem:[#allocation11 + $0x470] sm:$0xff]
          %v2157 = vld [vmem:[#allocation11 + $0x478] sm:$0xff]
          %v2158 = vld [vmem:[#allocation11 + $0x480] sm:$0xff]
          %v2159 = vld [vmem:[#allocation11 + $0x488] sm:$0xff]
          %v2160 = vld [vmem:[#allocation11 + $0x490] sm:$0xff]
          %v2161 = vld [vmem:[#allocation11 + $0x498] sm:$0xff]
          %v2162 = vld [vmem:[#allocation11 + $0x4a0] sm:$0xff]
          %v2163 = vld [vmem:[#allocation11 + $0x4a8] sm:$0xff]
          %v2164 = vld [vmem:[#allocation11 + $0x4b0] sm:$0xff]
          %v2165 = vld [vmem:[#allocation11 + $0x4b8] sm:$0xff]
          %v2166 = vld [vmem:[#allocation11 + $0x4c0] sm:$0xff]
          %v2167 = vld [vmem:[#allocation11 + $0x4c8] sm:$0xff]
          %v2168 = vld [vmem:[#allocation11 + $0x4d0] sm:$0xff]
          %v2169 = vld [vmem:[#allocation11 + $0x4d8] sm:$0xff]
          %v2170 = vld [vmem:[#allocation11 + $0x4e0] sm:$0xff]
          %v2171 = vld [vmem:[#allocation11 + $0x4e8] sm:$0xff]
          %v2172 = vld [vmem:[#allocation11 + $0x4f0] sm:$0xff]
          %v2173 = vld [vmem:[#allocation11 + $0x4f8] sm:$0xff]
          %v2174 = vld [vmem:[#allocation11 + $0x500] sm:$0xff]
          %v2175 = vld [vmem:[#allocation11 + $0x508] sm:$0xff]
          %v2176 = vld [vmem:[#allocation11 + $0x510] sm:$0xff]
          %v2177 = vld [vmem:[#allocation11 + $0x518] sm:$0xff]
          %v2178 = vld [vmem:[#allocation11 + $0x520] sm:$0xff]
          %v2179 = vld [vmem:[#allocation11 + $0x528] sm:$0xff]
          %v2180 = vld [vmem:[#allocation11 + $0x530] sm:$0xff]
          %v2181 = vld [vmem:[#allocation11 + $0x538] sm:$0xff]
          %v2182 = vld [vmem:[#allocation11 + $0x540] sm:$0xff]
          %v2183 = vld [vmem:[#allocation11 + $0x548] sm:$0xff]
          %v2184 = vld [vmem:[#allocation11 + $0x550] sm:$0xff]
          %v2185 = vld [vmem:[#allocation11 + $0x558] sm:$0xff]
          %v2186 = vld [vmem:[#allocation11 + $0x560] sm:$0xff]
          %v2187 = vld [vmem:[#allocation11 + $0x568] sm:$0xff]
          %v2188 = vld [vmem:[#allocation11 + $0x570] sm:$0xff]
          %v2189 = vld [vmem:[#allocation11 + $0x578] sm:$0xff]
          %v2190 = vld [vmem:[#allocation11 + $0x580] sm:$0xff]
          %v2191 = vld [vmem:[#allocation11 + $0x588] sm:$0xff]
          %v2192 = vld [vmem:[#allocation11 + $0x590] sm:$0xff]
          %v2193 = vld [vmem:[#allocation11 + $0x598] sm:$0xff]
          %v2194 = vld [vmem:[#allocation11 + $0x5a0] sm:$0xff]
          %v2195 = vld [vmem:[#allocation11 + $0x5a8] sm:$0xff]
          %v2196 = vld [vmem:[#allocation11 + $0x5b0] sm:$0xff]
          %v2197 = vld [vmem:[#allocation11 + $0x5b8] sm:$0xff]
          %v2198 = vld [vmem:[#allocation11 + $0x5c0] sm:$0xff]
          %v2199 = vld [vmem:[#allocation11 + $0x5c8] sm:$0xff]
          %v2200 = vld [vmem:[#allocation11 + $0x5d0] sm:$0xff]
          %v2201 = vld [vmem:[#allocation11 + $0x5d8] sm:$0xff]
          %v2202 = vld [vmem:[#allocation11 + $0x5e0] sm:$0xff]
          %v2203 = vld [vmem:[#allocation11 + $0x5e8] sm:$0xff]
          %v2204 = vld [vmem:[#allocation11 + $0x5f0] sm:$0xff]
          %v2205 = vld [vmem:[#allocation11 + $0x5f8] sm:$0xff]
          %v2206 = vld [vmem:[#allocation11 + $0x600] sm:$0xff]
          %v2207 = vld [vmem:[#allocation11 + $0x608] sm:$0xff]
          %v2208 = vld [vmem:[#allocation11 + $0x610] sm:$0xff]
          %v2209 = vld [vmem:[#allocation11 + $0x618] sm:$0xff]
          %v2210 = vld [vmem:[#allocation11 + $0x620] sm:$0xff]
          %v2211 = vld [vmem:[#allocation11 + $0x628] sm:$0xff]
          %v2212 = vld [vmem:[#allocation11 + $0x630] sm:$0xff]
          %v2213 = vld [vmem:[#allocation11 + $0x638] sm:$0xff]
          %v2214 = vld [vmem:[#allocation11 + $0x640] sm:$0xff]
          %v2215 = vld [vmem:[#allocation11 + $0x648] sm:$0xff]
          %v2216 = vld [vmem:[#allocation11 + $0x650] sm:$0xff]
          %v2217 = vld [vmem:[#allocation11 + $0x658] sm:$0xff]
          %v2218 = vld [vmem:[#allocation11 + $0x660] sm:$0xff]
          %v2219 = vld [vmem:[#allocation11 + $0x668] sm:$0xff]
          %v2220 = vld [vmem:[#allocation11 + $0x670] sm:$0xff]
          %v2221 = vld [vmem:[#allocation11 + $0x678] sm:$0xff]
          %v2222 = vld [vmem:[#allocation11 + $0x680] sm:$0xff]
          %v2223 = vld [vmem:[#allocation11 + $0x688] sm:$0xff]
          %v2224 = vld [vmem:[#allocation11 + $0x690] sm:$0xff]
          %v2225 = vld [vmem:[#allocation11 + $0x698] sm:$0xff]
          %v2226 = vld [vmem:[#allocation11 + $0x6a0] sm:$0xff]
          %v2227 = vld [vmem:[#allocation11 + $0x6a8] sm:$0xff]
          %v2228 = vld [vmem:[#allocation11 + $0x6b0] sm:$0xff]
          %v2229 = vld [vmem:[#allocation11 + $0x6b8] sm:$0xff]
          %v2230 = vld [vmem:[#allocation11 + $0x6c0] sm:$0xff]
          %v2231 = vld [vmem:[#allocation11 + $0x6c8] sm:$0xff]
          %v2232 = vld [vmem:[#allocation11 + $0x6d0] sm:$0xff]
          %v2233 = vld [vmem:[#allocation11 + $0x6d8] sm:$0xff]
          %v2234 = vld [vmem:[#allocation11 + $0x6e0] sm:$0xff]
          %v2235 = vld [vmem:[#allocation11 + $0x6e8] sm:$0xff]
          %v2236 = vld [vmem:[#allocation11 + $0x6f0] sm:$0xff]
          %v2237 = vld [vmem:[#allocation11 + $0x6f8] sm:$0xff]
          %v2238 = vld [vmem:[#allocation11 + $0x700] sm:$0xff]
          %v2239 = vld [vmem:[#allocation11 + $0x708] sm:$0xff]
          %v2240 = vld [vmem:[#allocation11 + $0x710] sm:$0xff]
          %v2241 = vld [vmem:[#allocation11 + $0x718] sm:$0xff]
          %v2242 = vld [vmem:[#allocation11 + $0x720] sm:$0xff]
          %v2243 = vld [vmem:[#allocation11 + $0x728] sm:$0xff]
          %v2244 = vld [vmem:[#allocation11 + $0x730] sm:$0xff]
          %v2245 = vld [vmem:[#allocation11 + $0x738] sm:$0xff]
          %v2246 = vld [vmem:[#allocation11 + $0x740] sm:$0xff]
          %v2247 = vld [vmem:[#allocation11 + $0x748] sm:$0xff]
          %v2248 = vld [vmem:[#allocation11 + $0x750] sm:$0xff]
          %v2249 = vld [vmem:[#allocation11 + $0x758] sm:$0xff]
          %v2250 = vld [vmem:[#allocation11 + $0x760] sm:$0xff]
          %v2251 = vld [vmem:[#allocation11 + $0x768] sm:$0xff]
          %v2252 = vld [vmem:[#allocation11 + $0x770] sm:$0xff]
          %v2253 = vld [vmem:[#allocation11 + $0x778] sm:$0xff]
          %v2254 = vld [vmem:[#allocation11 + $0x780] sm:$0xff]
          %v2255 = vld [vmem:[#allocation11 + $0x788] sm:$0xff]
          %v2256 = vld [vmem:[#allocation11 + $0x790] sm:$0xff]
          %v2257 = vld [vmem:[#allocation11 + $0x798] sm:$0xff]
          %v2258 = vld [vmem:[#allocation11 + $0x7a0] sm:$0xff]
          %v2259 = vld [vmem:[#allocation11 + $0x7a8] sm:$0xff]
          %v2260 = vld [vmem:[#allocation11 + $0x7b0] sm:$0xff]
          %v2261 = vld [vmem:[#allocation11 + $0x7b8] sm:$0xff]
          %v2262 = vld [vmem:[#allocation11 + $0x7c0] sm:$0xff]
          %v2263 = vld [vmem:[#allocation11 + $0x7c8] sm:$0xff]
          %v2264 = vld [vmem:[#allocation11 + $0x7d0] sm:$0xff]
          %v2265 = vld [vmem:[#allocation11 + $0x7d8] sm:$0xff]
          %v2266 = vld [vmem:[#allocation11 + $0x7e0] sm:$0xff]
          %v2267 = vld [vmem:[#allocation11 + $0x7e8] sm:$0xff]
          %v2268 = vld [vmem:[#allocation11 + $0x7f0] sm:$0xff]
          %v2269 = vld [vmem:[#allocation11 + $0x7f8] sm:$0xff]
          %v2270 = vld [vmem:[#allocation11 + $0x800] sm:$0xff]
          %v2271 = vld [vmem:[#allocation11 + $0x808] sm:$0xff]
          %v2272 = vld [vmem:[#allocation11 + $0x810] sm:$0xff]
          %v2273 = vld [vmem:[#allocation11 + $0x818] sm:$0xff]
          %v2274 = vld [vmem:[#allocation11 + $0x820] sm:$0xff]
          %v2275 = vld [vmem:[#allocation11 + $0x828] sm:$0xff]
          %v2276 = vld [vmem:[#allocation11 + $0x830] sm:$0xff]
          %v2277 = vld [vmem:[#allocation11 + $0x838] sm:$0xff]
          %v2278 = vld [vmem:[#allocation11 + $0x840] sm:$0xff]
          %v2279 = vld [vmem:[#allocation11 + $0x848] sm:$0xff]
          %v2280 = vld [vmem:[#allocation11 + $0x850] sm:$0xff]
          %v2281 = vld [vmem:[#allocation11 + $0x858] sm:$0xff]
          %v2282 = vld [vmem:[#allocation11 + $0x860] sm:$0xff]
          %v2283 = vld [vmem:[#allocation11 + $0x868] sm:$0xff]
          %v2284 = vld [vmem:[#allocation11 + $0x870] sm:$0xff]
          %v2285 = vld [vmem:[#allocation11 + $0x878] sm:$0xff]
          %v2286 = vld [vmem:[#allocation11 + $0x880] sm:$0xff]
          %v2287 = vld [vmem:[#allocation11 + $0x888] sm:$0xff]
          %v2288 = vld [vmem:[#allocation11 + $0x890] sm:$0xff]
          %v2289 = vld [vmem:[#allocation11 + $0x898] sm:$0xff]
          %v2290 = vld [vmem:[#allocation11 + $0x8a0] sm:$0xff]
          %v2291 = vld [vmem:[#allocation11 + $0x8a8] sm:$0xff]
          %v2292 = vld [vmem:[#allocation11 + $0x8b0] sm:$0xff]
          %v2293 = vld [vmem:[#allocation11 + $0x8b8] sm:$0xff]
          %v2294 = vld [vmem:[#allocation11 + $0x8c0] sm:$0xff]
          %v2295 = vld [vmem:[#allocation11 + $0x8c8] sm:$0xff]
          %v2296 = vld [vmem:[#allocation11 + $0x8d0] sm:$0xff]
          %v2297 = vld [vmem:[#allocation11 + $0x8d8] sm:$0xff]
          %v2298 = vld [vmem:[#allocation11 + $0x8e0] sm:$0xff]
          %v2299 = vld [vmem:[#allocation11 + $0x8e8] sm:$0xff]
          %v2300 = vld [vmem:[#allocation11 + $0x8f0] sm:$0xff]
          %v2301 = vld [vmem:[#allocation11 + $0x8f8] sm:$0xff]
          %v2302 = vld [vmem:[#allocation11 + $0x900] sm:$0xff]
          %v2303 = vld [vmem:[#allocation11 + $0x908] sm:$0xff]
          %v2304 = vld [vmem:[#allocation11 + $0x910] sm:$0xff]
          %v2305 = vld [vmem:[#allocation11 + $0x918] sm:$0xff]
          %v2306 = vld [vmem:[#allocation11 + $0x920] sm:$0xff]
          %v2307 = vld [vmem:[#allocation11 + $0x928] sm:$0xff]
          %v2308 = vld [vmem:[#allocation11 + $0x930] sm:$0xff]
          %v2309 = vld [vmem:[#allocation11 + $0x938] sm:$0xff]
          %v2310 = vld [vmem:[#allocation11 + $0x940] sm:$0xff]
          %v2311 = vld [vmem:[#allocation11 + $0x948] sm:$0xff]
          %v2312 = vld [vmem:[#allocation11 + $0x950] sm:$0xff]
          %v2313 = vld [vmem:[#allocation11 + $0x958] sm:$0xff]
          %v2314 = vld [vmem:[#allocation11 + $0x960] sm:$0xff]
          %v2315 = vld [vmem:[#allocation11 + $0x968] sm:$0xff]
          %v2316 = vld [vmem:[#allocation11 + $0x970] sm:$0xff]
          %v2317 = vld [vmem:[#allocation11 + $0x978] sm:$0xff]
          %v2318 = vld [vmem:[#allocation11 + $0x980] sm:$0xff]
          %v2319 = vld [vmem:[#allocation11 + $0x988] sm:$0xff]
          %v2320 = vld [vmem:[#allocation11 + $0x990] sm:$0xff]
          %v2321 = vld [vmem:[#allocation11 + $0x998] sm:$0xff]
          %v2322 = vld [vmem:[#allocation11 + $0x9a0] sm:$0xff]
          %v2323 = vld [vmem:[#allocation11 + $0x9a8] sm:$0xff]
          %v2324 = vld [vmem:[#allocation11 + $0x9b0] sm:$0xff]
          %v2325 = vld [vmem:[#allocation11 + $0x9b8] sm:$0xff]
          %v2326 = vld [vmem:[#allocation11 + $0x9c0] sm:$0xff]
          %v2327 = vld [vmem:[#allocation11 + $0x9c8] sm:$0xff]
          %v2328 = vld [vmem:[#allocation11 + $0x9d0] sm:$0xff]
          %v2329 = vld [vmem:[#allocation11 + $0x9d8] sm:$0xff]
          %v2330 = vld [vmem:[#allocation11 + $0x9e0] sm:$0xff]
          %v2331 = vld [vmem:[#allocation11 + $0x9e8] sm:$0xff]
          %v2332 = vld [vmem:[#allocation11 + $0x9f0] sm:$0xff]
          %v2333 = vld [vmem:[#allocation11 + $0x9f8] sm:$0xff]
          %v2334 = vld [vmem:[#allocation11 + $0xa00] sm:$0xff]
          %v2335 = vld [vmem:[#allocation11 + $0xa08] sm:$0xff]
          %v2336 = vld [vmem:[#allocation11 + $0xa10] sm:$0xff]
          %v2337 = vld [vmem:[#allocation11 + $0xa18] sm:$0xff]
          %v2338 = vld [vmem:[#allocation11 + $0xa20] sm:$0xff]
          %v2339 = vld [vmem:[#allocation11 + $0xa28] sm:$0xff]
          %v2340 = vld [vmem:[#allocation11 + $0xa30] sm:$0xff]
          %v2341 = vld [vmem:[#allocation11 + $0xa38] sm:$0xff]
          %v2342 = vld [vmem:[#allocation11 + $0xa40] sm:$0xff]
          %v2343 = vld [vmem:[#allocation11 + $0xa48] sm:$0xff]
          %v2344 = vld [vmem:[#allocation11 + $0xa50] sm:$0xff]
          %v2345 = vld [vmem:[#allocation11 + $0xa58] sm:$0xff]
          %v2346 = vld [vmem:[#allocation11 + $0xa60] sm:$0xff]
          %v2347 = vld [vmem:[#allocation11 + $0xa68] sm:$0xff]
          %v2348 = vld [vmem:[#allocation11 + $0xa70] sm:$0xff]
          %v2349 = vld [vmem:[#allocation11 + $0xa78] sm:$0xff]
          %v2350 = vld [vmem:[#allocation11 + $0xa80] sm:$0xff]
          %v2351 = vld [vmem:[#allocation11 + $0xa88] sm:$0xff]
          %v2352 = vld [vmem:[#allocation11 + $0xa90] sm:$0xff]
          %v2353 = vld [vmem:[#allocation11 + $0xa98] sm:$0xff]
          %v2354 = vld [vmem:[#allocation11 + $0xaa0] sm:$0xff]
          %v2355 = vld [vmem:[#allocation11 + $0xaa8] sm:$0xff]
          %v2356 = vld [vmem:[#allocation11 + $0xab0] sm:$0xff]
          %v2357 = vld [vmem:[#allocation11 + $0xab8] sm:$0xff]
          %v2358 = vld [vmem:[#allocation11 + $0xac0] sm:$0xff]
          %v2359 = vld [vmem:[#allocation11 + $0xac8] sm:$0xff]
          %v2360 = vld [vmem:[#allocation11 + $0xad0] sm:$0xff]
          %v2361 = vld [vmem:[#allocation11 + $0xad8] sm:$0xff]
          %v2362 = vld [vmem:[#allocation11 + $0xae0] sm:$0xff]
          %v2363 = vld [vmem:[#allocation11 + $0xae8] sm:$0xff]
          %v2364 = vld [vmem:[#allocation11 + $0xaf0] sm:$0xff]
          %v2365 = vld [vmem:[#allocation11 + $0xaf8] sm:$0xff]
          %v2366 = vld [vmem:[#allocation11 + $0xb00] sm:$0xff]
          %v2367 = vld [vmem:[#allocation11 + $0xb08] sm:$0xff]
          %v2368 = vld [vmem:[#allocation11 + $0xb10] sm:$0xff]
          %v2369 = vld [vmem:[#allocation11 + $0xb18] sm:$0xff]
          %v2370 = vld [vmem:[#allocation11 + $0xb20] sm:$0xff]
          %v2371 = vld [vmem:[#allocation11 + $0xb28] sm:$0xff]
          %v2372 = vld [vmem:[#allocation11 + $0xb30] sm:$0xff]
          %v2373 = vld [vmem:[#allocation11 + $0xb38] sm:$0xff]
          %v2374 = vld [vmem:[#allocation11 + $0xb40] sm:$0xff]
          %v2375 = vld [vmem:[#allocation11 + $0xb48] sm:$0xff]
          %v2376 = vld [vmem:[#allocation11 + $0xb50] sm:$0xff]
          %v2377 = vld [vmem:[#allocation11 + $0xb58] sm:$0xff]
          %v2378 = vld [vmem:[#allocation11 + $0xb60] sm:$0xff]
          %v2379 = vld [vmem:[#allocation11 + $0xb68] sm:$0xff]
          %v2380 = vld [vmem:[#allocation11 + $0xb70] sm:$0xff]
          %v2381 = vld [vmem:[#allocation11 + $0xb78] sm:$0xff]
          %v2382 = vld [vmem:[#allocation11 + $0xb80] sm:$0xff]
          %v2383 = vld [vmem:[#allocation11 + $0xb88] sm:$0xff]
          %v2384 = vld [vmem:[#allocation11 + $0xb90] sm:$0xff]
          %v2385 = vld [vmem:[#allocation11 + $0xb98] sm:$0xff]
          %v2386 = vld [vmem:[#allocation11 + $0xba0] sm:$0xff]
          %v2387 = vld [vmem:[#allocation11 + $0xba8] sm:$0xff]
          %v2388 = vld [vmem:[#allocation11 + $0xbb0] sm:$0xff]
          %v2389 = vld [vmem:[#allocation11 + $0xbb8] sm:$0xff]
          %v2390 = vld [vmem:[#allocation11 + $0xbc0] sm:$0xff]
          %v2391 = vld [vmem:[#allocation11 + $0xbc8] sm:$0xff]
          %v2392 = vld [vmem:[#allocation11 + $0xbd0] sm:$0xff]
          %v2393 = vld [vmem:[#allocation11 + $0xbd8] sm:$0xff]
          %v2394 = vld [vmem:[#allocation11 + $0xbe0] sm:$0xff]
          %v2395 = vld [vmem:[#allocation11 + $0xbe8] sm:$0xff]
          %v2396 = vld [vmem:[#allocation11 + $0xbf0] sm:$0xff]
          %v2397 = vld [vmem:[#allocation11 + $0xbf8] sm:$0xff]
          %v2398 = vld [vmem:[#allocation11 + $0xc00] sm:$0xff]
          %v2399 = vld [vmem:[#allocation11 + $0xc08] sm:$0xff]
          %v2400 = vld [vmem:[#allocation11 + $0xc10] sm:$0xff]
          %v2401 = vld [vmem:[#allocation11 + $0xc18] sm:$0xff]
          %v2402 = vld [vmem:[#allocation11 + $0xc20] sm:$0xff]
          %v2403 = vld [vmem:[#allocation11 + $0xc28] sm:$0xff]
          %v2404 = vld [vmem:[#allocation11 + $0xc30] sm:$0xff]
          %v2405 = vld [vmem:[#allocation11 + $0xc38] sm:$0xff]
          %v2406 = vld [vmem:[#allocation11 + $0xc40] sm:$0xff]
          %v2407 = vld [vmem:[#allocation11 + $0xc48] sm:$0xff]
          %v2408 = vld [vmem:[#allocation11 + $0xc50] sm:$0xff]
          %v2409 = vld [vmem:[#allocation11 + $0xc58] sm:$0xff]
          %v2410 = vld [vmem:[#allocation11 + $0xc60] sm:$0xff]
          %v2411 = vld [vmem:[#allocation11 + $0xc68] sm:$0xff]
          %v2412 = vld [vmem:[#allocation11 + $0xc70] sm:$0xff]
          %v2413 = vld [vmem:[#allocation11 + $0xc78] sm:$0xff]
          %v2414 = vld [vmem:[#allocation11 + $0xc80] sm:$0xff]
          %v2415 = vld [vmem:[#allocation11 + $0xc88] sm:$0xff]
          %v2416 = vld [vmem:[#allocation11 + $0xc90] sm:$0xff]
          %v2417 = vld [vmem:[#allocation11 + $0xc98] sm:$0xff]
          %v2418 = vld [vmem:[#allocation11 + $0xca0] sm:$0xff]
          %v2419 = vld [vmem:[#allocation11 + $0xca8] sm:$0xff]
          %v2420 = vld [vmem:[#allocation11 + $0xcb0] sm:$0xff]
          %v2421 = vld [vmem:[#allocation11 + $0xcb8] sm:$0xff]
          %v2422 = vld [vmem:[#allocation11 + $0xcc0] sm:$0xff]
          %v2423 = vld [vmem:[#allocation11 + $0xcc8] sm:$0xff]
          %v2424 = vld [vmem:[#allocation11 + $0xcd0] sm:$0xff]
          %v2425 = vld [vmem:[#allocation11 + $0xcd8] sm:$0xff]
          %v2426 = vld [vmem:[#allocation11 + $0xce0] sm:$0xff]
          %v2427 = vld [vmem:[#allocation11 + $0xce8] sm:$0xff]
          %v2428 = vld [vmem:[#allocation11 + $0xcf0] sm:$0xff]
          %v2429 = vld [vmem:[#allocation11 + $0xcf8] sm:$0xff]
          %v2430 = vld [vmem:[#allocation11 + $0xd00] sm:$0xff]
          %v2431 = vld [vmem:[#allocation11 + $0xd08] sm:$0xff]
          %v2432 = vld [vmem:[#allocation11 + $0xd10] sm:$0xff]
          %v2433 = vld [vmem:[#allocation11 + $0xd18] sm:$0xff]
          %v2434 = vld [vmem:[#allocation11 + $0xd20] sm:$0xff]
          %v2435 = vld [vmem:[#allocation11 + $0xd28] sm:$0xff]
          %v2436 = vld [vmem:[#allocation11 + $0xd30] sm:$0xff]
          %v2437 = vld [vmem:[#allocation11 + $0xd38] sm:$0xff]
          %v2438 = vld [vmem:[#allocation11 + $0xd40] sm:$0xff]
          %v2439 = vld [vmem:[#allocation11 + $0xd48] sm:$0xff]
          %v2440 = vld [vmem:[#allocation11 + $0xd50] sm:$0xff]
          %v2441 = vld [vmem:[#allocation11 + $0xd58] sm:$0xff]
          %v2442 = vld [vmem:[#allocation11 + $0xd60] sm:$0xff]
          %v2443 = vld [vmem:[#allocation11 + $0xd68] sm:$0xff]
          %v2444 = vld [vmem:[#allocation11 + $0xd70] sm:$0xff]
          %v2445 = vld [vmem:[#allocation11 + $0xd78] sm:$0xff]
          %v2446 = vld [vmem:[#allocation11 + $0xd80] sm:$0xff]
          %v2447 = vld [vmem:[#allocation11 + $0xd88] sm:$0xff]
          %v2448 = vld [vmem:[#allocation11 + $0xd90] sm:$0xff]
          %v2449 = vld [vmem:[#allocation11 + $0xd98] sm:$0xff]
          %v2450 = vld [vmem:[#allocation11 + $0xda0] sm:$0xff]
          %v2451 = vld [vmem:[#allocation11 + $0xda8] sm:$0xff]
          %v2452 = vld [vmem:[#allocation11 + $0xdb0] sm:$0xff]
          %v2453 = vld [vmem:[#allocation11 + $0xdb8] sm:$0xff]
          %v2454 = vld [vmem:[#allocation11 + $0xdc0] sm:$0xff]
          %v2455 = vld [vmem:[#allocation11 + $0xdc8] sm:$0xff]
          %v2456 = vld [vmem:[#allocation11 + $0xdd0] sm:$0xff]
          %v2457 = vld [vmem:[#allocation11 + $0xdd8] sm:$0xff]
          %v2458 = vld [vmem:[#allocation11 + $0xde0] sm:$0xff]
          %v2459 = vld [vmem:[#allocation11 + $0xde8] sm:$0xff]
          %v2460 = vld [vmem:[#allocation11 + $0xdf0] sm:$0xff]
          %v2461 = vld [vmem:[#allocation11 + $0xdf8] sm:$0xff]
          %v2462 = vld [vmem:[#allocation11 + $0xe00] sm:$0xff]
          %v2463 = vld [vmem:[#allocation11 + $0xe08] sm:$0xff]
          %v2464 = vld [vmem:[#allocation11 + $0xe10] sm:$0xff]
          %v2465 = vld [vmem:[#allocation11 + $0xe18] sm:$0xff]
          %v2466 = vld [vmem:[#allocation11 + $0xe20] sm:$0xff]
          %v2467 = vld [vmem:[#allocation11 + $0xe28] sm:$0xff]
          %v2468 = vld [vmem:[#allocation11 + $0xe30] sm:$0xff]
          %v2469 = vld [vmem:[#allocation11 + $0xe38] sm:$0xff]
          %v2470 = vld [vmem:[#allocation11 + $0xe40] sm:$0xff]
          %v2471 = vld [vmem:[#allocation11 + $0xe48] sm:$0xff]
          %v2472 = vld [vmem:[#allocation11 + $0xe50] sm:$0xff]
          %v2473 = vld [vmem:[#allocation11 + $0xe58] sm:$0xff]
          %v2474 = vld [vmem:[#allocation11 + $0xe60] sm:$0xff]
          %v2475 = vld [vmem:[#allocation11 + $0xe68] sm:$0xff]
          %v2476 = vld [vmem:[#allocation11 + $0xe70] sm:$0xff]
          %v2477 = vld [vmem:[#allocation11 + $0xe78] sm:$0xff]
          %v2478 = vld [vmem:[#allocation11 + $0xe80] sm:$0xff]
          %v2479 = vld [vmem:[#allocation11 + $0xe88] sm:$0xff]
          %v2480 = vld [vmem:[#allocation11 + $0xe90] sm:$0xff]
          %v2481 = vld [vmem:[#allocation11 + $0xe98] sm:$0xff]
          %v2482 = vld [vmem:[#allocation11 + $0xea0] sm:$0xff]
          %v2483 = vld [vmem:[#allocation11 + $0xea8] sm:$0xff]
          %v2484 = vld [vmem:[#allocation11 + $0xeb0] sm:$0xff]
          %v2485 = vld [vmem:[#allocation11 + $0xeb8] sm:$0xff]
          %v2486 = vld [vmem:[#allocation11 + $0xec0] sm:$0xff]
          %v2487 = vld [vmem:[#allocation11 + $0xec8] sm:$0xff]
          %v2488 = vld [vmem:[#allocation11 + $0xed0] sm:$0xff]
          %v2489 = vld [vmem:[#allocation11 + $0xed8] sm:$0xff]
          %v2490 = vld [vmem:[#allocation11 + $0xee0] sm:$0xff]
          %v2491 = vld [vmem:[#allocation11 + $0xee8] sm:$0xff]
          %v2492 = vld [vmem:[#allocation11 + $0xef0] sm:$0xff]
          %v2493 = vld [vmem:[#allocation11 + $0xef8] sm:$0xff]
          %v2494 = vld [vmem:[#allocation11 + $0xf00] sm:$0xff]
          %v2495 = vld [vmem:[#allocation11 + $0xf08] sm:$0xff]
          %v2496 = vld [vmem:[#allocation11 + $0xf10] sm:$0xff]
          %v2497 = vld [vmem:[#allocation11 + $0xf18] sm:$0xff]
          %v2498 = vld [vmem:[#allocation11 + $0xf20] sm:$0xff]
          %v2499 = vld [vmem:[#allocation11 + $0xf28] sm:$0xff]
          %v2500 = vld [vmem:[#allocation11 + $0xf30] sm:$0xff]
          %v2501 = vld [vmem:[#allocation11 + $0xf38] sm:$0xff]
          %v2502 = vld [vmem:[#allocation11 + $0xf40] sm:$0xff]
          %v2503 = vld [vmem:[#allocation11 + $0xf48] sm:$0xff]
          %v2504 = vld [vmem:[#allocation11 + $0xf50] sm:$0xff]
          %v2505 = vld [vmem:[#allocation11 + $0xf58] sm:$0xff]
          %v2506 = vld [vmem:[#allocation11 + $0xf60] sm:$0xff]
          %v2507 = vld [vmem:[#allocation11 + $0xf68] sm:$0xff]
          %v2508 = vld [vmem:[#allocation11 + $0xf70] sm:$0xff]
          %v2509 = vld [vmem:[#allocation11 + $0xf78] sm:$0xff]
          %v2510 = vld [vmem:[#allocation11 + $0xf80] sm:$0xff]
          %v2511 = vld [vmem:[#allocation11 + $0xf88] sm:$0xff]
          %v2512 = vld [vmem:[#allocation11 + $0xf90] sm:$0xff]
          %v2513 = vld [vmem:[#allocation11 + $0xf98] sm:$0xff]
          %v2514 = vld [vmem:[#allocation11 + $0xfa0] sm:$0xff]
          %v2515 = vld [vmem:[#allocation11 + $0xfa8] sm:$0xff]
          %v2516 = vld [vmem:[#allocation11 + $0xfb0] sm:$0xff]
          %v2517 = vld [vmem:[#allocation11 + $0xfb8] sm:$0xff]
          %v2518 = vld [vmem:[#allocation11 + $0xfc0] sm:$0xff]
          %v2519 = vld [vmem:[#allocation11 + $0xfc8] sm:$0xff]
          %v2520 = vld [vmem:[#allocation11 + $0xfd0] sm:$0xff]
          %v2521 = vld [vmem:[#allocation11 + $0xfd8] sm:$0xff]
          %v2522 = vld [vmem:[#allocation11 + $0xfe0] sm:$0xff]
          %v2523 = vld [vmem:[#allocation11 + $0xfe8] sm:$0xff]
          %v2524 = vld [vmem:[#allocation11 + $0xff0] sm:$0xff]
          %v2525 = vld [vmem:[#allocation11 + $0xff8] sm:$0xff]
          %v3038 = vunpack.c.l.b16 %v2014
          %v3039 = vunpack.c.h.b16 %v2014
          %v3040 = vunpack.c.l.b16 %v2015
          %v3041 = vunpack.c.h.b16 %v2015
          %v3042 = vunpack.c.l.b16 %v2016
          %v3043 = vunpack.c.h.b16 %v2016
          %v3044 = vunpack.c.l.b16 %v2017
          %v3045 = vunpack.c.h.b16 %v2017
          %v3046 = vunpack.c.l.b16 %v2018
          %v3047 = vunpack.c.h.b16 %v2018
          %v3048 = vunpack.c.l.b16 %v2019
          %v3049 = vunpack.c.h.b16 %v2019
          %v3050 = vunpack.c.l.b16 %v2020
          %v3051 = vunpack.c.h.b16 %v2020
          %v3052 = vunpack.c.l.b16 %v2021
          %v3053 = vunpack.c.h.b16 %v2021
          %v3054 = vunpack.c.l.b16 %v2022
          %v3055 = vunpack.c.h.b16 %v2022
          %v3056 = vunpack.c.l.b16 %v2023
          %v3057 = vunpack.c.h.b16 %v2023
          %v3058 = vunpack.c.l.b16 %v2024
          %v3059 = vunpack.c.h.b16 %v2024
          %v3060 = vunpack.c.l.b16 %v2025
          %v3061 = vunpack.c.h.b16 %v2025
          %v3062 = vunpack.c.l.b16 %v2026
          %v3063 = vunpack.c.h.b16 %v2026
          %v3064 = vunpack.c.l.b16 %v2027
          %v3065 = vunpack.c.h.b16 %v2027
          %v3066 = vunpack.c.l.b16 %v2028
          %v3067 = vunpack.c.h.b16 %v2028
          %v3068 = vunpack.c.l.b16 %v2029
          %v3069 = vunpack.c.h.b16 %v2029
          %v3070 = vunpack.c.l.b16 %v2030
          %v3071 = vunpack.c.h.b16 %v2030
          %v3072 = vunpack.c.l.b16 %v2031
          %v3073 = vunpack.c.h.b16 %v2031
          %v3074 = vunpack.c.l.b16 %v2032
          %v3075 = vunpack.c.h.b16 %v2032
          %v3076 = vunpack.c.l.b16 %v2033
          %v3077 = vunpack.c.h.b16 %v2033
          %v3078 = vunpack.c.l.b16 %v2034
          %v3079 = vunpack.c.h.b16 %v2034
          %v3080 = vunpack.c.l.b16 %v2035
          %v3081 = vunpack.c.h.b16 %v2035
          %v3082 = vunpack.c.l.b16 %v2036
          %v3083 = vunpack.c.h.b16 %v2036
          %v3084 = vunpack.c.l.b16 %v2037
          %v3085 = vunpack.c.h.b16 %v2037
          %v3086 = vunpack.c.l.b16 %v2038
          %v3087 = vunpack.c.h.b16 %v2038
          %v3088 = vunpack.c.l.b16 %v2039
          %v3089 = vunpack.c.h.b16 %v2039
          %v3090 = vunpack.c.l.b16 %v2040
          %v3091 = vunpack.c.h.b16 %v2040
          %v3092 = vunpack.c.l.b16 %v2041
          %v3093 = vunpack.c.h.b16 %v2041
          %v3094 = vunpack.c.l.b16 %v2042
          %v3095 = vunpack.c.h.b16 %v2042
          %v3096 = vunpack.c.l.b16 %v2043
          %v3097 = vunpack.c.h.b16 %v2043
          %v3098 = vunpack.c.l.b16 %v2044
          %v3099 = vunpack.c.h.b16 %v2044
          %v3100 = vunpack.c.l.b16 %v2045
          %v3101 = vunpack.c.h.b16 %v2045
          %v3102 = vunpack.c.l.b16 %v2046
          %v3103 = vunpack.c.h.b16 %v2046
          %v3104 = vunpack.c.l.b16 %v2047
          %v3105 = vunpack.c.h.b16 %v2047
          %v3106 = vunpack.c.l.b16 %v2048
          %v3107 = vunpack.c.h.b16 %v2048
          %v3108 = vunpack.c.l.b16 %v2049
          %v3109 = vunpack.c.h.b16 %v2049
          %v3110 = vunpack.c.l.b16 %v2050
          %v3111 = vunpack.c.h.b16 %v2050
          %v3112 = vunpack.c.l.b16 %v2051
          %v3113 = vunpack.c.h.b16 %v2051
          %v3114 = vunpack.c.l.b16 %v2052
          %v3115 = vunpack.c.h.b16 %v2052
          %v3116 = vunpack.c.l.b16 %v2053
          %v3117 = vunpack.c.h.b16 %v2053
          %v3118 = vunpack.c.l.b16 %v2054
          %v3119 = vunpack.c.h.b16 %v2054
          %v3120 = vunpack.c.l.b16 %v2055
          %v3121 = vunpack.c.h.b16 %v2055
          %v3122 = vunpack.c.l.b16 %v2056
          %v3123 = vunpack.c.h.b16 %v2056
          %v3124 = vunpack.c.l.b16 %v2057
          %v3125 = vunpack.c.h.b16 %v2057
          %v3126 = vunpack.c.l.b16 %v2058
          %v3127 = vunpack.c.h.b16 %v2058
          %v3128 = vunpack.c.l.b16 %v2059
          %v3129 = vunpack.c.h.b16 %v2059
          %v3130 = vunpack.c.l.b16 %v2060
          %v3131 = vunpack.c.h.b16 %v2060
          %v3132 = vunpack.c.l.b16 %v2061
          %v3133 = vunpack.c.h.b16 %v2061
          %v3134 = vunpack.c.l.b16 %v2062
          %v3135 = vunpack.c.h.b16 %v2062
          %v3136 = vunpack.c.l.b16 %v2063
          %v3137 = vunpack.c.h.b16 %v2063
          %v3138 = vunpack.c.l.b16 %v2064
          %v3139 = vunpack.c.h.b16 %v2064
          %v3140 = vunpack.c.l.b16 %v2065
          %v3141 = vunpack.c.h.b16 %v2065
          %v3142 = vunpack.c.l.b16 %v2066
          %v3143 = vunpack.c.h.b16 %v2066
          %v3144 = vunpack.c.l.b16 %v2067
          %v3145 = vunpack.c.h.b16 %v2067
          %v3146 = vunpack.c.l.b16 %v2068
          %v3147 = vunpack.c.h.b16 %v2068
          %v3148 = vunpack.c.l.b16 %v2069
          %v3149 = vunpack.c.h.b16 %v2069
          %v3150 = vunpack.c.l.b16 %v2070
          %v3151 = vunpack.c.h.b16 %v2070
          %v3152 = vunpack.c.l.b16 %v2071
          %v3153 = vunpack.c.h.b16 %v2071
          %v3154 = vunpack.c.l.b16 %v2072
          %v3155 = vunpack.c.h.b16 %v2072
          %v3156 = vunpack.c.l.b16 %v2073
          %v3157 = vunpack.c.h.b16 %v2073
          %v3158 = vunpack.c.l.b16 %v2074
          %v3159 = vunpack.c.h.b16 %v2074
          %v3160 = vunpack.c.l.b16 %v2075
          %v3161 = vunpack.c.h.b16 %v2075
          %v3162 = vunpack.c.l.b16 %v2076
          %v3163 = vunpack.c.h.b16 %v2076
          %v3164 = vunpack.c.l.b16 %v2077
          %v3165 = vunpack.c.h.b16 %v2077
          %v3166 = vunpack.c.l.b16 %v2078
          %v3167 = vunpack.c.h.b16 %v2078
          %v3168 = vunpack.c.l.b16 %v2079
          %v3169 = vunpack.c.h.b16 %v2079
          %v3170 = vunpack.c.l.b16 %v2080
          %v3171 = vunpack.c.h.b16 %v2080
          %v3172 = vunpack.c.l.b16 %v2081
          %v3173 = vunpack.c.h.b16 %v2081
          %v3174 = vunpack.c.l.b16 %v2082
          %v3175 = vunpack.c.h.b16 %v2082
          %v3176 = vunpack.c.l.b16 %v2083
          %v3177 = vunpack.c.h.b16 %v2083
          %v3178 = vunpack.c.l.b16 %v2084
          %v3179 = vunpack.c.h.b16 %v2084
          %v3180 = vunpack.c.l.b16 %v2085
          %v3181 = vunpack.c.h.b16 %v2085
          %v3182 = vunpack.c.l.b16 %v2086
          %v3183 = vunpack.c.h.b16 %v2086
          %v3184 = vunpack.c.l.b16 %v2087
          %v3185 = vunpack.c.h.b16 %v2087
          %v3186 = vunpack.c.l.b16 %v2088
          %v3187 = vunpack.c.h.b16 %v2088
          %v3188 = vunpack.c.l.b16 %v2089
          %v3189 = vunpack.c.h.b16 %v2089
          %v3190 = vunpack.c.l.b16 %v2090
          %v3191 = vunpack.c.h.b16 %v2090
          %v3192 = vunpack.c.l.b16 %v2091
          %v3193 = vunpack.c.h.b16 %v2091
          %v3194 = vunpack.c.l.b16 %v2092
          %v3195 = vunpack.c.h.b16 %v2092
          %v3196 = vunpack.c.l.b16 %v2093
          %v3197 = vunpack.c.h.b16 %v2093
          %v3198 = vunpack.c.l.b16 %v2094
          %v3199 = vunpack.c.h.b16 %v2094
          %v3200 = vunpack.c.l.b16 %v2095
          %v3201 = vunpack.c.h.b16 %v2095
          %v3202 = vunpack.c.l.b16 %v2096
          %v3203 = vunpack.c.h.b16 %v2096
          %v3204 = vunpack.c.l.b16 %v2097
          %v3205 = vunpack.c.h.b16 %v2097
          %v3206 = vunpack.c.l.b16 %v2098
          %v3207 = vunpack.c.h.b16 %v2098
          %v3208 = vunpack.c.l.b16 %v2099
          %v3209 = vunpack.c.h.b16 %v2099
          %v3210 = vunpack.c.l.b16 %v2100
          %v3211 = vunpack.c.h.b16 %v2100
          %v3212 = vunpack.c.l.b16 %v2101
          %v3213 = vunpack.c.h.b16 %v2101
          %v3214 = vunpack.c.l.b16 %v2102
          %v3215 = vunpack.c.h.b16 %v2102
          %v3216 = vunpack.c.l.b16 %v2103
          %v3217 = vunpack.c.h.b16 %v2103
          %v3218 = vunpack.c.l.b16 %v2104
          %v3219 = vunpack.c.h.b16 %v2104
          %v3220 = vunpack.c.l.b16 %v2105
          %v3221 = vunpack.c.h.b16 %v2105
          %v3222 = vunpack.c.l.b16 %v2106
          %v3223 = vunpack.c.h.b16 %v2106
          %v3224 = vunpack.c.l.b16 %v2107
          %v3225 = vunpack.c.h.b16 %v2107
          %v3226 = vunpack.c.l.b16 %v2108
          %v3227 = vunpack.c.h.b16 %v2108
          %v3228 = vunpack.c.l.b16 %v2109
          %v3229 = vunpack.c.h.b16 %v2109
          %v3230 = vunpack.c.l.b16 %v2110
          %v3231 = vunpack.c.h.b16 %v2110
          %v3232 = vunpack.c.l.b16 %v2111
          %v3233 = vunpack.c.h.b16 %v2111
          %v3234 = vunpack.c.l.b16 %v2112
          %v3235 = vunpack.c.h.b16 %v2112
          %v3236 = vunpack.c.l.b16 %v2113
          %v3237 = vunpack.c.h.b16 %v2113
          %v3238 = vunpack.c.l.b16 %v2114
          %v3239 = vunpack.c.h.b16 %v2114
          %v3240 = vunpack.c.l.b16 %v2115
          %v3241 = vunpack.c.h.b16 %v2115
          %v3242 = vunpack.c.l.b16 %v2116
          %v3243 = vunpack.c.h.b16 %v2116
          %v3244 = vunpack.c.l.b16 %v2117
          %v3245 = vunpack.c.h.b16 %v2117
          %v3246 = vunpack.c.l.b16 %v2118
          %v3247 = vunpack.c.h.b16 %v2118
          %v3248 = vunpack.c.l.b16 %v2119
          %v3249 = vunpack.c.h.b16 %v2119
          %v3250 = vunpack.c.l.b16 %v2120
          %v3251 = vunpack.c.h.b16 %v2120
          %v3252 = vunpack.c.l.b16 %v2121
          %v3253 = vunpack.c.h.b16 %v2121
          %v3254 = vunpack.c.l.b16 %v2122
          %v3255 = vunpack.c.h.b16 %v2122
          %v3256 = vunpack.c.l.b16 %v2123
          %v3257 = vunpack.c.h.b16 %v2123
          %v3258 = vunpack.c.l.b16 %v2124
          %v3259 = vunpack.c.h.b16 %v2124
          %v3260 = vunpack.c.l.b16 %v2125
          %v3261 = vunpack.c.h.b16 %v2125
          %v3262 = vunpack.c.l.b16 %v2126
          %v3263 = vunpack.c.h.b16 %v2126
          %v3264 = vunpack.c.l.b16 %v2127
          %v3265 = vunpack.c.h.b16 %v2127
          %v3266 = vunpack.c.l.b16 %v2128
          %v3267 = vunpack.c.h.b16 %v2128
          %v3268 = vunpack.c.l.b16 %v2129
          %v3269 = vunpack.c.h.b16 %v2129
          %v3270 = vunpack.c.l.b16 %v2130
          %v3271 = vunpack.c.h.b16 %v2130
          %v3272 = vunpack.c.l.b16 %v2131
          %v3273 = vunpack.c.h.b16 %v2131
          %v3274 = vunpack.c.l.b16 %v2132
          %v3275 = vunpack.c.h.b16 %v2132
          %v3276 = vunpack.c.l.b16 %v2133
          %v3277 = vunpack.c.h.b16 %v2133
          %v3278 = vunpack.c.l.b16 %v2134
          %v3279 = vunpack.c.h.b16 %v2134
          %v3280 = vunpack.c.l.b16 %v2135
          %v3281 = vunpack.c.h.b16 %v2135
          %v3282 = vunpack.c.l.b16 %v2136
          %v3283 = vunpack.c.h.b16 %v2136
          %v3284 = vunpack.c.l.b16 %v2137
          %v3285 = vunpack.c.h.b16 %v2137
          %v3286 = vunpack.c.l.b16 %v2138
          %v3287 = vunpack.c.h.b16 %v2138
          %v3288 = vunpack.c.l.b16 %v2139
          %v3289 = vunpack.c.h.b16 %v2139
          %v3290 = vunpack.c.l.b16 %v2140
          %v3291 = vunpack.c.h.b16 %v2140
          %v3292 = vunpack.c.l.b16 %v2141
          %v3293 = vunpack.c.h.b16 %v2141
          %v3294 = vunpack.c.l.b16 %v2142
          %v3295 = vunpack.c.h.b16 %v2142
          %v3296 = vunpack.c.l.b16 %v2143
          %v3297 = vunpack.c.h.b16 %v2143
          %v3298 = vunpack.c.l.b16 %v2144
          %v3299 = vunpack.c.h.b16 %v2144
          %v3300 = vunpack.c.l.b16 %v2145
          %v3301 = vunpack.c.h.b16 %v2145
          %v3302 = vunpack.c.l.b16 %v2146
          %v3303 = vunpack.c.h.b16 %v2146
          %v3304 = vunpack.c.l.b16 %v2147
          %v3305 = vunpack.c.h.b16 %v2147
          %v3306 = vunpack.c.l.b16 %v2148
          %v3307 = vunpack.c.h.b16 %v2148
          %v3308 = vunpack.c.l.b16 %v2149
          %v3309 = vunpack.c.h.b16 %v2149
          %v3310 = vunpack.c.l.b16 %v2150
          %v3311 = vunpack.c.h.b16 %v2150
          %v3312 = vunpack.c.l.b16 %v2151
          %v3313 = vunpack.c.h.b16 %v2151
          %v3314 = vunpack.c.l.b16 %v2152
          %v3315 = vunpack.c.h.b16 %v2152
          %v3316 = vunpack.c.l.b16 %v2153
          %v3317 = vunpack.c.h.b16 %v2153
          %v3318 = vunpack.c.l.b16 %v2154
          %v3319 = vunpack.c.h.b16 %v2154
          %v3320 = vunpack.c.l.b16 %v2155
          %v3321 = vunpack.c.h.b16 %v2155
          %v3322 = vunpack.c.l.b16 %v2156
          %v3323 = vunpack.c.h.b16 %v2156
          %v3324 = vunpack.c.l.b16 %v2157
          %v3325 = vunpack.c.h.b16 %v2157
          %v3326 = vunpack.c.l.b16 %v2158
          %v3327 = vunpack.c.h.b16 %v2158
          %v3328 = vunpack.c.l.b16 %v2159
          %v3329 = vunpack.c.h.b16 %v2159
          %v3330 = vunpack.c.l.b16 %v2160
          %v3331 = vunpack.c.h.b16 %v2160
          %v3332 = vunpack.c.l.b16 %v2161
          %v3333 = vunpack.c.h.b16 %v2161
          %v3334 = vunpack.c.l.b16 %v2162
          %v3335 = vunpack.c.h.b16 %v2162
          %v3336 = vunpack.c.l.b16 %v2163
          %v3337 = vunpack.c.h.b16 %v2163
          %v3338 = vunpack.c.l.b16 %v2164
          %v3339 = vunpack.c.h.b16 %v2164
          %v3340 = vunpack.c.l.b16 %v2165
          %v3341 = vunpack.c.h.b16 %v2165
          %v3342 = vunpack.c.l.b16 %v2166
          %v3343 = vunpack.c.h.b16 %v2166
          %v3344 = vunpack.c.l.b16 %v2167
          %v3345 = vunpack.c.h.b16 %v2167
          %v3346 = vunpack.c.l.b16 %v2168
          %v3347 = vunpack.c.h.b16 %v2168
          %v3348 = vunpack.c.l.b16 %v2169
          %v3349 = vunpack.c.h.b16 %v2169
          %v3350 = vunpack.c.l.b16 %v2170
          %v3351 = vunpack.c.h.b16 %v2170
          %v3352 = vunpack.c.l.b16 %v2171
          %v3353 = vunpack.c.h.b16 %v2171
          %v3354 = vunpack.c.l.b16 %v2172
          %v3355 = vunpack.c.h.b16 %v2172
          %v3356 = vunpack.c.l.b16 %v2173
          %v3357 = vunpack.c.h.b16 %v2173
          %v3358 = vunpack.c.l.b16 %v2174
          %v3359 = vunpack.c.h.b16 %v2174
          %v3360 = vunpack.c.l.b16 %v2175
          %v3361 = vunpack.c.h.b16 %v2175
          %v3362 = vunpack.c.l.b16 %v2176
          %v3363 = vunpack.c.h.b16 %v2176
          %v3364 = vunpack.c.l.b16 %v2177
          %v3365 = vunpack.c.h.b16 %v2177
          %v3366 = vunpack.c.l.b16 %v2178
          %v3367 = vunpack.c.h.b16 %v2178
          %v3368 = vunpack.c.l.b16 %v2179
          %v3369 = vunpack.c.h.b16 %v2179
          %v3370 = vunpack.c.l.b16 %v2180
          %v3371 = vunpack.c.h.b16 %v2180
          %v3372 = vunpack.c.l.b16 %v2181
          %v3373 = vunpack.c.h.b16 %v2181
          %v3374 = vunpack.c.l.b16 %v2182
          %v3375 = vunpack.c.h.b16 %v2182
          %v3376 = vunpack.c.l.b16 %v2183
          %v3377 = vunpack.c.h.b16 %v2183
          %v3378 = vunpack.c.l.b16 %v2184
          %v3379 = vunpack.c.h.b16 %v2184
          %v3380 = vunpack.c.l.b16 %v2185
          %v3381 = vunpack.c.h.b16 %v2185
          %v3382 = vunpack.c.l.b16 %v2186
          %v3383 = vunpack.c.h.b16 %v2186
          %v3384 = vunpack.c.l.b16 %v2187
          %v3385 = vunpack.c.h.b16 %v2187
          %v3386 = vunpack.c.l.b16 %v2188
          %v3387 = vunpack.c.h.b16 %v2188
          %v3388 = vunpack.c.l.b16 %v2189
          %v3389 = vunpack.c.h.b16 %v2189
          %v3390 = vunpack.c.l.b16 %v2190
          %v3391 = vunpack.c.h.b16 %v2190
          %v3392 = vunpack.c.l.b16 %v2191
          %v3393 = vunpack.c.h.b16 %v2191
          %v3394 = vunpack.c.l.b16 %v2192
          %v3395 = vunpack.c.h.b16 %v2192
          %v3396 = vunpack.c.l.b16 %v2193
          %v3397 = vunpack.c.h.b16 %v2193
          %v3398 = vunpack.c.l.b16 %v2194
          %v3399 = vunpack.c.h.b16 %v2194
          %v3400 = vunpack.c.l.b16 %v2195
          %v3401 = vunpack.c.h.b16 %v2195
          %v3402 = vunpack.c.l.b16 %v2196
          %v3403 = vunpack.c.h.b16 %v2196
          %v3404 = vunpack.c.l.b16 %v2197
          %v3405 = vunpack.c.h.b16 %v2197
          %v3406 = vunpack.c.l.b16 %v2198
          %v3407 = vunpack.c.h.b16 %v2198
          %v3408 = vunpack.c.l.b16 %v2199
          %v3409 = vunpack.c.h.b16 %v2199
          %v3410 = vunpack.c.l.b16 %v2200
          %v3411 = vunpack.c.h.b16 %v2200
          %v3412 = vunpack.c.l.b16 %v2201
          %v3413 = vunpack.c.h.b16 %v2201
          %v3414 = vunpack.c.l.b16 %v2202
          %v3415 = vunpack.c.h.b16 %v2202
          %v3416 = vunpack.c.l.b16 %v2203
          %v3417 = vunpack.c.h.b16 %v2203
          %v3418 = vunpack.c.l.b16 %v2204
          %v3419 = vunpack.c.h.b16 %v2204
          %v3420 = vunpack.c.l.b16 %v2205
          %v3421 = vunpack.c.h.b16 %v2205
          %v3422 = vunpack.c.l.b16 %v2206
          %v3423 = vunpack.c.h.b16 %v2206
          %v3424 = vunpack.c.l.b16 %v2207
          %v3425 = vunpack.c.h.b16 %v2207
          %v3426 = vunpack.c.l.b16 %v2208
          %v3427 = vunpack.c.h.b16 %v2208
          %v3428 = vunpack.c.l.b16 %v2209
          %v3429 = vunpack.c.h.b16 %v2209
          %v3430 = vunpack.c.l.b16 %v2210
          %v3431 = vunpack.c.h.b16 %v2210
          %v3432 = vunpack.c.l.b16 %v2211
          %v3433 = vunpack.c.h.b16 %v2211
          %v3434 = vunpack.c.l.b16 %v2212
          %v3435 = vunpack.c.h.b16 %v2212
          %v3436 = vunpack.c.l.b16 %v2213
          %v3437 = vunpack.c.h.b16 %v2213
          %v3438 = vunpack.c.l.b16 %v2214
          %v3439 = vunpack.c.h.b16 %v2214
          %v3440 = vunpack.c.l.b16 %v2215
          %v3441 = vunpack.c.h.b16 %v2215
          %v3442 = vunpack.c.l.b16 %v2216
          %v3443 = vunpack.c.h.b16 %v2216
          %v3444 = vunpack.c.l.b16 %v2217
          %v3445 = vunpack.c.h.b16 %v2217
          %v3446 = vunpack.c.l.b16 %v2218
          %v3447 = vunpack.c.h.b16 %v2218
          %v3448 = vunpack.c.l.b16 %v2219
          %v3449 = vunpack.c.h.b16 %v2219
          %v3450 = vunpack.c.l.b16 %v2220
          %v3451 = vunpack.c.h.b16 %v2220
          %v3452 = vunpack.c.l.b16 %v2221
          %v3453 = vunpack.c.h.b16 %v2221
          %v3454 = vunpack.c.l.b16 %v2222
          %v3455 = vunpack.c.h.b16 %v2222
          %v3456 = vunpack.c.l.b16 %v2223
          %v3457 = vunpack.c.h.b16 %v2223
          %v3458 = vunpack.c.l.b16 %v2224
          %v3459 = vunpack.c.h.b16 %v2224
          %v3460 = vunpack.c.l.b16 %v2225
          %v3461 = vunpack.c.h.b16 %v2225
          %v3462 = vunpack.c.l.b16 %v2226
          %v3463 = vunpack.c.h.b16 %v2226
          %v3464 = vunpack.c.l.b16 %v2227
          %v3465 = vunpack.c.h.b16 %v2227
          %v3466 = vunpack.c.l.b16 %v2228
          %v3467 = vunpack.c.h.b16 %v2228
          %v3468 = vunpack.c.l.b16 %v2229
          %v3469 = vunpack.c.h.b16 %v2229
          %v3470 = vunpack.c.l.b16 %v2230
          %v3471 = vunpack.c.h.b16 %v2230
          %v3472 = vunpack.c.l.b16 %v2231
          %v3473 = vunpack.c.h.b16 %v2231
          %v3474 = vunpack.c.l.b16 %v2232
          %v3475 = vunpack.c.h.b16 %v2232
          %v3476 = vunpack.c.l.b16 %v2233
          %v3477 = vunpack.c.h.b16 %v2233
          %v3478 = vunpack.c.l.b16 %v2234
          %v3479 = vunpack.c.h.b16 %v2234
          %v3480 = vunpack.c.l.b16 %v2235
          %v3481 = vunpack.c.h.b16 %v2235
          %v3482 = vunpack.c.l.b16 %v2236
          %v3483 = vunpack.c.h.b16 %v2236
          %v3484 = vunpack.c.l.b16 %v2237
          %v3485 = vunpack.c.h.b16 %v2237
          %v3486 = vunpack.c.l.b16 %v2238
          %v3487 = vunpack.c.h.b16 %v2238
          %v3488 = vunpack.c.l.b16 %v2239
          %v3489 = vunpack.c.h.b16 %v2239
          %v3490 = vunpack.c.l.b16 %v2240
          %v3491 = vunpack.c.h.b16 %v2240
          %v3492 = vunpack.c.l.b16 %v2241
          %v3493 = vunpack.c.h.b16 %v2241
          %v3494 = vunpack.c.l.b16 %v2242
          %v3495 = vunpack.c.h.b16 %v2242
          %v3496 = vunpack.c.l.b16 %v2243
          %v3497 = vunpack.c.h.b16 %v2243
          %v3498 = vunpack.c.l.b16 %v2244
          %v3499 = vunpack.c.h.b16 %v2244
          %v3500 = vunpack.c.l.b16 %v2245
          %v3501 = vunpack.c.h.b16 %v2245
          %v3502 = vunpack.c.l.b16 %v2246
          %v3503 = vunpack.c.h.b16 %v2246
          %v3504 = vunpack.c.l.b16 %v2247
          %v3505 = vunpack.c.h.b16 %v2247
          %v3506 = vunpack.c.l.b16 %v2248
          %v3507 = vunpack.c.h.b16 %v2248
          %v3508 = vunpack.c.l.b16 %v2249
          %v3509 = vunpack.c.h.b16 %v2249
          %v3510 = vunpack.c.l.b16 %v2250
          %v3511 = vunpack.c.h.b16 %v2250
          %v3512 = vunpack.c.l.b16 %v2251
          %v3513 = vunpack.c.h.b16 %v2251
          %v3514 = vunpack.c.l.b16 %v2252
          %v3515 = vunpack.c.h.b16 %v2252
          %v3516 = vunpack.c.l.b16 %v2253
          %v3517 = vunpack.c.h.b16 %v2253
          %v3518 = vunpack.c.l.b16 %v2254
          %v3519 = vunpack.c.h.b16 %v2254
          %v3520 = vunpack.c.l.b16 %v2255
          %v3521 = vunpack.c.h.b16 %v2255
          %v3522 = vunpack.c.l.b16 %v2256
          %v3523 = vunpack.c.h.b16 %v2256
          %v3524 = vunpack.c.l.b16 %v2257
          %v3525 = vunpack.c.h.b16 %v2257
          %v3526 = vunpack.c.l.b16 %v2258
          %v3527 = vunpack.c.h.b16 %v2258
          %v3528 = vunpack.c.l.b16 %v2259
          %v3529 = vunpack.c.h.b16 %v2259
          %v3530 = vunpack.c.l.b16 %v2260
          %v3531 = vunpack.c.h.b16 %v2260
          %v3532 = vunpack.c.l.b16 %v2261
          %v3533 = vunpack.c.h.b16 %v2261
          %v3534 = vunpack.c.l.b16 %v2262
          %v3535 = vunpack.c.h.b16 %v2262
          %v3536 = vunpack.c.l.b16 %v2263
          %v3537 = vunpack.c.h.b16 %v2263
          %v3538 = vunpack.c.l.b16 %v2264
          %v3539 = vunpack.c.h.b16 %v2264
          %v3540 = vunpack.c.l.b16 %v2265
          %v3541 = vunpack.c.h.b16 %v2265
          %v3542 = vunpack.c.l.b16 %v2266
          %v3543 = vunpack.c.h.b16 %v2266
          %v3544 = vunpack.c.l.b16 %v2267
          %v3545 = vunpack.c.h.b16 %v2267
          %v3546 = vunpack.c.l.b16 %v2268
          %v3547 = vunpack.c.h.b16 %v2268
          %v3548 = vunpack.c.l.b16 %v2269
          %v3549 = vunpack.c.h.b16 %v2269
          %v3550 = vunpack.c.l.b16 %v2270
          %v3551 = vunpack.c.h.b16 %v2270
          %v3552 = vunpack.c.l.b16 %v2271
          %v3553 = vunpack.c.h.b16 %v2271
          %v3554 = vunpack.c.l.b16 %v2272
          %v3555 = vunpack.c.h.b16 %v2272
          %v3556 = vunpack.c.l.b16 %v2273
          %v3557 = vunpack.c.h.b16 %v2273
          %v3558 = vunpack.c.l.b16 %v2274
          %v3559 = vunpack.c.h.b16 %v2274
          %v3560 = vunpack.c.l.b16 %v2275
          %v3561 = vunpack.c.h.b16 %v2275
          %v3562 = vunpack.c.l.b16 %v2276
          %v3563 = vunpack.c.h.b16 %v2276
          %v3564 = vunpack.c.l.b16 %v2277
          %v3565 = vunpack.c.h.b16 %v2277
          %v3566 = vunpack.c.l.b16 %v2278
          %v3567 = vunpack.c.h.b16 %v2278
          %v3568 = vunpack.c.l.b16 %v2279
          %v3569 = vunpack.c.h.b16 %v2279
          %v3570 = vunpack.c.l.b16 %v2280
          %v3571 = vunpack.c.h.b16 %v2280
          %v3572 = vunpack.c.l.b16 %v2281
          %v3573 = vunpack.c.h.b16 %v2281
          %v3574 = vunpack.c.l.b16 %v2282
          %v3575 = vunpack.c.h.b16 %v2282
          %v3576 = vunpack.c.l.b16 %v2283
          %v3577 = vunpack.c.h.b16 %v2283
          %v3578 = vunpack.c.l.b16 %v2284
          %v3579 = vunpack.c.h.b16 %v2284
          %v3580 = vunpack.c.l.b16 %v2285
          %v3581 = vunpack.c.h.b16 %v2285
          %v3582 = vunpack.c.l.b16 %v2286
          %v3583 = vunpack.c.h.b16 %v2286
          %v3584 = vunpack.c.l.b16 %v2287
          %v3585 = vunpack.c.h.b16 %v2287
          %v3586 = vunpack.c.l.b16 %v2288
          %v3587 = vunpack.c.h.b16 %v2288
          %v3588 = vunpack.c.l.b16 %v2289
          %v3589 = vunpack.c.h.b16 %v2289
          %v3590 = vunpack.c.l.b16 %v2290
          %v3591 = vunpack.c.h.b16 %v2290
          %v3592 = vunpack.c.l.b16 %v2291
          %v3593 = vunpack.c.h.b16 %v2291
          %v3594 = vunpack.c.l.b16 %v2292
          %v3595 = vunpack.c.h.b16 %v2292
          %v3596 = vunpack.c.l.b16 %v2293
          %v3597 = vunpack.c.h.b16 %v2293
          %v3598 = vunpack.c.l.b16 %v2294
          %v3599 = vunpack.c.h.b16 %v2294
          %v3600 = vunpack.c.l.b16 %v2295
          %v3601 = vunpack.c.h.b16 %v2295
          %v3602 = vunpack.c.l.b16 %v2296
          %v3603 = vunpack.c.h.b16 %v2296
          %v3604 = vunpack.c.l.b16 %v2297
          %v3605 = vunpack.c.h.b16 %v2297
          %v3606 = vunpack.c.l.b16 %v2298
          %v3607 = vunpack.c.h.b16 %v2298
          %v3608 = vunpack.c.l.b16 %v2299
          %v3609 = vunpack.c.h.b16 %v2299
          %v3610 = vunpack.c.l.b16 %v2300
          %v3611 = vunpack.c.h.b16 %v2300
          %v3612 = vunpack.c.l.b16 %v2301
          %v3613 = vunpack.c.h.b16 %v2301
          %v3614 = vunpack.c.l.b16 %v2302
          %v3615 = vunpack.c.h.b16 %v2302
          %v3616 = vunpack.c.l.b16 %v2303
          %v3617 = vunpack.c.h.b16 %v2303
          %v3618 = vunpack.c.l.b16 %v2304
          %v3619 = vunpack.c.h.b16 %v2304
          %v3620 = vunpack.c.l.b16 %v2305
          %v3621 = vunpack.c.h.b16 %v2305
          %v3622 = vunpack.c.l.b16 %v2306
          %v3623 = vunpack.c.h.b16 %v2306
          %v3624 = vunpack.c.l.b16 %v2307
          %v3625 = vunpack.c.h.b16 %v2307
          %v3626 = vunpack.c.l.b16 %v2308
          %v3627 = vunpack.c.h.b16 %v2308
          %v3628 = vunpack.c.l.b16 %v2309
          %v3629 = vunpack.c.h.b16 %v2309
          %v3630 = vunpack.c.l.b16 %v2310
          %v3631 = vunpack.c.h.b16 %v2310
          %v3632 = vunpack.c.l.b16 %v2311
          %v3633 = vunpack.c.h.b16 %v2311
          %v3634 = vunpack.c.l.b16 %v2312
          %v3635 = vunpack.c.h.b16 %v2312
          %v3636 = vunpack.c.l.b16 %v2313
          %v3637 = vunpack.c.h.b16 %v2313
          %v3638 = vunpack.c.l.b16 %v2314
          %v3639 = vunpack.c.h.b16 %v2314
          %v3640 = vunpack.c.l.b16 %v2315
          %v3641 = vunpack.c.h.b16 %v2315
          %v3642 = vunpack.c.l.b16 %v2316
          %v3643 = vunpack.c.h.b16 %v2316
          %v3644 = vunpack.c.l.b16 %v2317
          %v3645 = vunpack.c.h.b16 %v2317
          %v3646 = vunpack.c.l.b16 %v2318
          %v3647 = vunpack.c.h.b16 %v2318
          %v3648 = vunpack.c.l.b16 %v2319
          %v3649 = vunpack.c.h.b16 %v2319
          %v3650 = vunpack.c.l.b16 %v2320
          %v3651 = vunpack.c.h.b16 %v2320
          %v3652 = vunpack.c.l.b16 %v2321
          %v3653 = vunpack.c.h.b16 %v2321
          %v3654 = vunpack.c.l.b16 %v2322
          %v3655 = vunpack.c.h.b16 %v2322
          %v3656 = vunpack.c.l.b16 %v2323
          %v3657 = vunpack.c.h.b16 %v2323
          %v3658 = vunpack.c.l.b16 %v2324
          %v3659 = vunpack.c.h.b16 %v2324
          %v3660 = vunpack.c.l.b16 %v2325
          %v3661 = vunpack.c.h.b16 %v2325
          %v3662 = vunpack.c.l.b16 %v2326
          %v3663 = vunpack.c.h.b16 %v2326
          %v3664 = vunpack.c.l.b16 %v2327
          %v3665 = vunpack.c.h.b16 %v2327
          %v3666 = vunpack.c.l.b16 %v2328
          %v3667 = vunpack.c.h.b16 %v2328
          %v3668 = vunpack.c.l.b16 %v2329
          %v3669 = vunpack.c.h.b16 %v2329
          %v3670 = vunpack.c.l.b16 %v2330
          %v3671 = vunpack.c.h.b16 %v2330
          %v3672 = vunpack.c.l.b16 %v2331
          %v3673 = vunpack.c.h.b16 %v2331
          %v3674 = vunpack.c.l.b16 %v2332
          %v3675 = vunpack.c.h.b16 %v2332
          %v3676 = vunpack.c.l.b16 %v2333
          %v3677 = vunpack.c.h.b16 %v2333
          %v3678 = vunpack.c.l.b16 %v2334
          %v3679 = vunpack.c.h.b16 %v2334
          %v3680 = vunpack.c.l.b16 %v2335
          %v3681 = vunpack.c.h.b16 %v2335
          %v3682 = vunpack.c.l.b16 %v2336
          %v3683 = vunpack.c.h.b16 %v2336
          %v3684 = vunpack.c.l.b16 %v2337
          %v3685 = vunpack.c.h.b16 %v2337
          %v3686 = vunpack.c.l.b16 %v2338
          %v3687 = vunpack.c.h.b16 %v2338
          %v3688 = vunpack.c.l.b16 %v2339
          %v3689 = vunpack.c.h.b16 %v2339
          %v3690 = vunpack.c.l.b16 %v2340
          %v3691 = vunpack.c.h.b16 %v2340
          %v3692 = vunpack.c.l.b16 %v2341
          %v3693 = vunpack.c.h.b16 %v2341
          %v3694 = vunpack.c.l.b16 %v2342
          %v3695 = vunpack.c.h.b16 %v2342
          %v3696 = vunpack.c.l.b16 %v2343
          %v3697 = vunpack.c.h.b16 %v2343
          %v3698 = vunpack.c.l.b16 %v2344
          %v3699 = vunpack.c.h.b16 %v2344
          %v3700 = vunpack.c.l.b16 %v2345
          %v3701 = vunpack.c.h.b16 %v2345
          %v3702 = vunpack.c.l.b16 %v2346
          %v3703 = vunpack.c.h.b16 %v2346
          %v3704 = vunpack.c.l.b16 %v2347
          %v3705 = vunpack.c.h.b16 %v2347
          %v3706 = vunpack.c.l.b16 %v2348
          %v3707 = vunpack.c.h.b16 %v2348
          %v3708 = vunpack.c.l.b16 %v2349
          %v3709 = vunpack.c.h.b16 %v2349
          %v3710 = vunpack.c.l.b16 %v2350
          %v3711 = vunpack.c.h.b16 %v2350
          %v3712 = vunpack.c.l.b16 %v2351
          %v3713 = vunpack.c.h.b16 %v2351
          %v3714 = vunpack.c.l.b16 %v2352
          %v3715 = vunpack.c.h.b16 %v2352
          %v3716 = vunpack.c.l.b16 %v2353
          %v3717 = vunpack.c.h.b16 %v2353
          %v3718 = vunpack.c.l.b16 %v2354
          %v3719 = vunpack.c.h.b16 %v2354
          %v3720 = vunpack.c.l.b16 %v2355
          %v3721 = vunpack.c.h.b16 %v2355
          %v3722 = vunpack.c.l.b16 %v2356
          %v3723 = vunpack.c.h.b16 %v2356
          %v3724 = vunpack.c.l.b16 %v2357
          %v3725 = vunpack.c.h.b16 %v2357
          %v3726 = vunpack.c.l.b16 %v2358
          %v3727 = vunpack.c.h.b16 %v2358
          %v3728 = vunpack.c.l.b16 %v2359
          %v3729 = vunpack.c.h.b16 %v2359
          %v3730 = vunpack.c.l.b16 %v2360
          %v3731 = vunpack.c.h.b16 %v2360
          %v3732 = vunpack.c.l.b16 %v2361
          %v3733 = vunpack.c.h.b16 %v2361
          %v3734 = vunpack.c.l.b16 %v2362
          %v3735 = vunpack.c.h.b16 %v2362
          %v3736 = vunpack.c.l.b16 %v2363
          %v3737 = vunpack.c.h.b16 %v2363
          %v3738 = vunpack.c.l.b16 %v2364
          %v3739 = vunpack.c.h.b16 %v2364
          %v3740 = vunpack.c.l.b16 %v2365
          %v3741 = vunpack.c.h.b16 %v2365
          %v3742 = vunpack.c.l.b16 %v2366
          %v3743 = vunpack.c.h.b16 %v2366
          %v3744 = vunpack.c.l.b16 %v2367
          %v3745 = vunpack.c.h.b16 %v2367
          %v3746 = vunpack.c.l.b16 %v2368
          %v3747 = vunpack.c.h.b16 %v2368
          %v3748 = vunpack.c.l.b16 %v2369
          %v3749 = vunpack.c.h.b16 %v2369
          %v3750 = vunpack.c.l.b16 %v2370
          %v3751 = vunpack.c.h.b16 %v2370
          %v3752 = vunpack.c.l.b16 %v2371
          %v3753 = vunpack.c.h.b16 %v2371
          %v3754 = vunpack.c.l.b16 %v2372
          %v3755 = vunpack.c.h.b16 %v2372
          %v3756 = vunpack.c.l.b16 %v2373
          %v3757 = vunpack.c.h.b16 %v2373
          %v3758 = vunpack.c.l.b16 %v2374
          %v3759 = vunpack.c.h.b16 %v2374
          %v3760 = vunpack.c.l.b16 %v2375
          %v3761 = vunpack.c.h.b16 %v2375
          %v3762 = vunpack.c.l.b16 %v2376
          %v3763 = vunpack.c.h.b16 %v2376
          %v3764 = vunpack.c.l.b16 %v2377
          %v3765 = vunpack.c.h.b16 %v2377
          %v3766 = vunpack.c.l.b16 %v2378
          %v3767 = vunpack.c.h.b16 %v2378
          %v3768 = vunpack.c.l.b16 %v2379
          %v3769 = vunpack.c.h.b16 %v2379
          %v3770 = vunpack.c.l.b16 %v2380
          %v3771 = vunpack.c.h.b16 %v2380
          %v3772 = vunpack.c.l.b16 %v2381
          %v3773 = vunpack.c.h.b16 %v2381
          %v3774 = vunpack.c.l.b16 %v2382
          %v3775 = vunpack.c.h.b16 %v2382
          %v3776 = vunpack.c.l.b16 %v2383
          %v3777 = vunpack.c.h.b16 %v2383
          %v3778 = vunpack.c.l.b16 %v2384
          %v3779 = vunpack.c.h.b16 %v2384
          %v3780 = vunpack.c.l.b16 %v2385
          %v3781 = vunpack.c.h.b16 %v2385
          %v3782 = vunpack.c.l.b16 %v2386
          %v3783 = vunpack.c.h.b16 %v2386
          %v3784 = vunpack.c.l.b16 %v2387
          %v3785 = vunpack.c.h.b16 %v2387
          %v3786 = vunpack.c.l.b16 %v2388
          %v3787 = vunpack.c.h.b16 %v2388
          %v3788 = vunpack.c.l.b16 %v2389
          %v3789 = vunpack.c.h.b16 %v2389
          %v3790 = vunpack.c.l.b16 %v2390
          %v3791 = vunpack.c.h.b16 %v2390
          %v3792 = vunpack.c.l.b16 %v2391
          %v3793 = vunpack.c.h.b16 %v2391
          %v3794 = vunpack.c.l.b16 %v2392
          %v3795 = vunpack.c.h.b16 %v2392
          %v3796 = vunpack.c.l.b16 %v2393
          %v3797 = vunpack.c.h.b16 %v2393
          %v3798 = vunpack.c.l.b16 %v2394
          %v3799 = vunpack.c.h.b16 %v2394
          %v3800 = vunpack.c.l.b16 %v2395
          %v3801 = vunpack.c.h.b16 %v2395
          %v3802 = vunpack.c.l.b16 %v2396
          %v3803 = vunpack.c.h.b16 %v2396
          %v3804 = vunpack.c.l.b16 %v2397
          %v3805 = vunpack.c.h.b16 %v2397
          %v3806 = vunpack.c.l.b16 %v2398
          %v3807 = vunpack.c.h.b16 %v2398
          %v3808 = vunpack.c.l.b16 %v2399
          %v3809 = vunpack.c.h.b16 %v2399
          %v3810 = vunpack.c.l.b16 %v2400
          %v3811 = vunpack.c.h.b16 %v2400
          %v3812 = vunpack.c.l.b16 %v2401
          %v3813 = vunpack.c.h.b16 %v2401
          %v3814 = vunpack.c.l.b16 %v2402
          %v3815 = vunpack.c.h.b16 %v2402
          %v3816 = vunpack.c.l.b16 %v2403
          %v3817 = vunpack.c.h.b16 %v2403
          %v3818 = vunpack.c.l.b16 %v2404
          %v3819 = vunpack.c.h.b16 %v2404
          %v3820 = vunpack.c.l.b16 %v2405
          %v3821 = vunpack.c.h.b16 %v2405
          %v3822 = vunpack.c.l.b16 %v2406
          %v3823 = vunpack.c.h.b16 %v2406
          %v3824 = vunpack.c.l.b16 %v2407
          %v3825 = vunpack.c.h.b16 %v2407
          %v3826 = vunpack.c.l.b16 %v2408
          %v3827 = vunpack.c.h.b16 %v2408
          %v3828 = vunpack.c.l.b16 %v2409
          %v3829 = vunpack.c.h.b16 %v2409
          %v3830 = vunpack.c.l.b16 %v2410
          %v3831 = vunpack.c.h.b16 %v2410
          %v3832 = vunpack.c.l.b16 %v2411
          %v3833 = vunpack.c.h.b16 %v2411
          %v3834 = vunpack.c.l.b16 %v2412
          %v3835 = vunpack.c.h.b16 %v2412
          %v3836 = vunpack.c.l.b16 %v2413
          %v3837 = vunpack.c.h.b16 %v2413
          %v3838 = vunpack.c.l.b16 %v2414
          %v3839 = vunpack.c.h.b16 %v2414
          %v3840 = vunpack.c.l.b16 %v2415
          %v3841 = vunpack.c.h.b16 %v2415
          %v3842 = vunpack.c.l.b16 %v2416
          %v3843 = vunpack.c.h.b16 %v2416
          %v3844 = vunpack.c.l.b16 %v2417
          %v3845 = vunpack.c.h.b16 %v2417
          %v3846 = vunpack.c.l.b16 %v2418
          %v3847 = vunpack.c.h.b16 %v2418
          %v3848 = vunpack.c.l.b16 %v2419
          %v3849 = vunpack.c.h.b16 %v2419
          %v3850 = vunpack.c.l.b16 %v2420
          %v3851 = vunpack.c.h.b16 %v2420
          %v3852 = vunpack.c.l.b16 %v2421
          %v3853 = vunpack.c.h.b16 %v2421
          %v3854 = vunpack.c.l.b16 %v2422
          %v3855 = vunpack.c.h.b16 %v2422
          %v3856 = vunpack.c.l.b16 %v2423
          %v3857 = vunpack.c.h.b16 %v2423
          %v3858 = vunpack.c.l.b16 %v2424
          %v3859 = vunpack.c.h.b16 %v2424
          %v3860 = vunpack.c.l.b16 %v2425
          %v3861 = vunpack.c.h.b16 %v2425
          %v3862 = vunpack.c.l.b16 %v2426
          %v3863 = vunpack.c.h.b16 %v2426
          %v3864 = vunpack.c.l.b16 %v2427
          %v3865 = vunpack.c.h.b16 %v2427
          %v3866 = vunpack.c.l.b16 %v2428
          %v3867 = vunpack.c.h.b16 %v2428
          %v3868 = vunpack.c.l.b16 %v2429
          %v3869 = vunpack.c.h.b16 %v2429
          %v3870 = vunpack.c.l.b16 %v2430
          %v3871 = vunpack.c.h.b16 %v2430
          %v3872 = vunpack.c.l.b16 %v2431
          %v3873 = vunpack.c.h.b16 %v2431
          %v3874 = vunpack.c.l.b16 %v2432
          %v3875 = vunpack.c.h.b16 %v2432
          %v3876 = vunpack.c.l.b16 %v2433
          %v3877 = vunpack.c.h.b16 %v2433
          %v3878 = vunpack.c.l.b16 %v2434
          %v3879 = vunpack.c.h.b16 %v2434
          %v3880 = vunpack.c.l.b16 %v2435
          %v3881 = vunpack.c.h.b16 %v2435
          %v3882 = vunpack.c.l.b16 %v2436
          %v3883 = vunpack.c.h.b16 %v2436
          %v3884 = vunpack.c.l.b16 %v2437
          %v3885 = vunpack.c.h.b16 %v2437
          %v3886 = vunpack.c.l.b16 %v2438
          %v3887 = vunpack.c.h.b16 %v2438
          %v3888 = vunpack.c.l.b16 %v2439
          %v3889 = vunpack.c.h.b16 %v2439
          %v3890 = vunpack.c.l.b16 %v2440
          %v3891 = vunpack.c.h.b16 %v2440
          %v3892 = vunpack.c.l.b16 %v2441
          %v3893 = vunpack.c.h.b16 %v2441
          %v3894 = vunpack.c.l.b16 %v2442
          %v3895 = vunpack.c.h.b16 %v2442
          %v3896 = vunpack.c.l.b16 %v2443
          %v3897 = vunpack.c.h.b16 %v2443
          %v3898 = vunpack.c.l.b16 %v2444
          %v3899 = vunpack.c.h.b16 %v2444
          %v3900 = vunpack.c.l.b16 %v2445
          %v3901 = vunpack.c.h.b16 %v2445
          %v3902 = vunpack.c.l.b16 %v2446
          %v3903 = vunpack.c.h.b16 %v2446
          %v3904 = vunpack.c.l.b16 %v2447
          %v3905 = vunpack.c.h.b16 %v2447
          %v3906 = vunpack.c.l.b16 %v2448
          %v3907 = vunpack.c.h.b16 %v2448
          %v3908 = vunpack.c.l.b16 %v2449
          %v3909 = vunpack.c.h.b16 %v2449
          %v3910 = vunpack.c.l.b16 %v2450
          %v3911 = vunpack.c.h.b16 %v2450
          %v3912 = vunpack.c.l.b16 %v2451
          %v3913 = vunpack.c.h.b16 %v2451
          %v3914 = vunpack.c.l.b16 %v2452
          %v3915 = vunpack.c.h.b16 %v2452
          %v3916 = vunpack.c.l.b16 %v2453
          %v3917 = vunpack.c.h.b16 %v2453
          %v3918 = vunpack.c.l.b16 %v2454
          %v3919 = vunpack.c.h.b16 %v2454
          %v3920 = vunpack.c.l.b16 %v2455
          %v3921 = vunpack.c.h.b16 %v2455
          %v3922 = vunpack.c.l.b16 %v2456
          %v3923 = vunpack.c.h.b16 %v2456
          %v3924 = vunpack.c.l.b16 %v2457
          %v3925 = vunpack.c.h.b16 %v2457
          %v3926 = vunpack.c.l.b16 %v2458
          %v3927 = vunpack.c.h.b16 %v2458
          %v3928 = vunpack.c.l.b16 %v2459
          %v3929 = vunpack.c.h.b16 %v2459
          %v3930 = vunpack.c.l.b16 %v2460
          %v3931 = vunpack.c.h.b16 %v2460
          %v3932 = vunpack.c.l.b16 %v2461
          %v3933 = vunpack.c.h.b16 %v2461
          %v3934 = vunpack.c.l.b16 %v2462
          %v3935 = vunpack.c.h.b16 %v2462
          %v3936 = vunpack.c.l.b16 %v2463
          %v3937 = vunpack.c.h.b16 %v2463
          %v3938 = vunpack.c.l.b16 %v2464
          %v3939 = vunpack.c.h.b16 %v2464
          %v3940 = vunpack.c.l.b16 %v2465
          %v3941 = vunpack.c.h.b16 %v2465
          %v3942 = vunpack.c.l.b16 %v2466
          %v3943 = vunpack.c.h.b16 %v2466
          %v3944 = vunpack.c.l.b16 %v2467
          %v3945 = vunpack.c.h.b16 %v2467
          %v3946 = vunpack.c.l.b16 %v2468
          %v3947 = vunpack.c.h.b16 %v2468
          %v3948 = vunpack.c.l.b16 %v2469
          %v3949 = vunpack.c.h.b16 %v2469
          %v3950 = vunpack.c.l.b16 %v2470
          %v3951 = vunpack.c.h.b16 %v2470
          %v3952 = vunpack.c.l.b16 %v2471
          %v3953 = vunpack.c.h.b16 %v2471
          %v3954 = vunpack.c.l.b16 %v2472
          %v3955 = vunpack.c.h.b16 %v2472
          %v3956 = vunpack.c.l.b16 %v2473
          %v3957 = vunpack.c.h.b16 %v2473
          %v3958 = vunpack.c.l.b16 %v2474
          %v3959 = vunpack.c.h.b16 %v2474
          %v3960 = vunpack.c.l.b16 %v2475
          %v3961 = vunpack.c.h.b16 %v2475
          %v3962 = vunpack.c.l.b16 %v2476
          %v3963 = vunpack.c.h.b16 %v2476
          %v3964 = vunpack.c.l.b16 %v2477
          %v3965 = vunpack.c.h.b16 %v2477
          %v3966 = vunpack.c.l.b16 %v2478
          %v3967 = vunpack.c.h.b16 %v2478
          %v3968 = vunpack.c.l.b16 %v2479
          %v3969 = vunpack.c.h.b16 %v2479
          %v3970 = vunpack.c.l.b16 %v2480
          %v3971 = vunpack.c.h.b16 %v2480
          %v3972 = vunpack.c.l.b16 %v2481
          %v3973 = vunpack.c.h.b16 %v2481
          %v3974 = vunpack.c.l.b16 %v2482
          %v3975 = vunpack.c.h.b16 %v2482
          %v3976 = vunpack.c.l.b16 %v2483
          %v3977 = vunpack.c.h.b16 %v2483
          %v3978 = vunpack.c.l.b16 %v2484
          %v3979 = vunpack.c.h.b16 %v2484
          %v3980 = vunpack.c.l.b16 %v2485
          %v3981 = vunpack.c.h.b16 %v2485
          %v3982 = vunpack.c.l.b16 %v2486
          %v3983 = vunpack.c.h.b16 %v2486
          %v3984 = vunpack.c.l.b16 %v2487
          %v3985 = vunpack.c.h.b16 %v2487
          %v3986 = vunpack.c.l.b16 %v2488
          %v3987 = vunpack.c.h.b16 %v2488
          %v3988 = vunpack.c.l.b16 %v2489
          %v3989 = vunpack.c.h.b16 %v2489
          %v3990 = vunpack.c.l.b16 %v2490
          %v3991 = vunpack.c.h.b16 %v2490
          %v3992 = vunpack.c.l.b16 %v2491
          %v3993 = vunpack.c.h.b16 %v2491
          %v3994 = vunpack.c.l.b16 %v2492
          %v3995 = vunpack.c.h.b16 %v2492
          %v3996 = vunpack.c.l.b16 %v2493
          %v3997 = vunpack.c.h.b16 %v2493
          %v3998 = vunpack.c.l.b16 %v2494
          %v3999 = vunpack.c.h.b16 %v2494
          %v4000 = vunpack.c.l.b16 %v2495
          %v4001 = vunpack.c.h.b16 %v2495
          %v4002 = vunpack.c.l.b16 %v2496
          %v4003 = vunpack.c.h.b16 %v2496
          %v4004 = vunpack.c.l.b16 %v2497
          %v4005 = vunpack.c.h.b16 %v2497
          %v4006 = vunpack.c.l.b16 %v2498
          %v4007 = vunpack.c.h.b16 %v2498
          %v4008 = vunpack.c.l.b16 %v2499
          %v4009 = vunpack.c.h.b16 %v2499
          %v4010 = vunpack.c.l.b16 %v2500
          %v4011 = vunpack.c.h.b16 %v2500
          %v4012 = vunpack.c.l.b16 %v2501
          %v4013 = vunpack.c.h.b16 %v2501
          %v4014 = vunpack.c.l.b16 %v2502
          %v4015 = vunpack.c.h.b16 %v2502
          %v4016 = vunpack.c.l.b16 %v2503
          %v4017 = vunpack.c.h.b16 %v2503
          %v4018 = vunpack.c.l.b16 %v2504
          %v4019 = vunpack.c.h.b16 %v2504
          %v4020 = vunpack.c.l.b16 %v2505
          %v4021 = vunpack.c.h.b16 %v2505
          %v4022 = vunpack.c.l.b16 %v2506
          %v4023 = vunpack.c.h.b16 %v2506
          %v4024 = vunpack.c.l.b16 %v2507
          %v4025 = vunpack.c.h.b16 %v2507
          %v4026 = vunpack.c.l.b16 %v2508
          %v4027 = vunpack.c.h.b16 %v2508
          %v4028 = vunpack.c.l.b16 %v2509
          %v4029 = vunpack.c.h.b16 %v2509
          %v4030 = vunpack.c.l.b16 %v2510
          %v4031 = vunpack.c.h.b16 %v2510
          %v4032 = vunpack.c.l.b16 %v2511
          %v4033 = vunpack.c.h.b16 %v2511
          %v4034 = vunpack.c.l.b16 %v2512
          %v4035 = vunpack.c.h.b16 %v2512
          %v4036 = vunpack.c.l.b16 %v2513
          %v4037 = vunpack.c.h.b16 %v2513
          %v4038 = vunpack.c.l.b16 %v2514
          %v4039 = vunpack.c.h.b16 %v2514
          %v4040 = vunpack.c.l.b16 %v2515
          %v4041 = vunpack.c.h.b16 %v2515
          %v4042 = vunpack.c.l.b16 %v2516
          %v4043 = vunpack.c.h.b16 %v2516
          %v4044 = vunpack.c.l.b16 %v2517
          %v4045 = vunpack.c.h.b16 %v2517
          %v4046 = vunpack.c.l.b16 %v2518
          %v4047 = vunpack.c.h.b16 %v2518
          %v4048 = vunpack.c.l.b16 %v2519
          %v4049 = vunpack.c.h.b16 %v2519
          %v4050 = vunpack.c.l.b16 %v2520
          %v4051 = vunpack.c.h.b16 %v2520
          %v4052 = vunpack.c.l.b16 %v2521
          %v4053 = vunpack.c.h.b16 %v2521
          %v4054 = vunpack.c.l.b16 %v2522
          %v4055 = vunpack.c.h.b16 %v2522
          %v4056 = vunpack.c.l.b16 %v2523
          %v4057 = vunpack.c.h.b16 %v2523
          %v4058 = vunpack.c.l.b16 %v2524
          %v4059 = vunpack.c.h.b16 %v2524
          %v4060 = vunpack.c.l.b16 %v2525
          %v4061 = vunpack.c.h.b16 %v2525
          %v4062 = vpack.c.b16 %v3054, %v3038
          %v4063 = vpack.c.b16 %v3055, %v3039
          %v4064 = vpack.c.b16 %v3056, %v3040
          %v4065 = vpack.c.b16 %v3057, %v3041
          %v4066 = vpack.c.b16 %v3058, %v3042
          %v4067 = vpack.c.b16 %v3059, %v3043
          %v4068 = vpack.c.b16 %v3060, %v3044
          %v4069 = vpack.c.b16 %v3061, %v3045
          %v4070 = vpack.c.b16 %v3062, %v3046
          %v4071 = vpack.c.b16 %v3063, %v3047
          %v4072 = vpack.c.b16 %v3064, %v3048
          %v4073 = vpack.c.b16 %v3065, %v3049
          %v4074 = vpack.c.b16 %v3066, %v3050
          %v4075 = vpack.c.b16 %v3067, %v3051
          %v4076 = vpack.c.b16 %v3068, %v3052
          %v4077 = vpack.c.b16 %v3069, %v3053
          %v4078 = vpack.c.b16 %v3086, %v3070
          %v4079 = vpack.c.b16 %v3087, %v3071
          %v4080 = vpack.c.b16 %v3088, %v3072
          %v4081 = vpack.c.b16 %v3089, %v3073
          %v4082 = vpack.c.b16 %v3090, %v3074
          %v4083 = vpack.c.b16 %v3091, %v3075
          %v4084 = vpack.c.b16 %v3092, %v3076
          %v4085 = vpack.c.b16 %v3093, %v3077
          %v4086 = vpack.c.b16 %v3094, %v3078
          %v4087 = vpack.c.b16 %v3095, %v3079
          %v4088 = vpack.c.b16 %v3096, %v3080
          %v4089 = vpack.c.b16 %v3097, %v3081
          %v4090 = vpack.c.b16 %v3098, %v3082
          %v4091 = vpack.c.b16 %v3099, %v3083
          %v4092 = vpack.c.b16 %v3100, %v3084
          %v4093 = vpack.c.b16 %v3101, %v3085
          %v4094 = vpack.c.b16 %v3118, %v3102
          %v4095 = vpack.c.b16 %v3119, %v3103
          %v4096 = vpack.c.b16 %v3120, %v3104
          %v4097 = vpack.c.b16 %v3121, %v3105
          %v4098 = vpack.c.b16 %v3122, %v3106
          %v4099 = vpack.c.b16 %v3123, %v3107
          %v4100 = vpack.c.b16 %v3124, %v3108
          %v4101 = vpack.c.b16 %v3125, %v3109
          %v4102 = vpack.c.b16 %v3126, %v3110
          %v4103 = vpack.c.b16 %v3127, %v3111
          %v4104 = vpack.c.b16 %v3128, %v3112
          %v4105 = vpack.c.b16 %v3129, %v3113
          %v4106 = vpack.c.b16 %v3130, %v3114
          %v4107 = vpack.c.b16 %v3131, %v3115
          %v4108 = vpack.c.b16 %v3132, %v3116
          %v4109 = vpack.c.b16 %v3133, %v3117
          %v4110 = vpack.c.b16 %v3150, %v3134
          %v4111 = vpack.c.b16 %v3151, %v3135
          %v4112 = vpack.c.b16 %v3152, %v3136
          %v4113 = vpack.c.b16 %v3153, %v3137
          %v4114 = vpack.c.b16 %v3154, %v3138
          %v4115 = vpack.c.b16 %v3155, %v3139
          %v4116 = vpack.c.b16 %v3156, %v3140
          %v4117 = vpack.c.b16 %v3157, %v3141
          %v4118 = vpack.c.b16 %v3158, %v3142
          %v4119 = vpack.c.b16 %v3159, %v3143
          %v4120 = vpack.c.b16 %v3160, %v3144
          %v4121 = vpack.c.b16 %v3161, %v3145
          %v4122 = vpack.c.b16 %v3162, %v3146
          %v4123 = vpack.c.b16 %v3163, %v3147
          %v4124 = vpack.c.b16 %v3164, %v3148
          %v4125 = vpack.c.b16 %v3165, %v3149
          %v4126 = vpack.c.b16 %v3182, %v3166
          %v4127 = vpack.c.b16 %v3183, %v3167
          %v4128 = vpack.c.b16 %v3184, %v3168
          %v4129 = vpack.c.b16 %v3185, %v3169
          %v4130 = vpack.c.b16 %v3186, %v3170
          %v4131 = vpack.c.b16 %v3187, %v3171
          %v4132 = vpack.c.b16 %v3188, %v3172
          %v4133 = vpack.c.b16 %v3189, %v3173
          %v4134 = vpack.c.b16 %v3190, %v3174
          %v4135 = vpack.c.b16 %v3191, %v3175
          %v4136 = vpack.c.b16 %v3192, %v3176
          %v4137 = vpack.c.b16 %v3193, %v3177
          %v4138 = vpack.c.b16 %v3194, %v3178
          %v4139 = vpack.c.b16 %v3195, %v3179
          %v4140 = vpack.c.b16 %v3196, %v3180
          %v4141 = vpack.c.b16 %v3197, %v3181
          %v4142 = vpack.c.b16 %v3214, %v3198
          %v4143 = vpack.c.b16 %v3215, %v3199
          %v4144 = vpack.c.b16 %v3216, %v3200
          %v4145 = vpack.c.b16 %v3217, %v3201
          %v4146 = vpack.c.b16 %v3218, %v3202
          %v4147 = vpack.c.b16 %v3219, %v3203
          %v4148 = vpack.c.b16 %v3220, %v3204
          %v4149 = vpack.c.b16 %v3221, %v3205
          %v4150 = vpack.c.b16 %v3222, %v3206
          %v4151 = vpack.c.b16 %v3223, %v3207
          %v4152 = vpack.c.b16 %v3224, %v3208
          %v4153 = vpack.c.b16 %v3225, %v3209
          %v4154 = vpack.c.b16 %v3226, %v3210
          %v4155 = vpack.c.b16 %v3227, %v3211
          %v4156 = vpack.c.b16 %v3228, %v3212
          %v4157 = vpack.c.b16 %v3229, %v3213
          %v4158 = vpack.c.b16 %v3246, %v3230
          %v4159 = vpack.c.b16 %v3247, %v3231
          %v4160 = vpack.c.b16 %v3248, %v3232
          %v4161 = vpack.c.b16 %v3249, %v3233
          %v4162 = vpack.c.b16 %v3250, %v3234
          %v4163 = vpack.c.b16 %v3251, %v3235
          %v4164 = vpack.c.b16 %v3252, %v3236
          %v4165 = vpack.c.b16 %v3253, %v3237
          %v4166 = vpack.c.b16 %v3254, %v3238
          %v4167 = vpack.c.b16 %v3255, %v3239
          %v4168 = vpack.c.b16 %v3256, %v3240
          %v4169 = vpack.c.b16 %v3257, %v3241
          %v4170 = vpack.c.b16 %v3258, %v3242
          %v4171 = vpack.c.b16 %v3259, %v3243
          %v4172 = vpack.c.b16 %v3260, %v3244
          %v4173 = vpack.c.b16 %v3261, %v3245
          %v4174 = vpack.c.b16 %v3278, %v3262
          %v4175 = vpack.c.b16 %v3279, %v3263
          %v4176 = vpack.c.b16 %v3280, %v3264
          %v4177 = vpack.c.b16 %v3281, %v3265
          %v4178 = vpack.c.b16 %v3282, %v3266
          %v4179 = vpack.c.b16 %v3283, %v3267
          %v4180 = vpack.c.b16 %v3284, %v3268
          %v4181 = vpack.c.b16 %v3285, %v3269
          %v4182 = vpack.c.b16 %v3286, %v3270
          %v4183 = vpack.c.b16 %v3287, %v3271
          %v4184 = vpack.c.b16 %v3288, %v3272
          %v4185 = vpack.c.b16 %v3289, %v3273
          %v4186 = vpack.c.b16 %v3290, %v3274
          %v4187 = vpack.c.b16 %v3291, %v3275
          %v4188 = vpack.c.b16 %v3292, %v3276
          %v4189 = vpack.c.b16 %v3293, %v3277
          %v4190 = vpack.c.b16 %v3310, %v3294
          %v4191 = vpack.c.b16 %v3311, %v3295
          %v4192 = vpack.c.b16 %v3312, %v3296
          %v4193 = vpack.c.b16 %v3313, %v3297
          %v4194 = vpack.c.b16 %v3314, %v3298
          %v4195 = vpack.c.b16 %v3315, %v3299
          %v4196 = vpack.c.b16 %v3316, %v3300
          %v4197 = vpack.c.b16 %v3317, %v3301
          %v4198 = vpack.c.b16 %v3318, %v3302
          %v4199 = vpack.c.b16 %v3319, %v3303
          %v4200 = vpack.c.b16 %v3320, %v3304
          %v4201 = vpack.c.b16 %v3321, %v3305
          %v4202 = vpack.c.b16 %v3322, %v3306
          %v4203 = vpack.c.b16 %v3323, %v3307
          %v4204 = vpack.c.b16 %v3324, %v3308
          %v4205 = vpack.c.b16 %v3325, %v3309
          %v4206 = vpack.c.b16 %v3342, %v3326
          %v4207 = vpack.c.b16 %v3343, %v3327
          %v4208 = vpack.c.b16 %v3344, %v3328
          %v4209 = vpack.c.b16 %v3345, %v3329
          %v4210 = vpack.c.b16 %v3346, %v3330
          %v4211 = vpack.c.b16 %v3347, %v3331
          %v4212 = vpack.c.b16 %v3348, %v3332
          %v4213 = vpack.c.b16 %v3349, %v3333
          %v4214 = vpack.c.b16 %v3350, %v3334
          %v4215 = vpack.c.b16 %v3351, %v3335
          %v4216 = vpack.c.b16 %v3352, %v3336
          %v4217 = vpack.c.b16 %v3353, %v3337
          %v4218 = vpack.c.b16 %v3354, %v3338
          %v4219 = vpack.c.b16 %v3355, %v3339
          %v4220 = vpack.c.b16 %v3356, %v3340
          %v4221 = vpack.c.b16 %v3357, %v3341
          %v4222 = vpack.c.b16 %v3374, %v3358
          %v4223 = vpack.c.b16 %v3375, %v3359
          %v4224 = vpack.c.b16 %v3376, %v3360
          %v4225 = vpack.c.b16 %v3377, %v3361
          %v4226 = vpack.c.b16 %v3378, %v3362
          %v4227 = vpack.c.b16 %v3379, %v3363
          %v4228 = vpack.c.b16 %v3380, %v3364
          %v4229 = vpack.c.b16 %v3381, %v3365
          %v4230 = vpack.c.b16 %v3382, %v3366
          %v4231 = vpack.c.b16 %v3383, %v3367
          %v4232 = vpack.c.b16 %v3384, %v3368
          %v4233 = vpack.c.b16 %v3385, %v3369
          %v4234 = vpack.c.b16 %v3386, %v3370
          %v4235 = vpack.c.b16 %v3387, %v3371
          %v4236 = vpack.c.b16 %v3388, %v3372
          %v4237 = vpack.c.b16 %v3389, %v3373
          %v4238 = vpack.c.b16 %v3406, %v3390
          %v4239 = vpack.c.b16 %v3407, %v3391
          %v4240 = vpack.c.b16 %v3408, %v3392
          %v4241 = vpack.c.b16 %v3409, %v3393
          %v4242 = vpack.c.b16 %v3410, %v3394
          %v4243 = vpack.c.b16 %v3411, %v3395
          %v4244 = vpack.c.b16 %v3412, %v3396
          %v4245 = vpack.c.b16 %v3413, %v3397
          %v4246 = vpack.c.b16 %v3414, %v3398
          %v4247 = vpack.c.b16 %v3415, %v3399
          %v4248 = vpack.c.b16 %v3416, %v3400
          %v4249 = vpack.c.b16 %v3417, %v3401
          %v4250 = vpack.c.b16 %v3418, %v3402
          %v4251 = vpack.c.b16 %v3419, %v3403
          %v4252 = vpack.c.b16 %v3420, %v3404
          %v4253 = vpack.c.b16 %v3421, %v3405
          %v4254 = vpack.c.b16 %v3438, %v3422
          %v4255 = vpack.c.b16 %v3439, %v3423
          %v4256 = vpack.c.b16 %v3440, %v3424
          %v4257 = vpack.c.b16 %v3441, %v3425
          %v4258 = vpack.c.b16 %v3442, %v3426
          %v4259 = vpack.c.b16 %v3443, %v3427
          %v4260 = vpack.c.b16 %v3444, %v3428
          %v4261 = vpack.c.b16 %v3445, %v3429
          %v4262 = vpack.c.b16 %v3446, %v3430
          %v4263 = vpack.c.b16 %v3447, %v3431
          %v4264 = vpack.c.b16 %v3448, %v3432
          %v4265 = vpack.c.b16 %v3449, %v3433
          %v4266 = vpack.c.b16 %v3450, %v3434
          %v4267 = vpack.c.b16 %v3451, %v3435
          %v4268 = vpack.c.b16 %v3452, %v3436
          %v4269 = vpack.c.b16 %v3453, %v3437
          %v4270 = vpack.c.b16 %v3470, %v3454
          %v4271 = vpack.c.b16 %v3471, %v3455
          %v4272 = vpack.c.b16 %v3472, %v3456
          %v4273 = vpack.c.b16 %v3473, %v3457
          %v4274 = vpack.c.b16 %v3474, %v3458
          %v4275 = vpack.c.b16 %v3475, %v3459
          %v4276 = vpack.c.b16 %v3476, %v3460
          %v4277 = vpack.c.b16 %v3477, %v3461
          %v4278 = vpack.c.b16 %v3478, %v3462
          %v4279 = vpack.c.b16 %v3479, %v3463
          %v4280 = vpack.c.b16 %v3480, %v3464
          %v4281 = vpack.c.b16 %v3481, %v3465
          %v4282 = vpack.c.b16 %v3482, %v3466
          %v4283 = vpack.c.b16 %v3483, %v3467
          %v4284 = vpack.c.b16 %v3484, %v3468
          %v4285 = vpack.c.b16 %v3485, %v3469
          %v4286 = vpack.c.b16 %v3502, %v3486
          %v4287 = vpack.c.b16 %v3503, %v3487
          %v4288 = vpack.c.b16 %v3504, %v3488
          %v4289 = vpack.c.b16 %v3505, %v3489
          %v4290 = vpack.c.b16 %v3506, %v3490
          %v4291 = vpack.c.b16 %v3507, %v3491
          %v4292 = vpack.c.b16 %v3508, %v3492
          %v4293 = vpack.c.b16 %v3509, %v3493
          %v4294 = vpack.c.b16 %v3510, %v3494
          %v4295 = vpack.c.b16 %v3511, %v3495
          %v4296 = vpack.c.b16 %v3512, %v3496
          %v4297 = vpack.c.b16 %v3513, %v3497
          %v4298 = vpack.c.b16 %v3514, %v3498
          %v4299 = vpack.c.b16 %v3515, %v3499
          %v4300 = vpack.c.b16 %v3516, %v3500
          %v4301 = vpack.c.b16 %v3517, %v3501
          %v4302 = vpack.c.b16 %v3534, %v3518
          %v4303 = vpack.c.b16 %v3535, %v3519
          %v4304 = vpack.c.b16 %v3536, %v3520
          %v4305 = vpack.c.b16 %v3537, %v3521
          %v4306 = vpack.c.b16 %v3538, %v3522
          %v4307 = vpack.c.b16 %v3539, %v3523
          %v4308 = vpack.c.b16 %v3540, %v3524
          %v4309 = vpack.c.b16 %v3541, %v3525
          %v4310 = vpack.c.b16 %v3542, %v3526
          %v4311 = vpack.c.b16 %v3543, %v3527
          %v4312 = vpack.c.b16 %v3544, %v3528
          %v4313 = vpack.c.b16 %v3545, %v3529
          %v4314 = vpack.c.b16 %v3546, %v3530
          %v4315 = vpack.c.b16 %v3547, %v3531
          %v4316 = vpack.c.b16 %v3548, %v3532
          %v4317 = vpack.c.b16 %v3549, %v3533
          %v4318 = vpack.c.b16 %v3566, %v3550
          %v4319 = vpack.c.b16 %v3567, %v3551
          %v4320 = vpack.c.b16 %v3568, %v3552
          %v4321 = vpack.c.b16 %v3569, %v3553
          %v4322 = vpack.c.b16 %v3570, %v3554
          %v4323 = vpack.c.b16 %v3571, %v3555
          %v4324 = vpack.c.b16 %v3572, %v3556
          %v4325 = vpack.c.b16 %v3573, %v3557
          %v4326 = vpack.c.b16 %v3574, %v3558
          %v4327 = vpack.c.b16 %v3575, %v3559
          %v4328 = vpack.c.b16 %v3576, %v3560
          %v4329 = vpack.c.b16 %v3577, %v3561
          %v4330 = vpack.c.b16 %v3578, %v3562
          %v4331 = vpack.c.b16 %v3579, %v3563
          %v4332 = vpack.c.b16 %v3580, %v3564
          %v4333 = vpack.c.b16 %v3581, %v3565
          %v4334 = vpack.c.b16 %v3598, %v3582
          %v4335 = vpack.c.b16 %v3599, %v3583
          %v4336 = vpack.c.b16 %v3600, %v3584
          %v4337 = vpack.c.b16 %v3601, %v3585
          %v4338 = vpack.c.b16 %v3602, %v3586
          %v4339 = vpack.c.b16 %v3603, %v3587
          %v4340 = vpack.c.b16 %v3604, %v3588
          %v4341 = vpack.c.b16 %v3605, %v3589
          %v4342 = vpack.c.b16 %v3606, %v3590
          %v4343 = vpack.c.b16 %v3607, %v3591
          %v4344 = vpack.c.b16 %v3608, %v3592
          %v4345 = vpack.c.b16 %v3609, %v3593
          %v4346 = vpack.c.b16 %v3610, %v3594
          %v4347 = vpack.c.b16 %v3611, %v3595
          %v4348 = vpack.c.b16 %v3612, %v3596
          %v4349 = vpack.c.b16 %v3613, %v3597
          %v4350 = vpack.c.b16 %v3630, %v3614
          %v4351 = vpack.c.b16 %v3631, %v3615
          %v4352 = vpack.c.b16 %v3632, %v3616
          %v4353 = vpack.c.b16 %v3633, %v3617
          %v4354 = vpack.c.b16 %v3634, %v3618
          %v4355 = vpack.c.b16 %v3635, %v3619
          %v4356 = vpack.c.b16 %v3636, %v3620
          %v4357 = vpack.c.b16 %v3637, %v3621
          %v4358 = vpack.c.b16 %v3638, %v3622
          %v4359 = vpack.c.b16 %v3639, %v3623
          %v4360 = vpack.c.b16 %v3640, %v3624
          %v4361 = vpack.c.b16 %v3641, %v3625
          %v4362 = vpack.c.b16 %v3642, %v3626
          %v4363 = vpack.c.b16 %v3643, %v3627
          %v4364 = vpack.c.b16 %v3644, %v3628
          %v4365 = vpack.c.b16 %v3645, %v3629
          %v4366 = vpack.c.b16 %v3662, %v3646
          %v4367 = vpack.c.b16 %v3663, %v3647
          %v4368 = vpack.c.b16 %v3664, %v3648
          %v4369 = vpack.c.b16 %v3665, %v3649
          %v4370 = vpack.c.b16 %v3666, %v3650
          %v4371 = vpack.c.b16 %v3667, %v3651
          %v4372 = vpack.c.b16 %v3668, %v3652
          %v4373 = vpack.c.b16 %v3669, %v3653
          %v4374 = vpack.c.b16 %v3670, %v3654
          %v4375 = vpack.c.b16 %v3671, %v3655
          %v4376 = vpack.c.b16 %v3672, %v3656
          %v4377 = vpack.c.b16 %v3673, %v3657
          %v4378 = vpack.c.b16 %v3674, %v3658
          %v4379 = vpack.c.b16 %v3675, %v3659
          %v4380 = vpack.c.b16 %v3676, %v3660
          %v4381 = vpack.c.b16 %v3677, %v3661
          %v4382 = vpack.c.b16 %v3694, %v3678
          %v4383 = vpack.c.b16 %v3695, %v3679
          %v4384 = vpack.c.b16 %v3696, %v3680
          %v4385 = vpack.c.b16 %v3697, %v3681
          %v4386 = vpack.c.b16 %v3698, %v3682
          %v4387 = vpack.c.b16 %v3699, %v3683
          %v4388 = vpack.c.b16 %v3700, %v3684
          %v4389 = vpack.c.b16 %v3701, %v3685
          %v4390 = vpack.c.b16 %v3702, %v3686
          %v4391 = vpack.c.b16 %v3703, %v3687
          %v4392 = vpack.c.b16 %v3704, %v3688
          %v4393 = vpack.c.b16 %v3705, %v3689
          %v4394 = vpack.c.b16 %v3706, %v3690
          %v4395 = vpack.c.b16 %v3707, %v3691
          %v4396 = vpack.c.b16 %v3708, %v3692
          %v4397 = vpack.c.b16 %v3709, %v3693
          %v4398 = vpack.c.b16 %v3726, %v3710
          %v4399 = vpack.c.b16 %v3727, %v3711
          %v4400 = vpack.c.b16 %v3728, %v3712
          %v4401 = vpack.c.b16 %v3729, %v3713
          %v4402 = vpack.c.b16 %v3730, %v3714
          %v4403 = vpack.c.b16 %v3731, %v3715
          %v4404 = vpack.c.b16 %v3732, %v3716
          %v4405 = vpack.c.b16 %v3733, %v3717
          %v4406 = vpack.c.b16 %v3734, %v3718
          %v4407 = vpack.c.b16 %v3735, %v3719
          %v4408 = vpack.c.b16 %v3736, %v3720
          %v4409 = vpack.c.b16 %v3737, %v3721
          %v4410 = vpack.c.b16 %v3738, %v3722
          %v4411 = vpack.c.b16 %v3739, %v3723
          %v4412 = vpack.c.b16 %v3740, %v3724
          %v4413 = vpack.c.b16 %v3741, %v3725
          %v4414 = vpack.c.b16 %v3758, %v3742
          %v4415 = vpack.c.b16 %v3759, %v3743
          %v4416 = vpack.c.b16 %v3760, %v3744
          %v4417 = vpack.c.b16 %v3761, %v3745
          %v4418 = vpack.c.b16 %v3762, %v3746
          %v4419 = vpack.c.b16 %v3763, %v3747
          %v4420 = vpack.c.b16 %v3764, %v3748
          %v4421 = vpack.c.b16 %v3765, %v3749
          %v4422 = vpack.c.b16 %v3766, %v3750
          %v4423 = vpack.c.b16 %v3767, %v3751
          %v4424 = vpack.c.b16 %v3768, %v3752
          %v4425 = vpack.c.b16 %v3769, %v3753
          %v4426 = vpack.c.b16 %v3770, %v3754
          %v4427 = vpack.c.b16 %v3771, %v3755
          %v4428 = vpack.c.b16 %v3772, %v3756
          %v4429 = vpack.c.b16 %v3773, %v3757
          %v4430 = vpack.c.b16 %v3790, %v3774
          %v4431 = vpack.c.b16 %v3791, %v3775
          %v4432 = vpack.c.b16 %v3792, %v3776
          %v4433 = vpack.c.b16 %v3793, %v3777
          %v4434 = vpack.c.b16 %v3794, %v3778
          %v4435 = vpack.c.b16 %v3795, %v3779
          %v4436 = vpack.c.b16 %v3796, %v3780
          %v4437 = vpack.c.b16 %v3797, %v3781
          %v4438 = vpack.c.b16 %v3798, %v3782
          %v4439 = vpack.c.b16 %v3799, %v3783
          %v4440 = vpack.c.b16 %v3800, %v3784
          %v4441 = vpack.c.b16 %v3801, %v3785
          %v4442 = vpack.c.b16 %v3802, %v3786
          %v4443 = vpack.c.b16 %v3803, %v3787
          %v4444 = vpack.c.b16 %v3804, %v3788
          %v4445 = vpack.c.b16 %v3805, %v3789
          %v4446 = vpack.c.b16 %v3822, %v3806
          %v4447 = vpack.c.b16 %v3823, %v3807
          %v4448 = vpack.c.b16 %v3824, %v3808
          %v4449 = vpack.c.b16 %v3825, %v3809
          %v4450 = vpack.c.b16 %v3826, %v3810
          %v4451 = vpack.c.b16 %v3827, %v3811
          %v4452 = vpack.c.b16 %v3828, %v3812
          %v4453 = vpack.c.b16 %v3829, %v3813
          %v4454 = vpack.c.b16 %v3830, %v3814
          %v4455 = vpack.c.b16 %v3831, %v3815
          %v4456 = vpack.c.b16 %v3832, %v3816
          %v4457 = vpack.c.b16 %v3833, %v3817
          %v4458 = vpack.c.b16 %v3834, %v3818
          %v4459 = vpack.c.b16 %v3835, %v3819
          %v4460 = vpack.c.b16 %v3836, %v3820
          %v4461 = vpack.c.b16 %v3837, %v3821
          %v4462 = vpack.c.b16 %v3854, %v3838
          %v4463 = vpack.c.b16 %v3855, %v3839
          %v4464 = vpack.c.b16 %v3856, %v3840
          %v4465 = vpack.c.b16 %v3857, %v3841
          %v4466 = vpack.c.b16 %v3858, %v3842
          %v4467 = vpack.c.b16 %v3859, %v3843
          %v4468 = vpack.c.b16 %v3860, %v3844
          %v4469 = vpack.c.b16 %v3861, %v3845
          %v4470 = vpack.c.b16 %v3862, %v3846
          %v4471 = vpack.c.b16 %v3863, %v3847
          %v4472 = vpack.c.b16 %v3864, %v3848
          %v4473 = vpack.c.b16 %v3865, %v3849
          %v4474 = vpack.c.b16 %v3866, %v3850
          %v4475 = vpack.c.b16 %v3867, %v3851
          %v4476 = vpack.c.b16 %v3868, %v3852
          %v4477 = vpack.c.b16 %v3869, %v3853
          %v4478 = vpack.c.b16 %v3886, %v3870
          %v4479 = vpack.c.b16 %v3887, %v3871
          %v4480 = vpack.c.b16 %v3888, %v3872
          %v4481 = vpack.c.b16 %v3889, %v3873
          %v4482 = vpack.c.b16 %v3890, %v3874
          %v4483 = vpack.c.b16 %v3891, %v3875
          %v4484 = vpack.c.b16 %v3892, %v3876
          %v4485 = vpack.c.b16 %v3893, %v3877
          %v4486 = vpack.c.b16 %v3894, %v3878
          %v4487 = vpack.c.b16 %v3895, %v3879
          %v4488 = vpack.c.b16 %v3896, %v3880
          %v4489 = vpack.c.b16 %v3897, %v3881
          %v4490 = vpack.c.b16 %v3898, %v3882
          %v4491 = vpack.c.b16 %v3899, %v3883
          %v4492 = vpack.c.b16 %v3900, %v3884
          %v4493 = vpack.c.b16 %v3901, %v3885
          %v4494 = vpack.c.b16 %v3918, %v3902
          %v4495 = vpack.c.b16 %v3919, %v3903
          %v4496 = vpack.c.b16 %v3920, %v3904
          %v4497 = vpack.c.b16 %v3921, %v3905
          %v4498 = vpack.c.b16 %v3922, %v3906
          %v4499 = vpack.c.b16 %v3923, %v3907
          %v4500 = vpack.c.b16 %v3924, %v3908
          %v4501 = vpack.c.b16 %v3925, %v3909
          %v4502 = vpack.c.b16 %v3926, %v3910
          %v4503 = vpack.c.b16 %v3927, %v3911
          %v4504 = vpack.c.b16 %v3928, %v3912
          %v4505 = vpack.c.b16 %v3929, %v3913
          %v4506 = vpack.c.b16 %v3930, %v3914
          %v4507 = vpack.c.b16 %v3931, %v3915
          %v4508 = vpack.c.b16 %v3932, %v3916
          %v4509 = vpack.c.b16 %v3933, %v3917
          %v4510 = vpack.c.b16 %v3950, %v3934
          %v4511 = vpack.c.b16 %v3951, %v3935
          %v4512 = vpack.c.b16 %v3952, %v3936
          %v4513 = vpack.c.b16 %v3953, %v3937
          %v4514 = vpack.c.b16 %v3954, %v3938
          %v4515 = vpack.c.b16 %v3955, %v3939
          %v4516 = vpack.c.b16 %v3956, %v3940
          %v4517 = vpack.c.b16 %v3957, %v3941
          %v4518 = vpack.c.b16 %v3958, %v3942
          %v4519 = vpack.c.b16 %v3959, %v3943
          %v4520 = vpack.c.b16 %v3960, %v3944
          %v4521 = vpack.c.b16 %v3961, %v3945
          %v4522 = vpack.c.b16 %v3962, %v3946
          %v4523 = vpack.c.b16 %v3963, %v3947
          %v4524 = vpack.c.b16 %v3964, %v3948
          %v4525 = vpack.c.b16 %v3965, %v3949
          %v4526 = vpack.c.b16 %v3982, %v3966
          %v4527 = vpack.c.b16 %v3983, %v3967
          %v4528 = vpack.c.b16 %v3984, %v3968
          %v4529 = vpack.c.b16 %v3985, %v3969
          %v4530 = vpack.c.b16 %v3986, %v3970
          %v4531 = vpack.c.b16 %v3987, %v3971
          %v4532 = vpack.c.b16 %v3988, %v3972
          %v4533 = vpack.c.b16 %v3989, %v3973
          %v4534 = vpack.c.b16 %v3990, %v3974
          %v4535 = vpack.c.b16 %v3991, %v3975
          %v4536 = vpack.c.b16 %v3992, %v3976
          %v4537 = vpack.c.b16 %v3993, %v3977
          %v4538 = vpack.c.b16 %v3994, %v3978
          %v4539 = vpack.c.b16 %v3995, %v3979
          %v4540 = vpack.c.b16 %v3996, %v3980
          %v4541 = vpack.c.b16 %v3997, %v3981
          %v4542 = vpack.c.b16 %v4014, %v3998
          %v4543 = vpack.c.b16 %v4015, %v3999
          %v4544 = vpack.c.b16 %v4016, %v4000
          %v4545 = vpack.c.b16 %v4017, %v4001
          %v4546 = vpack.c.b16 %v4018, %v4002
          %v4547 = vpack.c.b16 %v4019, %v4003
          %v4548 = vpack.c.b16 %v4020, %v4004
          %v4549 = vpack.c.b16 %v4021, %v4005
          %v4550 = vpack.c.b16 %v4022, %v4006
          %v4551 = vpack.c.b16 %v4023, %v4007
          %v4552 = vpack.c.b16 %v4024, %v4008
          %v4553 = vpack.c.b16 %v4025, %v4009
          %v4554 = vpack.c.b16 %v4026, %v4010
          %v4555 = vpack.c.b16 %v4027, %v4011
          %v4556 = vpack.c.b16 %v4028, %v4012
          %v4557 = vpack.c.b16 %v4029, %v4013
          %v4558 = vpack.c.b16 %v4046, %v4030
          %v4559 = vpack.c.b16 %v4047, %v4031
          %v4560 = vpack.c.b16 %v4048, %v4032
          %v4561 = vpack.c.b16 %v4049, %v4033
          %v4562 = vpack.c.b16 %v4050, %v4034
          %v4563 = vpack.c.b16 %v4051, %v4035
          %v4564 = vpack.c.b16 %v4052, %v4036
          %v4565 = vpack.c.b16 %v4053, %v4037
          %v4566 = vpack.c.b16 %v4054, %v4038
          %v4567 = vpack.c.b16 %v4055, %v4039
          %v4568 = vpack.c.b16 %v4056, %v4040
          %v4569 = vpack.c.b16 %v4057, %v4041
          %v4570 = vpack.c.b16 %v4058, %v4042
          %v4571 = vpack.c.b16 %v4059, %v4043
          %v4572 = vpack.c.b16 %v4060, %v4044
          %v4573 = vpack.c.b16 %v4061, %v4045
          %5086 = vmatprep.subr.bf16.mxu0 %v4063
          %5087 = vmatpush1.bf16.msra.mxu0 %v4062
          %5088 = vmatprep.subr.bf16.mxu0 %v4079
          %5089 = vmatpush1.bf16.msra.mxu0 %v4078
          %5090 = vmatprep.subr.bf16.mxu0 %v4095
          %5091 = vmatpush1.bf16.msra.mxu0 %v4094
          %5092 = vmatprep.subr.bf16.mxu0 %v4111
          %5093 = vmatpush1.bf16.msra.mxu0 %v4110
          %5094 = vmatprep.subr.bf16.mxu0 %v4127
          %5095 = vmatpush1.bf16.msra.mxu0 %v4126
          %5096 = vmatprep.subr.bf16.mxu0 %v4143
          %5097 = vmatpush1.bf16.msra.mxu0 %v4142
          %5098 = vmatprep.subr.bf16.mxu0 %v4159
          %5099 = vmatpush1.bf16.msra.mxu0 %v4158
          %5100 = vmatprep.subr.bf16.mxu0 %v4175
          %5101 = vmatpush1.bf16.msra.mxu0 %v4174
          %5102 = vmatprep.subr.bf16.mxu0 %v4191
          %5103 = vmatpush1.bf16.msra.mxu0 %v4190
          %5104 = vmatprep.subr.bf16.mxu0 %v4207
          %5105 = vmatpush1.bf16.msra.mxu0 %v4206
          %5106 = vmatprep.subr.bf16.mxu0 %v4223
          %5107 = vmatpush1.bf16.msra.mxu0 %v4222
          %5108 = vmatprep.subr.bf16.mxu0 %v4239
          %5109 = vmatpush1.bf16.msra.mxu0 %v4238
          %5110 = vmatprep.subr.bf16.mxu0 %v4255
          %5111 = vmatpush1.bf16.msra.mxu0 %v4254
          %5112 = vmatprep.subr.bf16.mxu0 %v4271
          %5113 = vmatpush1.bf16.msra.mxu0 %v4270
          %5114 = vmatprep.subr.bf16.mxu0 %v4287
          %5115 = vmatpush1.bf16.msra.mxu0 %v4286
          %5116 = vmatprep.subr.bf16.mxu0 %v4303
          %5117 = vmatpush1.bf16.msra.mxu0 %v4302
          %5118 = vmatprep.mubr.bf16.mxu0 %v1999
          %5119 = vmatmul.mubr.bf16.gmra.mrb[0].mxu0 %v1998
          %v5120 = vpop.f32.mrb[0].mxu0
          %v5121 = vadd.f32 0.0, %v5120
          %v5122 = vpop.f32.mrb[0].mxu0
          %v5123 = vadd.f32 0.0, %v5122
          %v5124 = vpop.f32.mrb[0].mxu0
          %v5125 = vadd.f32 0.0, %v5124
          %v5126 = vpop.f32.mrb[0].mxu0
          %v5127 = vadd.f32 0.0, %v5126
          %5128 = vmatprep.mubr.bf16.mxu0 %v2003
          %5129 = vmatmul.mubr.bf16.gmra.mrb[0].mxu0 %v2002
          %v5130 = vpop.f32.mrb[0].mxu0
          %v5131 = vadd.f32 0.0, %v5130
          %v5132 = vpop.f32.mrb[0].mxu0
          %v5133 = vadd.f32 0.0, %v5132
          %v5134 = vpop.f32.mrb[0].mxu0
          %v5135 = vadd.f32 0.0, %v5134
          %v5136 = vpop.f32.mrb[0].mxu0
          %v5137 = vadd.f32 0.0, %v5136
          %5138 = vmatprep.mubr.bf16.mxu0 %v2007
          %5139 = vmatmul.mubr.bf16.gmra.mrb[0].mxu0 %v2006
          %v5140 = vpop.f32.mrb[0].mxu0
          %v5141 = vadd.f32 0.0, %v5140
          %v5142 = vpop.f32.mrb[0].mxu0
          %v5143 = vadd.f32 0.0, %v5142
          %v5144 = vpop.f32.mrb[0].mxu0
          %v5145 = vadd.f32 0.0, %v5144
          %v5146 = vpop.f32.mrb[0].mxu0
          %v5147 = vadd.f32 0.0, %v5146
          %5148 = vmatprep.mubr.bf16.mxu0 %v2011
          %5149 = vmatmul.mubr.bf16.gmra.mrb[0].mxu0 %v2010
          %v5150 = vpop.f32.mrb[0].mxu0
          %v5151 = vadd.f32 0.0, %v5150
          %v5152 = vpop.f32.mrb[0].mxu0
          %v5153 = vadd.f32 0.0, %v5152
          %v5154 = vpop.f32.mrb[0].mxu0
          %v5155 = vadd.f32 0.0, %v5154
          %v5156 = vpop.f32.mrb[0].mxu0
          %v5157 = vadd.f32 0.0, %v5156
          %5158 = vdwg.mxu0
          %5159 = vmatprep.subr.bf16.mxu0 %v4319
          %5160 = vmatpush1.bf16.msra.mxu0 %v4318
          %5161 = vmatprep.subr.bf16.mxu0 %v4335
          %5162 = vmatpush1.bf16.msra.mxu0 %v4334
          %5163 = vmatprep.subr.bf16.mxu0 %v4351
          %5164 = vmatpush1.bf16.msra.mxu0 %v4350
          %5165 = vmatprep.subr.bf16.mxu0 %v4367
          %5166 = vmatpush1.bf16.msra.mxu0 %v4366
          %5167 = vmatprep.subr.bf16.mxu0 %v4383
          %5168 = vmatpush1.bf16.msra.mxu0 %v4382
          %5169 = vmatprep.subr.bf16.mxu0 %v4399
          %5170 = vmatpush1.bf16.msra.mxu0 %v4398
          %5171 = vmatprep.subr.bf16.mxu0 %v4415
          %5172 = vmatpush1.bf16.msra.mxu0 %v4414
          %5173 = vmatprep.subr.bf16.mxu0 %v4431
          %5174 = vmatpush1.bf16.msra.mxu0 %v4430
          %5175 = vmatprep.subr.bf16.mxu0 %v4447
          %5176 = vmatpush1.bf16.msra.mxu0 %v4446
          %5177 = vmatprep.subr.bf16.mxu0 %v4463
          %5178 = vmatpush1.bf16.msra.mxu0 %v4462
          %5179 = vmatprep.subr.bf16.mxu0 %v4479
          %5180 = vmatpush1.bf16.msra.mxu0 %v4478
          %5181 = vmatprep.subr.bf16.mxu0 %v4495
          %5182 = vmatpush1.bf16.msra.mxu0 %v4494
          %5183 = vmatprep.subr.bf16.mxu0 %v4511
          %5184 = vmatpush1.bf16.msra.mxu0 %v4510
          %5185 = vmatprep.subr.bf16.mxu0 %v4527
          %5186 = vmatpush1.bf16.msra.mxu0 %v4526
          %5187 = vmatprep.subr.bf16.mxu0 %v4543
          %5188 = vmatpush1.bf16.msra.mxu0 %v4542
          %5189 = vmatprep.subr.bf16.mxu0 %v4559
          %5190 = vmatpush1.bf16.msra.mxu0 %v4558
          %5191 = vmatprep.mubr.bf16.mxu0 %v2001
          %5192 = vmatmul.mubr.bf16.gmra.mrb[0].mxu0 %v2000
          %v5193 = vpop.f32.mrb[0].mxu0
          %v5194 = vadd.f32 %v5121, %v5193
          %v5195 = vpop.f32.mrb[0].mxu0
          %v5196 = vadd.f32 %v5123, %v5195
          %v5197 = vpop.f32.mrb[0].mxu0
          %v5198 = vadd.f32 %v5125, %v5197
          %v5199 = vpop.f32.mrb[0].mxu0
          %v5200 = vadd.f32 %v5127, %v5199
          %5201 = vmatprep.mubr.bf16.mxu0 %v2005
          %5202 = vmatmul.mubr.bf16.gmra.mrb[0].mxu0 %v2004
          %v5203 = vpop.f32.mrb[0].mxu0
          %v5204 = vadd.f32 %v5131, %v5203
          %v5205 = vpop.f32.mrb[0].mxu0
          %v5206 = vadd.f32 %v5133, %v5205
          %v5207 = vpop.f32.mrb[0].mxu0
          %v5208 = vadd.f32 %v5135, %v5207
          %v5209 = vpop.f32.mrb[0].mxu0
          %v5210 = vadd.f32 %v5137, %v5209
          %5211 = vmatprep.mubr.bf16.mxu0 %v2009
          %5212 = vmatmul.mubr.bf16.gmra.mrb[0].mxu0 %v2008
          %v5213 = vpop.f32.mrb[0].mxu0
          %v5214 = vadd.f32 %v5141, %v5213
          %v5215 = vpop.f32.mrb[0].mxu0
          %v5216 = vadd.f32 %v5143, %v5215
          %v5217 = vpop.f32.mrb[0].mxu0
          %v5218 = vadd.f32 %v5145, %v5217
          %v5219 = vpop.f32.mrb[0].mxu0
          %v5220 = vadd.f32 %v5147, %v5219
          %5221 = vmatprep.mubr.bf16.mxu0 %v2013
          %5222 = vmatmul.mubr.bf16.gmra.mrb[0].mxu0 %v2012
          %v5223 = vpop.f32.mrb[0].mxu0
          %v5224 = vadd.f32 %v5151, %v5223
          %v5225 = vpop.f32.mrb[0].mxu0
          %v5226 = vadd.f32 %v5153, %v5225
          %v5227 = vpop.f32.mrb[0].mxu0
          %v5228 = vadd.f32 %v5155, %v5227
          %v5229 = vpop.f32.mrb[0].mxu0
          %v5230 = vadd.f32 %v5157, %v5229
          %5231 = vdwg.mxu0
          %5232 = vmatprep.subr.bf16.mxu0 %v4065
          %5233 = vmatpush1.bf16.msra.mxu0 %v4064
          %5234 = vmatprep.subr.bf16.mxu0 %v4081
          %5235 = vmatpush1.bf16.msra.mxu0 %v4080
          %5236 = vmatprep.subr.bf16.mxu0 %v4097
          %5237 = vmatpush1.bf16.msra.mxu0 %v4096
          %5238 = vmatprep.subr.bf16.mxu0 %v4113
          %5239 = vmatpush1.bf16.msra.mxu0 %v4112
          %5240 = vmatprep.subr.bf16.mxu0 %v4129
          %5241 = vmatpush1.bf16.msra.mxu0 %v4128
          %5242 = vmatprep.subr.bf16.mxu0 %v4145
          %5243 = vmatpush1.bf16.msra.mxu0 %v4144
          %5244 = vmatprep.subr.bf16.mxu0 %v4161
          %5245 = vmatpush1.bf16.msra.mxu0 %v4160
          %5246 = vmatprep.subr.bf16.mxu0 %v4177
          %5247 = vmatpush1.bf16.msra.mxu0 %v4176
          %5248 = vmatprep.subr.bf16.mxu0 %v4193
          %5249 = vmatpush1.bf16.msra.mxu0 %v4192
          %5250 = vmatprep.subr.bf16.mxu0 %v4209
          %5251 = vmatpush1.bf16.msra.mxu0 %v4208
          %5252 = vmatprep.subr.bf16.mxu0 %v4225
          %5253 = vmatpush1.bf16.msra.mxu0 %v4224
          %5254 = vmatprep.subr.bf16.mxu0 %v4241
          %5255 = vmatpush1.bf16.msra.mxu0 %v4240
          %5256 = vmatprep.subr.bf16.mxu0 %v4257
          %5257 = vmatpush1.bf16.msra.mxu0 %v4256
          %5258 = vmatprep.subr.bf16.mxu0 %v4273
          %5259 = vmatpush1.bf16.msra.mxu0 %v4272
          %5260 = vmatprep.subr.bf16.mxu0 %v4289
          %5261 = vmatpush1.bf16.msra.mxu0 %v4288
          %5262 = vmatprep.subr.bf16.mxu0 %v4305
          %5263 = vmatpush1.bf16.msra.mxu0 %v4304
          %5264 = vmatprep.mubr.bf16.mxu0 %v1999
          %5265 = vmatmul.mubr.bf16.gmra.mrb[0].mxu0 %v1998
          %v5266 = vpop.f32.mrb[0].mxu0
          %v5267 = vadd.f32 0.0, %v5266
          %v5268 = vpop.f32.mrb[0].mxu0
          %v5269 = vadd.f32 0.0, %v5268
          %v5270 = vpop.f32.mrb[0].mxu0
          %v5271 = vadd.f32 0.0, %v5270
          %v5272 = vpop.f32.mrb[0].mxu0
          %v5273 = vadd.f32 0.0, %v5272
          %5274 = vmatprep.mubr.bf16.mxu0 %v2003
          %5275 = vmatmul.mubr.bf16.gmra.mrb[0].mxu0 %v2002
          %v5276 = vpop.f32.mrb[0].mxu0
          %v5277 = vadd.f32 0.0, %v5276
          %v5278 = vpop.f32.mrb[0].mxu0
          %v5279 = vadd.f32 0.0, %v5278
          %v5280 = vpop.f32.mrb[0].mxu0
          %v5281 = vadd.f32 0.0, %v5280
          %v5282 = vpop.f32.mrb[0].mxu0
          %v5283 = vadd.f32 0.0, %v5282
          %5284 = vmatprep.mubr.bf16.mxu0 %v2007
          %5285 = vmatmul.mubr.bf16.gmra.mrb[0].mxu0 %v2006
          %v5286 = vpop.f32.mrb[0].mxu0
          %v5287 = vadd.f32 0.0, %v5286
          %v5288 = vpop.f32.mrb[0].mxu0
          %v5289 = vadd.f32 0.0, %v5288
          %v5290 = vpop.f32.mrb[0].mxu0
          %v5291 = vadd.f32 0.0, %v5290
          %v5292 = vpop.f32.mrb[0].mxu0
          %v5293 = vadd.f32 0.0, %v5292
          %5294 = vmatprep.mubr.bf16.mxu0 %v2011
          %5295 = vmatmul.mubr.bf16.gmra.mrb[0].mxu0 %v2010
          %v5296 = vpop.f32.mrb[0].mxu0
          %v5297 = vadd.f32 0.0, %v5296
          %v5298 = vpop.f32.mrb[0].mxu0
          %v5299 = vadd.f32 0.0, %v5298
          %v5300 = vpop.f32.mrb[0].mxu0
          %v5301 = vadd.f32 0.0, %v5300
          %v5302 = vpop.f32.mrb[0].mxu0
          %v5303 = vadd.f32 0.0, %v5302
          %5304 = vdwg.mxu0
          %5305 = vmatprep.subr.bf16.mxu0 %v4321
          %5306 = vmatpush1.bf16.msra.mxu0 %v4320
          %5307 = vmatprep.subr.bf16.mxu0 %v4337
          %5308 = vmatpush1.bf16.msra.mxu0 %v4336
          %5309 = vmatprep.subr.bf16.mxu0 %v4353
          %5310 = vmatpush1.bf16.msra.mxu0 %v4352
          %5311 = vmatprep.subr.bf16.mxu0 %v4369
          %5312 = vmatpush1.bf16.msra.mxu0 %v4368
          %5313 = vmatprep.subr.bf16.mxu0 %v4385
          %5314 = vmatpush1.bf16.msra.mxu0 %v4384
          %5315 = vmatprep.subr.bf16.mxu0 %v4401
          %5316 = vmatpush1.bf16.msra.mxu0 %v4400
          %5317 = vmatprep.subr.bf16.mxu0 %v4417
          %5318 = vmatpush1.bf16.msra.mxu0 %v4416
          %5319 = vmatprep.subr.bf16.mxu0 %v4433
          %5320 = vmatpush1.bf16.msra.mxu0 %v4432
          %5321 = vmatprep.subr.bf16.mxu0 %v4449
          %5322 = vmatpush1.bf16.msra.mxu0 %v4448
          %5323 = vmatprep.subr.bf16.mxu0 %v4465
          %5324 = vmatpush1.bf16.msra.mxu0 %v4464
          %5325 = vmatprep.subr.bf16.mxu0 %v4481
          %5326 = vmatpush1.bf16.msra.mxu0 %v4480
          %5327 = vmatprep.subr.bf16.mxu0 %v4497
          %5328 = vmatpush1.bf16.msra.mxu0 %v4496
          %5329 = vmatprep.subr.bf16.mxu0 %v4513
          %5330 = vmatpush1.bf16.msra.mxu0 %v4512
          %5331 = vmatprep.subr.bf16.mxu0 %v4529
          %5332 = vmatpush1.bf16.msra.mxu0 %v4528
          %5333 = vmatprep.subr.bf16.mxu0 %v4545
          %5334 = vmatpush1.bf16.msra.mxu0 %v4544
          %5335 = vmatprep.subr.bf16.mxu0 %v4561
          %5336 = vmatpush1.bf16.msra.mxu0 %v4560
          %5337 = vmatprep.mubr.bf16.mxu0 %v2001
          %5338 = vmatmul.mubr.bf16.gmra.mrb[0].mxu0 %v2000
          %v5339 = vpop.f32.mrb[0].mxu0
          %v5340 = vadd.f32 %v5267, %v5339
          %v5341 = vpop.f32.mrb[0].mxu0
          %v5342 = vadd.f32 %v5269, %v5341
          %v5343 = vpop.f32.mrb[0].mxu0
          %v5344 = vadd.f32 %v5271, %v5343
          %v5345 = vpop.f32.mrb[0].mxu0
          %v5346 = vadd.f32 %v5273, %v5345
          %5347 = vmatprep.mubr.bf16.mxu0 %v2005
          %5348 = vmatmul.mubr.bf16.gmra.mrb[0].mxu0 %v2004
          %v5349 = vpop.f32.mrb[0].mxu0
          %v5350 = vadd.f32 %v5277, %v5349
          %v5351 = vpop.f32.mrb[0].mxu0
          %v5352 = vadd.f32 %v5279, %v5351
          %v5353 = vpop.f32.mrb[0].mxu0
          %v5354 = vadd.f32 %v5281, %v5353
          %v5355 = vpop.f32.mrb[0].mxu0
          %v5356 = vadd.f32 %v5283, %v5355
          %5357 = vmatprep.mubr.bf16.mxu0 %v2009
          %5358 = vmatmul.mubr.bf16.gmra.mrb[0].mxu0 %v2008
          %v5359 = vpop.f32.mrb[0].mxu0
          %v5360 = vadd.f32 %v5287, %v5359
          %v5361 = vpop.f32.mrb[0].mxu0
          %v5362 = vadd.f32 %v5289, %v5361
          %v5363 = vpop.f32.mrb[0].mxu0
          %v5364 = vadd.f32 %v5291, %v5363
          %v5365 = vpop.f32.mrb[0].mxu0
          %v5366 = vadd.f32 %v5293, %v5365
          %5367 = vmatprep.mubr.bf16.mxu0 %v2013
          %5368 = vmatmul.mubr.bf16.gmra.mrb[0].mxu0 %v2012
          %v5369 = vpop.f32.mrb[0].mxu0
          %v5370 = vadd.f32 %v5297, %v5369
          %v5371 = vpop.f32.mrb[0].mxu0
          %v5372 = vadd.f32 %v5299, %v5371
          %v5373 = vpop.f32.mrb[0].mxu0
          %v5374 = vadd.f32 %v5301, %v5373
          %v5375 = vpop.f32.mrb[0].mxu0
          %v5376 = vadd.f32 %v5303, %v5375
          %5377 = vdwg.mxu0
          %5378 = vmatprep.subr.bf16.mxu0 %v4067
          %5379 = vmatpush1.bf16.msra.mxu0 %v4066
          %5380 = vmatprep.subr.bf16.mxu0 %v4083
          %5381 = vmatpush1.bf16.msra.mxu0 %v4082
          %5382 = vmatprep.subr.bf16.mxu0 %v4099
          %5383 = vmatpush1.bf16.msra.mxu0 %v4098
          %5384 = vmatprep.subr.bf16.mxu0 %v4115
          %5385 = vmatpush1.bf16.msra.mxu0 %v4114
          %5386 = vmatprep.subr.bf16.mxu0 %v4131
          %5387 = vmatpush1.bf16.msra.mxu0 %v4130
          %5388 = vmatprep.subr.bf16.mxu0 %v4147
          %5389 = vmatpush1.bf16.msra.mxu0 %v4146
          %5390 = vmatprep.subr.bf16.mxu0 %v4163
          %5391 = vmatpush1.bf16.msra.mxu0 %v4162
          %5392 = vmatprep.subr.bf16.mxu0 %v4179
          %5393 = vmatpush1.bf16.msra.mxu0 %v4178
          %5394 = vmatprep.subr.bf16.mxu0 %v4195
          %5395 = vmatpush1.bf16.msra.mxu0 %v4194
          %5396 = vmatprep.subr.bf16.mxu0 %v4211
          %5397 = vmatpush1.bf16.msra.mxu0 %v4210
          %5398 = vmatprep.subr.bf16.mxu0 %v4227
          %5399 = vmatpush1.bf16.msra.mxu0 %v4226
          %5400 = vmatprep.subr.bf16.mxu0 %v4243
          %5401 = vmatpush1.bf16.msra.mxu0 %v4242
          %5402 = vmatprep.subr.bf16.mxu0 %v4259
          %5403 = vmatpush1.bf16.msra.mxu0 %v4258
          %5404 = vmatprep.subr.bf16.mxu0 %v4275
          %5405 = vmatpush1.bf16.msra.mxu0 %v4274
          %5406 = vmatprep.subr.bf16.mxu0 %v4291
          %5407 = vmatpush1.bf16.msra.mxu0 %v4290
          %5408 = vmatprep.subr.bf16.mxu0 %v4307
          %5409 = vmatpush1.bf16.msra.mxu0 %v4306
          %5410 = vmatprep.mubr.bf16.mxu0 %v1999
          %5411 = vmatmul.mubr.bf16.gmra.mrb[0].mxu0 %v1998
          %v5412 = vpop.f32.mrb[0].mxu0
          %v5413 = vadd.f32 0.0, %v5412
          %v5414 = vpop.f32.mrb[0].mxu0
          %v5415 = vadd.f32 0.0, %v5414
          %v5416 = vpop.f32.mrb[0].mxu0
          %v5417 = vadd.f32 0.0, %v5416
          %v5418 = vpop.f32.mrb[0].mxu0
          %v5419 = vadd.f32 0.0, %v5418
          %5420 = vmatprep.mubr.bf16.mxu0 %v2003
          %5421 = vmatmul.mubr.bf16.gmra.mrb[0].mxu0 %v2002
          %v5422 = vpop.f32.mrb[0].mxu0
          %v5423 = vadd.f32 0.0, %v5422
          %v5424 = vpop.f32.mrb[0].mxu0
          %v5425 = vadd.f32 0.0, %v5424
          %v5426 = vpop.f32.mrb[0].mxu0
          %v5427 = vadd.f32 0.0, %v5426
          %v5428 = vpop.f32.mrb[0].mxu0
          %v5429 = vadd.f32 0.0, %v5428
          %5430 = vmatprep.mubr.bf16.mxu0 %v2007
          %5431 = vmatmul.mubr.bf16.gmra.mrb[0].mxu0 %v2006
          %v5432 = vpop.f32.mrb[0].mxu0
          %v5433 = vadd.f32 0.0, %v5432
          %v5434 = vpop.f32.mrb[0].mxu0
          %v5435 = vadd.f32 0.0, %v5434
          %v5436 = vpop.f32.mrb[0].mxu0
          %v5437 = vadd.f32 0.0, %v5436
          %v5438 = vpop.f32.mrb[0].mxu0
          %v5439 = vadd.f32 0.0, %v5438
          %5440 = vmatprep.mubr.bf16.mxu0 %v2011
          %5441 = vmatmul.mubr.bf16.gmra.mrb[0].mxu0 %v2010
          %v5442 = vpop.f32.mrb[0].mxu0
          %v5443 = vadd.f32 0.0, %v5442
          %v5444 = vpop.f32.mrb[0].mxu0
          %v5445 = vadd.f32 0.0, %v5444
          %v5446 = vpop.f32.mrb[0].mxu0
          %v5447 = vadd.f32 0.0, %v5446
          %v5448 = vpop.f32.mrb[0].mxu0
          %v5449 = vadd.f32 0.0, %v5448
          %5450 = vdwg.mxu0
          %5451 = vmatprep.subr.bf16.mxu0 %v4323
          %5452 = vmatpush1.bf16.msra.mxu0 %v4322
          %5453 = vmatprep.subr.bf16.mxu0 %v4339
          %5454 = vmatpush1.bf16.msra.mxu0 %v4338
          %5455 = vmatprep.subr.bf16.mxu0 %v4355
          %5456 = vmatpush1.bf16.msra.mxu0 %v4354
          %5457 = vmatprep.subr.bf16.mxu0 %v4371
          %5458 = vmatpush1.bf16.msra.mxu0 %v4370
          %5459 = vmatprep.subr.bf16.mxu0 %v4387
          %5460 = vmatpush1.bf16.msra.mxu0 %v4386
          %5461 = vmatprep.subr.bf16.mxu0 %v4403
          %5462 = vmatpush1.bf16.msra.mxu0 %v4402
          %5463 = vmatprep.subr.bf16.mxu0 %v4419
          %5464 = vmatpush1.bf16.msra.mxu0 %v4418
          %5465 = vmatprep.subr.bf16.mxu0 %v4435
          %5466 = vmatpush1.bf16.msra.mxu0 %v4434
          %5467 = vmatprep.subr.bf16.mxu0 %v4451
          %5468 = vmatpush1.bf16.msra.mxu0 %v4450
          %5469 = vmatprep.subr.bf16.mxu0 %v4467
          %5470 = vmatpush1.bf16.msra.mxu0 %v4466
          %5471 = vmatprep.subr.bf16.mxu0 %v4483
          %5472 = vmatpush1.bf16.msra.mxu0 %v4482
          %5473 = vmatprep.subr.bf16.mxu0 %v4499
          %5474 = vmatpush1.bf16.msra.mxu0 %v4498
          %5475 = vmatprep.subr.bf16.mxu0 %v4515
          %5476 = vmatpush1.bf16.msra.mxu0 %v4514
          %5477 = vmatprep.subr.bf16.mxu0 %v4531
          %5478 = vmatpush1.bf16.msra.mxu0 %v4530
          %5479 = vmatprep.subr.bf16.mxu0 %v4547
          %5480 = vmatpush1.bf16.msra.mxu0 %v4546
          %5481 = vmatprep.subr.bf16.mxu0 %v4563
          %5482 = vmatpush1.bf16.msra.mxu0 %v4562
          %5483 = vmatprep.mubr.bf16.mxu0 %v2001
          %5484 = vmatmul.mubr.bf16.gmra.mrb[0].mxu0 %v2000
          %v5485 = vpop.f32.mrb[0].mxu0
          %v5486 = vadd.f32 %v5413, %v5485
          %v5487 = vpop.f32.mrb[0].mxu0
          %v5488 = vadd.f32 %v5415, %v5487
          %v5489 = vpop.f32.mrb[0].mxu0
          %v5490 = vadd.f32 %v5417, %v5489
          %v5491 = vpop.f32.mrb[0].mxu0
          %v5492 = vadd.f32 %v5419, %v5491
          %5493 = vmatprep.mubr.bf16.mxu0 %v2005
          %5494 = vmatmul.mubr.bf16.gmra.mrb[0].mxu0 %v2004
          %v5495 = vpop.f32.mrb[0].mxu0
          %v5496 = vadd.f32 %v5423, %v5495
          %v5497 = vpop.f32.mrb[0].mxu0
          %v5498 = vadd.f32 %v5425, %v5497
          %v5499 = vpop.f32.mrb[0].mxu0
          %v5500 = vadd.f32 %v5427, %v5499
          %v5501 = vpop.f32.mrb[0].mxu0
          %v5502 = vadd.f32 %v5429, %v5501
          %5503 = vmatprep.mubr.bf16.mxu0 %v2009
          %5504 = vmatmul.mubr.bf16.gmra.mrb[0].mxu0 %v2008
          %v5505 = vpop.f32.mrb[0].mxu0
          %v5506 = vadd.f32 %v5433, %v5505
          %v5507 = vpop.f32.mrb[0].mxu0
          %v5508 = vadd.f32 %v5435, %v5507
          %v5509 = vpop.f32.mrb[0].mxu0
          %v5510 = vadd.f32 %v5437, %v5509
          %v5511 = vpop.f32.mrb[0].mxu0
          %v5512 = vadd.f32 %v5439, %v5511
          %5513 = vmatprep.mubr.bf16.mxu0 %v2013
          %5514 = vmatmul.mubr.bf16.gmra.mrb[0].mxu0 %v2012
          %v5515 = vpop.f32.mrb[0].mxu0
          %v5516 = vadd.f32 %v5443, %v5515
          %v5517 = vpop.f32.mrb[0].mxu0
          %v5518 = vadd.f32 %v5445, %v5517
          %v5519 = vpop.f32.mrb[0].mxu0
          %v5520 = vadd.f32 %v5447, %v5519
          %v5521 = vpop.f32.mrb[0].mxu0
          %v5522 = vadd.f32 %v5449, %v5521
          %5523 = vdwg.mxu0
          %5524 = vmatprep.subr.bf16.mxu0 %v4069
          %5525 = vmatpush1.bf16.msra.mxu0 %v4068
          %5526 = vmatprep.subr.bf16.mxu0 %v4085
          %5527 = vmatpush1.bf16.msra.mxu0 %v4084
          %5528 = vmatprep.subr.bf16.mxu0 %v4101
          %5529 = vmatpush1.bf16.msra.mxu0 %v4100
          %5530 = vmatprep.subr.bf16.mxu0 %v4117
          %5531 = vmatpush1.bf16.msra.mxu0 %v4116
          %5532 = vmatprep.subr.bf16.mxu0 %v4133
          %5533 = vmatpush1.bf16.msra.mxu0 %v4132
          %5534 = vmatprep.subr.bf16.mxu0 %v4149
          %5535 = vmatpush1.bf16.msra.mxu0 %v4148
          %5536 = vmatprep.subr.bf16.mxu0 %v4165
          %5537 = vmatpush1.bf16.msra.mxu0 %v4164
          %5538 = vmatprep.subr.bf16.mxu0 %v4181
          %5539 = vmatpush1.bf16.msra.mxu0 %v4180
          %5540 = vmatprep.subr.bf16.mxu0 %v4197
          %5541 = vmatpush1.bf16.msra.mxu0 %v4196
          %5542 = vmatprep.subr.bf16.mxu0 %v4213
          %5543 = vmatpush1.bf16.msra.mxu0 %v4212
          %5544 = vmatprep.subr.bf16.mxu0 %v4229
          %5545 = vmatpush1.bf16.msra.mxu0 %v4228
          %5546 = vmatprep.subr.bf16.mxu0 %v4245
          %5547 = vmatpush1.bf16.msra.mxu0 %v4244
          %5548 = vmatprep.subr.bf16.mxu0 %v4261
          %5549 = vmatpush1.bf16.msra.mxu0 %v4260
          %5550 = vmatprep.subr.bf16.mxu0 %v4277
          %5551 = vmatpush1.bf16.msra.mxu0 %v4276
          %5552 = vmatprep.subr.bf16.mxu0 %v4293
          %5553 = vmatpush1.bf16.msra.mxu0 %v4292
          %5554 = vmatprep.subr.bf16.mxu0 %v4309
          %5555 = vmatpush1.bf16.msra.mxu0 %v4308
          %5556 = vmatprep.mubr.bf16.mxu0 %v1999
          %5557 = vmatmul.mubr.bf16.gmra.mrb[0].mxu0 %v1998
          %v5558 = vpop.f32.mrb[0].mxu0
          %v5559 = vadd.f32 0.0, %v5558
          %v5560 = vpop.f32.mrb[0].mxu0
          %v5561 = vadd.f32 0.0, %v5560
          %v5562 = vpop.f32.mrb[0].mxu0
          %v5563 = vadd.f32 0.0, %v5562
          %v5564 = vpop.f32.mrb[0].mxu0
          %v5565 = vadd.f32 0.0, %v5564
          %5566 = vmatprep.mubr.bf16.mxu0 %v2003
          %5567 = vmatmul.mubr.bf16.gmra.mrb[0].mxu0 %v2002
          %v5568 = vpop.f32.mrb[0].mxu0
          %v5569 = vadd.f32 0.0, %v5568
          %v5570 = vpop.f32.mrb[0].mxu0
          %v5571 = vadd.f32 0.0, %v5570
          %v5572 = vpop.f32.mrb[0].mxu0
          %v5573 = vadd.f32 0.0, %v5572
          %v5574 = vpop.f32.mrb[0].mxu0
          %v5575 = vadd.f32 0.0, %v5574
          %5576 = vmatprep.mubr.bf16.mxu0 %v2007
          %5577 = vmatmul.mubr.bf16.gmra.mrb[0].mxu0 %v2006
          %v5578 = vpop.f32.mrb[0].mxu0
          %v5579 = vadd.f32 0.0, %v5578
          %v5580 = vpop.f32.mrb[0].mxu0
          %v5581 = vadd.f32 0.0, %v5580
          %v5582 = vpop.f32.mrb[0].mxu0
          %v5583 = vadd.f32 0.0, %v5582
          %v5584 = vpop.f32.mrb[0].mxu0
          %v5585 = vadd.f32 0.0, %v5584
          %5586 = vmatprep.mubr.bf16.mxu0 %v2011
          %5587 = vmatmul.mubr.bf16.gmra.mrb[0].mxu0 %v2010
          %v5588 = vpop.f32.mrb[0].mxu0
          %v5589 = vadd.f32 0.0, %v5588
          %v5590 = vpop.f32.mrb[0].mxu0
          %v5591 = vadd.f32 0.0, %v5590
          %v5592 = vpop.f32.mrb[0].mxu0
          %v5593 = vadd.f32 0.0, %v5592
          %v5594 = vpop.f32.mrb[0].mxu0
          %v5595 = vadd.f32 0.0, %v5594
          %5596 = vdwg.mxu0
          %5597 = vmatprep.subr.bf16.mxu0 %v4325
          %5598 = vmatpush1.bf16.msra.mxu0 %v4324
          %5599 = vmatprep.subr.bf16.mxu0 %v4341
          %5600 = vmatpush1.bf16.msra.mxu0 %v4340
          %5601 = vmatprep.subr.bf16.mxu0 %v4357
          %5602 = vmatpush1.bf16.msra.mxu0 %v4356
          %5603 = vmatprep.subr.bf16.mxu0 %v4373
          %5604 = vmatpush1.bf16.msra.mxu0 %v4372
          %5605 = vmatprep.subr.bf16.mxu0 %v4389
          %5606 = vmatpush1.bf16.msra.mxu0 %v4388
          %5607 = vmatprep.subr.bf16.mxu0 %v4405
          %5608 = vmatpush1.bf16.msra.mxu0 %v4404
          %5609 = vmatprep.subr.bf16.mxu0 %v4421
          %5610 = vmatpush1.bf16.msra.mxu0 %v4420
          %5611 = vmatprep.subr.bf16.mxu0 %v4437
          %5612 = vmatpush1.bf16.msra.mxu0 %v4436
          %5613 = vmatprep.subr.bf16.mxu0 %v4453
          %5614 = vmatpush1.bf16.msra.mxu0 %v4452
          %5615 = vmatprep.subr.bf16.mxu0 %v4469
          %5616 = vmatpush1.bf16.msra.mxu0 %v4468
          %5617 = vmatprep.subr.bf16.mxu0 %v4485
          %5618 = vmatpush1.bf16.msra.mxu0 %v4484
          %5619 = vmatprep.subr.bf16.mxu0 %v4501
          %5620 = vmatpush1.bf16.msra.mxu0 %v4500
          %5621 = vmatprep.subr.bf16.mxu0 %v4517
          %5622 = vmatpush1.bf16.msra.mxu0 %v4516
          %5623 = vmatprep.subr.bf16.mxu0 %v4533
          %5624 = vmatpush1.bf16.msra.mxu0 %v4532
          %5625 = vmatprep.subr.bf16.mxu0 %v4549
          %5626 = vmatpush1.bf16.msra.mxu0 %v4548
          %5627 = vmatprep.subr.bf16.mxu0 %v4565
          %5628 = vmatpush1.bf16.msra.mxu0 %v4564
          %5629 = vmatprep.mubr.bf16.mxu0 %v2001
          %5630 = vmatmul.mubr.bf16.gmra.mrb[0].mxu0 %v2000
          %v5631 = vpop.f32.mrb[0].mxu0
          %v5632 = vadd.f32 %v5559, %v5631
          %v5633 = vpop.f32.mrb[0].mxu0
          %v5634 = vadd.f32 %v5561, %v5633
          %v5635 = vpop.f32.mrb[0].mxu0
          %v5636 = vadd.f32 %v5563, %v5635
          %v5637 = vpop.f32.mrb[0].mxu0
          %v5638 = vadd.f32 %v5565, %v5637
          %5639 = vmatprep.mubr.bf16.mxu0 %v2005
          %5640 = vmatmul.mubr.bf16.gmra.mrb[0].mxu0 %v2004
          %v5641 = vpop.f32.mrb[0].mxu0
          %v5642 = vadd.f32 %v5569, %v5641
          %v5643 = vpop.f32.mrb[0].mxu0
          %v5644 = vadd.f32 %v5571, %v5643
          %v5645 = vpop.f32.mrb[0].mxu0
          %v5646 = vadd.f32 %v5573, %v5645
          %v5647 = vpop.f32.mrb[0].mxu0
          %v5648 = vadd.f32 %v5575, %v5647
          %5649 = vmatprep.mubr.bf16.mxu0 %v2009
          %5650 = vmatmul.mubr.bf16.gmra.mrb[0].mxu0 %v2008
          %v5651 = vpop.f32.mrb[0].mxu0
          %v5652 = vadd.f32 %v5579, %v5651
          %v5653 = vpop.f32.mrb[0].mxu0
          %v5654 = vadd.f32 %v5581, %v5653
          %v5655 = vpop.f32.mrb[0].mxu0
          %v5656 = vadd.f32 %v5583, %v5655
          %v5657 = vpop.f32.mrb[0].mxu0
          %v5658 = vadd.f32 %v5585, %v5657
          %5659 = vmatprep.mubr.bf16.mxu0 %v2013
          %5660 = vmatmul.mubr.bf16.gmra.mrb[0].mxu0 %v2012
          %v5661 = vpop.f32.mrb[0].mxu0
          %v5662 = vadd.f32 %v5589, %v5661
          %v5663 = vpop.f32.mrb[0].mxu0
          %v5664 = vadd.f32 %v5591, %v5663
          %v5665 = vpop.f32.mrb[0].mxu0
          %v5666 = vadd.f32 %v5593, %v5665
          %v5667 = vpop.f32.mrb[0].mxu0
          %v5668 = vadd.f32 %v5595, %v5667
          %5669 = vdwg.mxu0
          %5670 = vmatprep.subr.bf16.mxu0 %v4071
          %5671 = vmatpush1.bf16.msra.mxu0 %v4070
          %5672 = vmatprep.subr.bf16.mxu0 %v4087
          %5673 = vmatpush1.bf16.msra.mxu0 %v4086
          %5674 = vmatprep.subr.bf16.mxu0 %v4103
          %5675 = vmatpush1.bf16.msra.mxu0 %v4102
          %5676 = vmatprep.subr.bf16.mxu0 %v4119
          %5677 = vmatpush1.bf16.msra.mxu0 %v4118
          %5678 = vmatprep.subr.bf16.mxu0 %v4135
          %5679 = vmatpush1.bf16.msra.mxu0 %v4134
          %5680 = vmatprep.subr.bf16.mxu0 %v4151
          %5681 = vmatpush1.bf16.msra.mxu0 %v4150
          %5682 = vmatprep.subr.bf16.mxu0 %v4167
          %5683 = vmatpush1.bf16.msra.mxu0 %v4166
          %5684 = vmatprep.subr.bf16.mxu0 %v4183
          %5685 = vmatpush1.bf16.msra.mxu0 %v4182
          %5686 = vmatprep.subr.bf16.mxu0 %v4199
          %5687 = vmatpush1.bf16.msra.mxu0 %v4198
          %5688 = vmatprep.subr.bf16.mxu0 %v4215
          %5689 = vmatpush1.bf16.msra.mxu0 %v4214
          %5690 = vmatprep.subr.bf16.mxu0 %v4231
          %5691 = vmatpush1.bf16.msra.mxu0 %v4230
          %5692 = vmatprep.subr.bf16.mxu0 %v4247
          %5693 = vmatpush1.bf16.msra.mxu0 %v4246
          %5694 = vmatprep.subr.bf16.mxu0 %v4263
          %5695 = vmatpush1.bf16.msra.mxu0 %v4262
          %5696 = vmatprep.subr.bf16.mxu0 %v4279
          %5697 = vmatpush1.bf16.msra.mxu0 %v4278
          %5698 = vmatprep.subr.bf16.mxu0 %v4295
          %5699 = vmatpush1.bf16.msra.mxu0 %v4294
          %5700 = vmatprep.subr.bf16.mxu0 %v4311
          %5701 = vmatpush1.bf16.msra.mxu0 %v4310
          %5702 = vmatprep.mubr.bf16.mxu0 %v1999
          %5703 = vmatmul.mubr.bf16.gmra.mrb[0].mxu0 %v1998
          %v5704 = vpop.f32.mrb[0].mxu0
          %v5705 = vadd.f32 0.0, %v5704
          %v5706 = vpop.f32.mrb[0].mxu0
          %v5707 = vadd.f32 0.0, %v5706
          %v5708 = vpop.f32.mrb[0].mxu0
          %v5709 = vadd.f32 0.0, %v5708
          %v5710 = vpop.f32.mrb[0].mxu0
          %v5711 = vadd.f32 0.0, %v5710
          %5712 = vmatprep.mubr.bf16.mxu0 %v2003
          %5713 = vmatmul.mubr.bf16.gmra.mrb[0].mxu0 %v2002
          %v5714 = vpop.f32.mrb[0].mxu0
          %v5715 = vadd.f32 0.0, %v5714
          %v5716 = vpop.f32.mrb[0].mxu0
          %v5717 = vadd.f32 0.0, %v5716
          %v5718 = vpop.f32.mrb[0].mxu0
          %v5719 = vadd.f32 0.0, %v5718
          %v5720 = vpop.f32.mrb[0].mxu0
          %v5721 = vadd.f32 0.0, %v5720
          %5722 = vmatprep.mubr.bf16.mxu0 %v2007
          %5723 = vmatmul.mubr.bf16.gmra.mrb[0].mxu0 %v2006
          %v5724 = vpop.f32.mrb[0].mxu0
          %v5725 = vadd.f32 0.0, %v5724
          %v5726 = vpop.f32.mrb[0].mxu0
          %v5727 = vadd.f32 0.0, %v5726
          %v5728 = vpop.f32.mrb[0].mxu0
          %v5729 = vadd.f32 0.0, %v5728
          %v5730 = vpop.f32.mrb[0].mxu0
          %v5731 = vadd.f32 0.0, %v5730
          %5732 = vmatprep.mubr.bf16.mxu0 %v2011
          %5733 = vmatmul.mubr.bf16.gmra.mrb[0].mxu0 %v2010
          %v5734 = vpop.f32.mrb[0].mxu0
          %v5735 = vadd.f32 0.0, %v5734
          %v5736 = vpop.f32.mrb[0].mxu0
          %v5737 = vadd.f32 0.0, %v5736
          %v5738 = vpop.f32.mrb[0].mxu0
          %v5739 = vadd.f32 0.0, %v5738
          %v5740 = vpop.f32.mrb[0].mxu0
          %v5741 = vadd.f32 0.0, %v5740
          %5742 = vdwg.mxu0
          %5743 = vmatprep.subr.bf16.mxu0 %v4327
          %5744 = vmatpush1.bf16.msra.mxu0 %v4326
          %5745 = vmatprep.subr.bf16.mxu0 %v4343
          %5746 = vmatpush1.bf16.msra.mxu0 %v4342
          %5747 = vmatprep.subr.bf16.mxu0 %v4359
          %5748 = vmatpush1.bf16.msra.mxu0 %v4358
          %5749 = vmatprep.subr.bf16.mxu0 %v4375
          %5750 = vmatpush1.bf16.msra.mxu0 %v4374
          %5751 = vmatprep.subr.bf16.mxu0 %v4391
          %5752 = vmatpush1.bf16.msra.mxu0 %v4390
          %5753 = vmatprep.subr.bf16.mxu0 %v4407
          %5754 = vmatpush1.bf16.msra.mxu0 %v4406
          %5755 = vmatprep.subr.bf16.mxu0 %v4423
          %5756 = vmatpush1.bf16.msra.mxu0 %v4422
          %5757 = vmatprep.subr.bf16.mxu0 %v4439
          %5758 = vmatpush1.bf16.msra.mxu0 %v4438
          %5759 = vmatprep.subr.bf16.mxu0 %v4455
          %5760 = vmatpush1.bf16.msra.mxu0 %v4454
          %5761 = vmatprep.subr.bf16.mxu0 %v4471
          %5762 = vmatpush1.bf16.msra.mxu0 %v4470
          %5763 = vmatprep.subr.bf16.mxu0 %v4487
          %5764 = vmatpush1.bf16.msra.mxu0 %v4486
          %5765 = vmatprep.subr.bf16.mxu0 %v4503
          %5766 = vmatpush1.bf16.msra.mxu0 %v4502
          %5767 = vmatprep.subr.bf16.mxu0 %v4519
          %5768 = vmatpush1.bf16.msra.mxu0 %v4518
          %5769 = vmatprep.subr.bf16.mxu0 %v4535
          %5770 = vmatpush1.bf16.msra.mxu0 %v4534
          %5771 = vmatprep.subr.bf16.mxu0 %v4551
          %5772 = vmatpush1.bf16.msra.mxu0 %v4550
          %5773 = vmatprep.subr.bf16.mxu0 %v4567
          %5774 = vmatpush1.bf16.msra.mxu0 %v4566
          %5775 = vmatprep.mubr.bf16.mxu0 %v2001
          %5776 = vmatmul.mubr.bf16.gmra.mrb[0].mxu0 %v2000
          %v5777 = vpop.f32.mrb[0].mxu0
          %v5778 = vadd.f32 %v5705, %v5777
          %v5779 = vpop.f32.mrb[0].mxu0
          %v5780 = vadd.f32 %v5707, %v5779
          %v5781 = vpop.f32.mrb[0].mxu0
          %v5782 = vadd.f32 %v5709, %v5781
          %v5783 = vpop.f32.mrb[0].mxu0
          %v5784 = vadd.f32 %v5711, %v5783
          %5785 = vmatprep.mubr.bf16.mxu0 %v2005
          %5786 = vmatmul.mubr.bf16.gmra.mrb[0].mxu0 %v2004
          %v5787 = vpop.f32.mrb[0].mxu0
          %v5788 = vadd.f32 %v5715, %v5787
          %v5789 = vpop.f32.mrb[0].mxu0
          %v5790 = vadd.f32 %v5717, %v5789
          %v5791 = vpop.f32.mrb[0].mxu0
          %v5792 = vadd.f32 %v5719, %v5791
          %v5793 = vpop.f32.mrb[0].mxu0
          %v5794 = vadd.f32 %v5721, %v5793
          %5795 = vmatprep.mubr.bf16.mxu0 %v2009
          %5796 = vmatmul.mubr.bf16.gmra.mrb[0].mxu0 %v2008
          %v5797 = vpop.f32.mrb[0].mxu0
          %v5798 = vadd.f32 %v5725, %v5797
          %v5799 = vpop.f32.mrb[0].mxu0
          %v5800 = vadd.f32 %v5727, %v5799
          %v5801 = vpop.f32.mrb[0].mxu0
          %v5802 = vadd.f32 %v5729, %v5801
          %v5803 = vpop.f32.mrb[0].mxu0
          %v5804 = vadd.f32 %v5731, %v5803
          %5805 = vmatprep.mubr.bf16.mxu0 %v2013
          %5806 = vmatmul.mubr.bf16.gmra.mrb[0].mxu0 %v2012
          %v5807 = vpop.f32.mrb[0].mxu0
          %v5808 = vadd.f32 %v5735, %v5807
          %v5809 = vpop.f32.mrb[0].mxu0
          %v5810 = vadd.f32 %v5737, %v5809
          %v5811 = vpop.f32.mrb[0].mxu0
          %v5812 = vadd.f32 %v5739, %v5811
          %v5813 = vpop.f32.mrb[0].mxu0
          %v5814 = vadd.f32 %v5741, %v5813
          %5815 = vdwg.mxu0
          %5816 = vmatprep.subr.bf16.mxu0 %v4073
          %5817 = vmatpush1.bf16.msra.mxu0 %v4072
          %5818 = vmatprep.subr.bf16.mxu0 %v4089
          %5819 = vmatpush1.bf16.msra.mxu0 %v4088
          %5820 = vmatprep.subr.bf16.mxu0 %v4105
          %5821 = vmatpush1.bf16.msra.mxu0 %v4104
          %5822 = vmatprep.subr.bf16.mxu0 %v4121
          %5823 = vmatpush1.bf16.msra.mxu0 %v4120
          %5824 = vmatprep.subr.bf16.mxu0 %v4137
          %5825 = vmatpush1.bf16.msra.mxu0 %v4136
          %5826 = vmatprep.subr.bf16.mxu0 %v4153
          %5827 = vmatpush1.bf16.msra.mxu0 %v4152
          %5828 = vmatprep.subr.bf16.mxu0 %v4169
          %5829 = vmatpush1.bf16.msra.mxu0 %v4168
          %5830 = vmatprep.subr.bf16.mxu0 %v4185
          %5831 = vmatpush1.bf16.msra.mxu0 %v4184
          %5832 = vmatprep.subr.bf16.mxu0 %v4201
          %5833 = vmatpush1.bf16.msra.mxu0 %v4200
          %5834 = vmatprep.subr.bf16.mxu0 %v4217
          %5835 = vmatpush1.bf16.msra.mxu0 %v4216
          %5836 = vmatprep.subr.bf16.mxu0 %v4233
          %5837 = vmatpush1.bf16.msra.mxu0 %v4232
          %5838 = vmatprep.subr.bf16.mxu0 %v4249
          %5839 = vmatpush1.bf16.msra.mxu0 %v4248
          %5840 = vmatprep.subr.bf16.mxu0 %v4265
          %5841 = vmatpush1.bf16.msra.mxu0 %v4264
          %5842 = vmatprep.subr.bf16.mxu0 %v4281
          %5843 = vmatpush1.bf16.msra.mxu0 %v4280
          %5844 = vmatprep.subr.bf16.mxu0 %v4297
          %5845 = vmatpush1.bf16.msra.mxu0 %v4296
          %5846 = vmatprep.subr.bf16.mxu0 %v4313
          %5847 = vmatpush1.bf16.msra.mxu0 %v4312
          %5848 = vmatprep.mubr.bf16.mxu0 %v1999
          %5849 = vmatmul.mubr.bf16.gmra.mrb[0].mxu0 %v1998
          %v5850 = vpop.f32.mrb[0].mxu0
          %v5851 = vadd.f32 0.0, %v5850
          %v5852 = vpop.f32.mrb[0].mxu0
          %v5853 = vadd.f32 0.0, %v5852
          %v5854 = vpop.f32.mrb[0].mxu0
          %v5855 = vadd.f32 0.0, %v5854
          %v5856 = vpop.f32.mrb[0].mxu0
          %v5857 = vadd.f32 0.0, %v5856
          %5858 = vmatprep.mubr.bf16.mxu0 %v2003
          %5859 = vmatmul.mubr.bf16.gmra.mrb[0].mxu0 %v2002
          %v5860 = vpop.f32.mrb[0].mxu0
          %v5861 = vadd.f32 0.0, %v5860
          %v5862 = vpop.f32.mrb[0].mxu0
          %v5863 = vadd.f32 0.0, %v5862
          %v5864 = vpop.f32.mrb[0].mxu0
          %v5865 = vadd.f32 0.0, %v5864
          %v5866 = vpop.f32.mrb[0].mxu0
          %v5867 = vadd.f32 0.0, %v5866
          %5868 = vmatprep.mubr.bf16.mxu0 %v2007
          %5869 = vmatmul.mubr.bf16.gmra.mrb[0].mxu0 %v2006
          %v5870 = vpop.f32.mrb[0].mxu0
          %v5871 = vadd.f32 0.0, %v5870
          %v5872 = vpop.f32.mrb[0].mxu0
          %v5873 = vadd.f32 0.0, %v5872
          %v5874 = vpop.f32.mrb[0].mxu0
          %v5875 = vadd.f32 0.0, %v5874
          %v5876 = vpop.f32.mrb[0].mxu0
          %v5877 = vadd.f32 0.0, %v5876
          %5878 = vmatprep.mubr.bf16.mxu0 %v2011
          %5879 = vmatmul.mubr.bf16.gmra.mrb[0].mxu0 %v2010
          %v5880 = vpop.f32.mrb[0].mxu0
          %v5881 = vadd.f32 0.0, %v5880
          %v5882 = vpop.f32.mrb[0].mxu0
          %v5883 = vadd.f32 0.0, %v5882
          %v5884 = vpop.f32.mrb[0].mxu0
          %v5885 = vadd.f32 0.0, %v5884
          %v5886 = vpop.f32.mrb[0].mxu0
          %v5887 = vadd.f32 0.0, %v5886
          %5888 = vdwg.mxu0
          %5889 = vmatprep.subr.bf16.mxu0 %v4329
          %5890 = vmatpush1.bf16.msra.mxu0 %v4328
          %5891 = vmatprep.subr.bf16.mxu0 %v4345
          %5892 = vmatpush1.bf16.msra.mxu0 %v4344
          %5893 = vmatprep.subr.bf16.mxu0 %v4361
          %5894 = vmatpush1.bf16.msra.mxu0 %v4360
          %5895 = vmatprep.subr.bf16.mxu0 %v4377
          %5896 = vmatpush1.bf16.msra.mxu0 %v4376
          %5897 = vmatprep.subr.bf16.mxu0 %v4393
          %5898 = vmatpush1.bf16.msra.mxu0 %v4392
          %5899 = vmatprep.subr.bf16.mxu0 %v4409
          %5900 = vmatpush1.bf16.msra.mxu0 %v4408
          %5901 = vmatprep.subr.bf16.mxu0 %v4425
          %5902 = vmatpush1.bf16.msra.mxu0 %v4424
          %5903 = vmatprep.subr.bf16.mxu0 %v4441
          %5904 = vmatpush1.bf16.msra.mxu0 %v4440
          %5905 = vmatprep.subr.bf16.mxu0 %v4457
          %5906 = vmatpush1.bf16.msra.mxu0 %v4456
          %5907 = vmatprep.subr.bf16.mxu0 %v4473
          %5908 = vmatpush1.bf16.msra.mxu0 %v4472
          %5909 = vmatprep.subr.bf16.mxu0 %v4489
          %5910 = vmatpush1.bf16.msra.mxu0 %v4488
          %5911 = vmatprep.subr.bf16.mxu0 %v4505
          %5912 = vmatpush1.bf16.msra.mxu0 %v4504
          %5913 = vmatprep.subr.bf16.mxu0 %v4521
          %5914 = vmatpush1.bf16.msra.mxu0 %v4520
          %5915 = vmatprep.subr.bf16.mxu0 %v4537
          %5916 = vmatpush1.bf16.msra.mxu0 %v4536
          %5917 = vmatprep.subr.bf16.mxu0 %v4553
          %5918 = vmatpush1.bf16.msra.mxu0 %v4552
          %5919 = vmatprep.subr.bf16.mxu0 %v4569
          %5920 = vmatpush1.bf16.msra.mxu0 %v4568
          %5921 = vmatprep.mubr.bf16.mxu0 %v2001
          %5922 = vmatmul.mubr.bf16.gmra.mrb[0].mxu0 %v2000
          %v5923 = vpop.f32.mrb[0].mxu0
          %v5924 = vadd.f32 %v5851, %v5923
          %v5925 = vpop.f32.mrb[0].mxu0
          %v5926 = vadd.f32 %v5853, %v5925
          %v5927 = vpop.f32.mrb[0].mxu0
          %v5928 = vadd.f32 %v5855, %v5927
          %v5929 = vpop.f32.mrb[0].mxu0
          %v5930 = vadd.f32 %v5857, %v5929
          %5931 = vmatprep.mubr.bf16.mxu0 %v2005
          %5932 = vmatmul.mubr.bf16.gmra.mrb[0].mxu0 %v2004
          %v5933 = vpop.f32.mrb[0].mxu0
          %v5934 = vadd.f32 %v5861, %v5933
          %v5935 = vpop.f32.mrb[0].mxu0
          %v5936 = vadd.f32 %v5863, %v5935
          %v5937 = vpop.f32.mrb[0].mxu0
          %v5938 = vadd.f32 %v5865, %v5937
          %v5939 = vpop.f32.mrb[0].mxu0
          %v5940 = vadd.f32 %v5867, %v5939
          %5941 = vmatprep.mubr.bf16.mxu0 %v2009
          %5942 = vmatmul.mubr.bf16.gmra.mrb[0].mxu0 %v2008
          %v5943 = vpop.f32.mrb[0].mxu0
          %v5944 = vadd.f32 %v5871, %v5943
          %v5945 = vpop.f32.mrb[0].mxu0
          %v5946 = vadd.f32 %v5873, %v5945
          %v5947 = vpop.f32.mrb[0].mxu0
          %v5948 = vadd.f32 %v5875, %v5947
          %v5949 = vpop.f32.mrb[0].mxu0
          %v5950 = vadd.f32 %v5877, %v5949
          %5951 = vmatprep.mubr.bf16.mxu0 %v2013
          %5952 = vmatmul.mubr.bf16.gmra.mrb[0].mxu0 %v2012
          %v5953 = vpop.f32.mrb[0].mxu0
          %v5954 = vadd.f32 %v5881, %v5953
          %v5955 = vpop.f32.mrb[0].mxu0
          %v5956 = vadd.f32 %v5883, %v5955
          %v5957 = vpop.f32.mrb[0].mxu0
          %v5958 = vadd.f32 %v5885, %v5957
          %v5959 = vpop.f32.mrb[0].mxu0
          %v5960 = vadd.f32 %v5887, %v5959
          %5961 = vdwg.mxu0
          %5962 = vmatprep.subr.bf16.mxu0 %v4075
          %5963 = vmatpush1.bf16.msra.mxu0 %v4074
          %5964 = vmatprep.subr.bf16.mxu0 %v4091
          %5965 = vmatpush1.bf16.msra.mxu0 %v4090
          %5966 = vmatprep.subr.bf16.mxu0 %v4107
          %5967 = vmatpush1.bf16.msra.mxu0 %v4106
          %5968 = vmatprep.subr.bf16.mxu0 %v4123
          %5969 = vmatpush1.bf16.msra.mxu0 %v4122
          %5970 = vmatprep.subr.bf16.mxu0 %v4139
          %5971 = vmatpush1.bf16.msra.mxu0 %v4138
          %5972 = vmatprep.subr.bf16.mxu0 %v4155
          %5973 = vmatpush1.bf16.msra.mxu0 %v4154
          %5974 = vmatprep.subr.bf16.mxu0 %v4171
          %5975 = vmatpush1.bf16.msra.mxu0 %v4170
          %5976 = vmatprep.subr.bf16.mxu0 %v4187
          %5977 = vmatpush1.bf16.msra.mxu0 %v4186
          %5978 = vmatprep.subr.bf16.mxu0 %v4203
          %5979 = vmatpush1.bf16.msra.mxu0 %v4202
          %5980 = vmatprep.subr.bf16.mxu0 %v4219
          %5981 = vmatpush1.bf16.msra.mxu0 %v4218
          %5982 = vmatprep.subr.bf16.mxu0 %v4235
          %5983 = vmatpush1.bf16.msra.mxu0 %v4234
          %5984 = vmatprep.subr.bf16.mxu0 %v4251
          %5985 = vmatpush1.bf16.msra.mxu0 %v4250
          %5986 = vmatprep.subr.bf16.mxu0 %v4267
          %5987 = vmatpush1.bf16.msra.mxu0 %v4266
          %5988 = vmatprep.subr.bf16.mxu0 %v4283
          %5989 = vmatpush1.bf16.msra.mxu0 %v4282
          %5990 = vmatprep.subr.bf16.mxu0 %v4299
          %5991 = vmatpush1.bf16.msra.mxu0 %v4298
          %5992 = vmatprep.subr.bf16.mxu0 %v4315
          %5993 = vmatpush1.bf16.msra.mxu0 %v4314
          %5994 = vmatprep.mubr.bf16.mxu0 %v1999
          %5995 = vmatmul.mubr.bf16.gmra.mrb[0].mxu0 %v1998
          %v5996 = vpop.f32.mrb[0].mxu0
          %v5997 = vadd.f32 0.0, %v5996
          %v5998 = vpop.f32.mrb[0].mxu0
          %v5999 = vadd.f32 0.0, %v5998
          %v6000 = vpop.f32.mrb[0].mxu0
          %v6001 = vadd.f32 0.0, %v6000
          %v6002 = vpop.f32.mrb[0].mxu0
          %v6003 = vadd.f32 0.0, %v6002
          %6004 = vmatprep.mubr.bf16.mxu0 %v2003
          %6005 = vmatmul.mubr.bf16.gmra.mrb[0].mxu0 %v2002
          %v6006 = vpop.f32.mrb[0].mxu0
          %v6007 = vadd.f32 0.0, %v6006
          %v6008 = vpop.f32.mrb[0].mxu0
          %v6009 = vadd.f32 0.0, %v6008
          %v6010 = vpop.f32.mrb[0].mxu0
          %v6011 = vadd.f32 0.0, %v6010
          %v6012 = vpop.f32.mrb[0].mxu0
          %v6013 = vadd.f32 0.0, %v6012
          %6014 = vmatprep.mubr.bf16.mxu0 %v2007
          %6015 = vmatmul.mubr.bf16.gmra.mrb[0].mxu0 %v2006
          %v6016 = vpop.f32.mrb[0].mxu0
          %v6017 = vadd.f32 0.0, %v6016
          %v6018 = vpop.f32.mrb[0].mxu0
          %v6019 = vadd.f32 0.0, %v6018
          %v6020 = vpop.f32.mrb[0].mxu0
          %v6021 = vadd.f32 0.0, %v6020
          %v6022 = vpop.f32.mrb[0].mxu0
          %v6023 = vadd.f32 0.0, %v6022
          %6024 = vmatprep.mubr.bf16.mxu0 %v2011
          %6025 = vmatmul.mubr.bf16.gmra.mrb[0].mxu0 %v2010
          %v6026 = vpop.f32.mrb[0].mxu0
          %v6027 = vadd.f32 0.0, %v6026
          %v6028 = vpop.f32.mrb[0].mxu0
          %v6029 = vadd.f32 0.0, %v6028
          %v6030 = vpop.f32.mrb[0].mxu0
          %v6031 = vadd.f32 0.0, %v6030
          %v6032 = vpop.f32.mrb[0].mxu0
          %v6033 = vadd.f32 0.0, %v6032
          %6034 = vdwg.mxu0
          %6035 = vmatprep.subr.bf16.mxu0 %v4331
          %6036 = vmatpush1.bf16.msra.mxu0 %v4330
          %6037 = vmatprep.subr.bf16.mxu0 %v4347
          %6038 = vmatpush1.bf16.msra.mxu0 %v4346
          %6039 = vmatprep.subr.bf16.mxu0 %v4363
          %6040 = vmatpush1.bf16.msra.mxu0 %v4362
          %6041 = vmatprep.subr.bf16.mxu0 %v4379
          %6042 = vmatpush1.bf16.msra.mxu0 %v4378
          %6043 = vmatprep.subr.bf16.mxu0 %v4395
          %6044 = vmatpush1.bf16.msra.mxu0 %v4394
          %6045 = vmatprep.subr.bf16.mxu0 %v4411
          %6046 = vmatpush1.bf16.msra.mxu0 %v4410
          %6047 = vmatprep.subr.bf16.mxu0 %v4427
          %6048 = vmatpush1.bf16.msra.mxu0 %v4426
          %6049 = vmatprep.subr.bf16.mxu0 %v4443
          %6050 = vmatpush1.bf16.msra.mxu0 %v4442
          %6051 = vmatprep.subr.bf16.mxu0 %v4459
          %6052 = vmatpush1.bf16.msra.mxu0 %v4458
          %6053 = vmatprep.subr.bf16.mxu0 %v4475
          %6054 = vmatpush1.bf16.msra.mxu0 %v4474
          %6055 = vmatprep.subr.bf16.mxu0 %v4491
          %6056 = vmatpush1.bf16.msra.mxu0 %v4490
          %6057 = vmatprep.subr.bf16.mxu0 %v4507
          %6058 = vmatpush1.bf16.msra.mxu0 %v4506
          %6059 = vmatprep.subr.bf16.mxu0 %v4523
          %6060 = vmatpush1.bf16.msra.mxu0 %v4522
          %6061 = vmatprep.subr.bf16.mxu0 %v4539
          %6062 = vmatpush1.bf16.msra.mxu0 %v4538
          %6063 = vmatprep.subr.bf16.mxu0 %v4555
          %6064 = vmatpush1.bf16.msra.mxu0 %v4554
          %6065 = vmatprep.subr.bf16.mxu0 %v4571
          %6066 = vmatpush1.bf16.msra.mxu0 %v4570
          %6067 = vmatprep.mubr.bf16.mxu0 %v2001
          %6068 = vmatmul.mubr.bf16.gmra.mrb[0].mxu0 %v2000
          %v6069 = vpop.f32.mrb[0].mxu0
          %v6070 = vadd.f32 %v5997, %v6069
          %v6071 = vpop.f32.mrb[0].mxu0
          %v6072 = vadd.f32 %v5999, %v6071
          %v6073 = vpop.f32.mrb[0].mxu0
          %v6074 = vadd.f32 %v6001, %v6073
          %v6075 = vpop.f32.mrb[0].mxu0
          %v6076 = vadd.f32 %v6003, %v6075
          %6077 = vmatprep.mubr.bf16.mxu0 %v2005
          %6078 = vmatmul.mubr.bf16.gmra.mrb[0].mxu0 %v2004
          %v6079 = vpop.f32.mrb[0].mxu0
          %v6080 = vadd.f32 %v6007, %v6079
          %v6081 = vpop.f32.mrb[0].mxu0
          %v6082 = vadd.f32 %v6009, %v6081
          %v6083 = vpop.f32.mrb[0].mxu0
          %v6084 = vadd.f32 %v6011, %v6083
          %v6085 = vpop.f32.mrb[0].mxu0
          %v6086 = vadd.f32 %v6013, %v6085
          %6087 = vmatprep.mubr.bf16.mxu0 %v2009
          %6088 = vmatmul.mubr.bf16.gmra.mrb[0].mxu0 %v2008
          %v6089 = vpop.f32.mrb[0].mxu0
          %v6090 = vadd.f32 %v6017, %v6089
          %v6091 = vpop.f32.mrb[0].mxu0
          %v6092 = vadd.f32 %v6019, %v6091
          %v6093 = vpop.f32.mrb[0].mxu0
          %v6094 = vadd.f32 %v6021, %v6093
          %v6095 = vpop.f32.mrb[0].mxu0
          %v6096 = vadd.f32 %v6023, %v6095
          %6097 = vmatprep.mubr.bf16.mxu0 %v2013
          %6098 = vmatmul.mubr.bf16.gmra.mrb[0].mxu0 %v2012
          %v6099 = vpop.f32.mrb[0].mxu0
          %v6100 = vadd.f32 %v6027, %v6099
          %v6101 = vpop.f32.mrb[0].mxu0
          %v6102 = vadd.f32 %v6029, %v6101
          %v6103 = vpop.f32.mrb[0].mxu0
          %v6104 = vadd.f32 %v6031, %v6103
          %v6105 = vpop.f32.mrb[0].mxu0
          %v6106 = vadd.f32 %v6033, %v6105
          %6107 = vdwg.mxu0
          %6108 = vmatprep.subr.bf16.mxu0 %v4077
          %6109 = vmatpush1.bf16.msra.mxu0 %v4076
          %6110 = vmatprep.subr.bf16.mxu0 %v4093
          %6111 = vmatpush1.bf16.msra.mxu0 %v4092
          %6112 = vmatprep.subr.bf16.mxu0 %v4109
          %6113 = vmatpush1.bf16.msra.mxu0 %v4108
          %6114 = vmatprep.subr.bf16.mxu0 %v4125
          %6115 = vmatpush1.bf16.msra.mxu0 %v4124
          %6116 = vmatprep.subr.bf16.mxu0 %v4141
          %6117 = vmatpush1.bf16.msra.mxu0 %v4140
          %6118 = vmatprep.subr.bf16.mxu0 %v4157
          %6119 = vmatpush1.bf16.msra.mxu0 %v4156
          %6120 = vmatprep.subr.bf16.mxu0 %v4173
          %6121 = vmatpush1.bf16.msra.mxu0 %v4172
          %6122 = vmatprep.subr.bf16.mxu0 %v4189
          %6123 = vmatpush1.bf16.msra.mxu0 %v4188
          %6124 = vmatprep.subr.bf16.mxu0 %v4205
          %6125 = vmatpush1.bf16.msra.mxu0 %v4204
          %6126 = vmatprep.subr.bf16.mxu0 %v4221
          %6127 = vmatpush1.bf16.msra.mxu0 %v4220
          %6128 = vmatprep.subr.bf16.mxu0 %v4237
          %6129 = vmatpush1.bf16.msra.mxu0 %v4236
          %6130 = vmatprep.subr.bf16.mxu0 %v4253
          %6131 = vmatpush1.bf16.msra.mxu0 %v4252
          %6132 = vmatprep.subr.bf16.mxu0 %v4269
          %6133 = vmatpush1.bf16.msra.mxu0 %v4268
          %6134 = vmatprep.subr.bf16.mxu0 %v4285
          %6135 = vmatpush1.bf16.msra.mxu0 %v4284
          %6136 = vmatprep.subr.bf16.mxu0 %v4301
          %6137 = vmatpush1.bf16.msra.mxu0 %v4300
          %6138 = vmatprep.subr.bf16.mxu0 %v4317
          %6139 = vmatpush1.bf16.msra.mxu0 %v4316
          %6140 = vmatprep.mubr.bf16.mxu0 %v1999
          %6141 = vmatmul.mubr.bf16.gmra.mrb[0].mxu0 %v1998
          %v6142 = vpop.f32.mrb[0].mxu0
          %v6143 = vadd.f32 0.0, %v6142
          %v6144 = vpop.f32.mrb[0].mxu0
          %v6145 = vadd.f32 0.0, %v6144
          %v6146 = vpop.f32.mrb[0].mxu0
          %v6147 = vadd.f32 0.0, %v6146
          %v6148 = vpop.f32.mrb[0].mxu0
          %v6149 = vadd.f32 0.0, %v6148
          %6150 = vmatprep.mubr.bf16.mxu0 %v2003
          %6151 = vmatmul.mubr.bf16.gmra.mrb[0].mxu0 %v2002
          %v6152 = vpop.f32.mrb[0].mxu0
          %v6153 = vadd.f32 0.0, %v6152
          %v6154 = vpop.f32.mrb[0].mxu0
          %v6155 = vadd.f32 0.0, %v6154
          %v6156 = vpop.f32.mrb[0].mxu0
          %v6157 = vadd.f32 0.0, %v6156
          %v6158 = vpop.f32.mrb[0].mxu0
          %v6159 = vadd.f32 0.0, %v6158
          %6160 = vmatprep.mubr.bf16.mxu0 %v2007
          %6161 = vmatmul.mubr.bf16.gmra.mrb[0].mxu0 %v2006
          %v6162 = vpop.f32.mrb[0].mxu0
          %v6163 = vadd.f32 0.0, %v6162
          %v6164 = vpop.f32.mrb[0].mxu0
          %v6165 = vadd.f32 0.0, %v6164
          %v6166 = vpop.f32.mrb[0].mxu0
          %v6167 = vadd.f32 0.0, %v6166
          %v6168 = vpop.f32.mrb[0].mxu0
          %v6169 = vadd.f32 0.0, %v6168
          %6170 = vmatprep.mubr.bf16.mxu0 %v2011
          %6171 = vmatmul.mubr.bf16.gmra.mrb[0].mxu0 %v2010
          %v6172 = vpop.f32.mrb[0].mxu0
          %v6173 = vadd.f32 0.0, %v6172
          %v6174 = vpop.f32.mrb[0].mxu0
          %v6175 = vadd.f32 0.0, %v6174
          %v6176 = vpop.f32.mrb[0].mxu0
          %v6177 = vadd.f32 0.0, %v6176
          %v6178 = vpop.f32.mrb[0].mxu0
          %v6179 = vadd.f32 0.0, %v6178
          %6180 = vdwg.mxu0
          %6181 = vmatprep.subr.bf16.mxu0 %v4333
          %6182 = vmatpush1.bf16.msra.mxu0 %v4332
          %6183 = vmatprep.subr.bf16.mxu0 %v4349
          %6184 = vmatpush1.bf16.msra.mxu0 %v4348
          %6185 = vmatprep.subr.bf16.mxu0 %v4365
          %6186 = vmatpush1.bf16.msra.mxu0 %v4364
          %6187 = vmatprep.subr.bf16.mxu0 %v4381
          %6188 = vmatpush1.bf16.msra.mxu0 %v4380
          %6189 = vmatprep.subr.bf16.mxu0 %v4397
          %6190 = vmatpush1.bf16.msra.mxu0 %v4396
          %6191 = vmatprep.subr.bf16.mxu0 %v4413
          %6192 = vmatpush1.bf16.msra.mxu0 %v4412
          %6193 = vmatprep.subr.bf16.mxu0 %v4429
          %6194 = vmatpush1.bf16.msra.mxu0 %v4428
          %6195 = vmatprep.subr.bf16.mxu0 %v4445
          %6196 = vmatpush1.bf16.msra.mxu0 %v4444
          %6197 = vmatprep.subr.bf16.mxu0 %v4461
          %6198 = vmatpush1.bf16.msra.mxu0 %v4460
          %6199 = vmatprep.subr.bf16.mxu0 %v4477
          %6200 = vmatpush1.bf16.msra.mxu0 %v4476
          %6201 = vmatprep.subr.bf16.mxu0 %v4493
          %6202 = vmatpush1.bf16.msra.mxu0 %v4492
          %6203 = vmatprep.subr.bf16.mxu0 %v4509
          %6204 = vmatpush1.bf16.msra.mxu0 %v4508
          %6205 = vmatprep.subr.bf16.mxu0 %v4525
          %6206 = vmatpush1.bf16.msra.mxu0 %v4524
          %6207 = vmatprep.subr.bf16.mxu0 %v4541
          %6208 = vmatpush1.bf16.msra.mxu0 %v4540
          %6209 = vmatprep.subr.bf16.mxu0 %v4557
          %6210 = vmatpush1.bf16.msra.mxu0 %v4556
          %6211 = vmatprep.subr.bf16.mxu0 %v4573
          %6212 = vmatpush1.bf16.msra.mxu0 %v4572
          %6213 = vmatprep.mubr.bf16.mxu0 %v2001
          %6214 = vmatmul.mubr.bf16.gmra.mrb[0].mxu0 %v2000
          %v6215 = vpop.f32.mrb[0].mxu0
          %v6216 = vadd.f32 %v6143, %v6215
          %v6217 = vpop.f32.mrb[0].mxu0
          %v6218 = vadd.f32 %v6145, %v6217
          %v6219 = vpop.f32.mrb[0].mxu0
          %v6220 = vadd.f32 %v6147, %v6219
          %v6221 = vpop.f32.mrb[0].mxu0
          %v6222 = vadd.f32 %v6149, %v6221
          %6223 = vmatprep.mubr.bf16.mxu0 %v2005
          %6224 = vmatmul.mubr.bf16.gmra.mrb[0].mxu0 %v2004
          %v6225 = vpop.f32.mrb[0].mxu0
          %v6226 = vadd.f32 %v6153, %v6225
          %v6227 = vpop.f32.mrb[0].mxu0
          %v6228 = vadd.f32 %v6155, %v6227
          %v6229 = vpop.f32.mrb[0].mxu0
          %v6230 = vadd.f32 %v6157, %v6229
          %v6231 = vpop.f32.mrb[0].mxu0
          %v6232 = vadd.f32 %v6159, %v6231
          %6233 = vmatprep.mubr.bf16.mxu0 %v2009
          %6234 = vmatmul.mubr.bf16.gmra.mrb[0].mxu0 %v2008
          %v6235 = vpop.f32.mrb[0].mxu0
          %v6236 = vadd.f32 %v6163, %v6235
          %v6237 = vpop.f32.mrb[0].mxu0
          %v6238 = vadd.f32 %v6165, %v6237
          %v6239 = vpop.f32.mrb[0].mxu0
          %v6240 = vadd.f32 %v6167, %v6239
          %v6241 = vpop.f32.mrb[0].mxu0
          %v6242 = vadd.f32 %v6169, %v6241
          %6243 = vmatprep.mubr.bf16.mxu0 %v2013
          %6244 = vmatmul.mubr.bf16.gmra.mrb[0].mxu0 %v2012
          %v6245 = vpop.f32.mrb[0].mxu0
          %v6246 = vadd.f32 %v6173, %v6245
          %v6247 = vpop.f32.mrb[0].mxu0
          %v6248 = vadd.f32 %v6175, %v6247
          %v6249 = vpop.f32.mrb[0].mxu0
          %v6250 = vadd.f32 %v6177, %v6249
          %v6251 = vpop.f32.mrb[0].mxu0
          %v6252 = vadd.f32 %v6179, %v6251
          %6253 = vdwg.mxu0
          %6254 = vst [vmem:[#allocation12] sm:$0xff] %v5194
          %6255 = vst [vmem:[#allocation12 + $0x8] sm:$0xff] %v5196
          %6256 = vst [vmem:[#allocation12 + $0x10] sm:$0xff] %v5340
          %6257 = vst [vmem:[#allocation12 + $0x18] sm:$0xff] %v5342
          %6258 = vst [vmem:[#allocation12 + $0x20] sm:$0xff] %v5486
          %6259 = vst [vmem:[#allocation12 + $0x28] sm:$0xff] %v5488
          %6260 = vst [vmem:[#allocation12 + $0x30] sm:$0xff] %v5632
          %6261 = vst [vmem:[#allocation12 + $0x38] sm:$0xff] %v5634
          %6262 = vst [vmem:[#allocation12 + $0x40] sm:$0xff] %v5778
          %6263 = vst [vmem:[#allocation12 + $0x48] sm:$0xff] %v5780
          %6264 = vst [vmem:[#allocation12 + $0x50] sm:$0xff] %v5924
          %6265 = vst [vmem:[#allocation12 + $0x58] sm:$0xff] %v5926
          %6266 = vst [vmem:[#allocation12 + $0x60] sm:$0xff] %v6070
          %6267 = vst [vmem:[#allocation12 + $0x68] sm:$0xff] %v6072
          %6268 = vst [vmem:[#allocation12 + $0x70] sm:$0xff] %v6216
          %6269 = vst [vmem:[#allocation12 + $0x78] sm:$0xff] %v6218
          %6270 = vst [vmem:[#allocation12 + $0x80] sm:$0xff] %v5198
          %6271 = vst [vmem:[#allocation12 + $0x88] sm:$0xff] %v5200
          %6272 = vst [vmem:[#allocation12 + $0x90] sm:$0xff] %v5344
          %6273 = vst [vmem:[#allocation12 + $0x98] sm:$0xff] %v5346
          %6274 = vst [vmem:[#allocation12 + $0xa0] sm:$0xff] %v5490
          %6275 = vst [vmem:[#allocation12 + $0xa8] sm:$0xff] %v5492
          %6276 = vst [vmem:[#allocation12 + $0xb0] sm:$0xff] %v5636
          %6277 = vst [vmem:[#allocation12 + $0xb8] sm:$0xff] %v5638
          %6278 = vst [vmem:[#allocation12 + $0xc0] sm:$0xff] %v5782
          %6279 = vst [vmem:[#allocation12 + $0xc8] sm:$0xff] %v5784
          %6280 = vst [vmem:[#allocation12 + $0xd0] sm:$0xff] %v5928
          %6281 = vst [vmem:[#allocation12 + $0xd8] sm:$0xff] %v5930
          %6282 = vst [vmem:[#allocation12 + $0xe0] sm:$0xff] %v6074
          %6283 = vst [vmem:[#allocation12 + $0xe8] sm:$0xff] %v6076
          %6284 = vst [vmem:[#allocation12 + $0xf0] sm:$0xff] %v6220
          %6285 = vst [vmem:[#allocation12 + $0xf8] sm:$0xff] %v6222
          %6286 = vst [vmem:[#allocation12 + $0x100] sm:$0xff] %v5204
          %6287 = vst [vmem:[#allocation12 + $0x108] sm:$0xff] %v5206
          %6288 = vst [vmem:[#allocation12 + $0x110] sm:$0xff] %v5350
          %6289 = vst [vmem:[#allocation12 + $0x118] sm:$0xff] %v5352
          %6290 = vst [vmem:[#allocation12 + $0x120] sm:$0xff] %v5496
          %6291 = vst [vmem:[#allocation12 + $0x128] sm:$0xff] %v5498
          %6292 = vst [vmem:[#allocation12 + $0x130] sm:$0xff] %v5642
          %6293 = vst [vmem:[#allocation12 + $0x138] sm:$0xff] %v5644
          %6294 = vst [vmem:[#allocation12 + $0x140] sm:$0xff] %v5788
          %6295 = vst [vmem:[#allocation12 + $0x148] sm:$0xff] %v5790
          %6296 = vst [vmem:[#allocation12 + $0x150] sm:$0xff] %v5934
          %6297 = vst [vmem:[#allocation12 + $0x158] sm:$0xff] %v5936
          %6298 = vst [vmem:[#allocation12 + $0x160] sm:$0xff] %v6080
          %6299 = vst [vmem:[#allocation12 + $0x168] sm:$0xff] %v6082
          %6300 = vst [vmem:[#allocation12 + $0x170] sm:$0xff] %v6226
          %6301 = vst [vmem:[#allocation12 + $0x178] sm:$0xff] %v6228
          %6302 = vst [vmem:[#allocation12 + $0x180] sm:$0xff] %v5208
          %6303 = vst [vmem:[#allocation12 + $0x188] sm:$0xff] %v5210
          %6304 = vst [vmem:[#allocation12 + $0x190] sm:$0xff] %v5354
          %6305 = vst [vmem:[#allocation12 + $0x198] sm:$0xff] %v5356
          %6306 = vst [vmem:[#allocation12 + $0x1a0] sm:$0xff] %v5500
          %6307 = vst [vmem:[#allocation12 + $0x1a8] sm:$0xff] %v5502
          %6308 = vst [vmem:[#allocation12 + $0x1b0] sm:$0xff] %v5646
          %6309 = vst [vmem:[#allocation12 + $0x1b8] sm:$0xff] %v5648
          %6310 = vst [vmem:[#allocation12 + $0x1c0] sm:$0xff] %v5792
          %6311 = vst [vmem:[#allocation12 + $0x1c8] sm:$0xff] %v5794
          %6312 = vst [vmem:[#allocation12 + $0x1d0] sm:$0xff] %v5938
          %6313 = vst [vmem:[#allocation12 + $0x1d8] sm:$0xff] %v5940
          %6314 = vst [vmem:[#allocation12 + $0x1e0] sm:$0xff] %v6084
          %6315 = vst [vmem:[#allocation12 + $0x1e8] sm:$0xff] %v6086
          %6316 = vst [vmem:[#allocation12 + $0x1f0] sm:$0xff] %v6230
          %6317 = vst [vmem:[#allocation12 + $0x1f8] sm:$0xff] %v6232
          %6318 = vst [vmem:[#allocation12 + $0x200] sm:$0xff] %v5214
          %6319 = vst [vmem:[#allocation12 + $0x208] sm:$0xff] %v5216
          %6320 = vst [vmem:[#allocation12 + $0x210] sm:$0xff] %v5360
          %6321 = vst [vmem:[#allocation12 + $0x218] sm:$0xff] %v5362
          %6322 = vst [vmem:[#allocation12 + $0x220] sm:$0xff] %v5506
          %6323 = vst [vmem:[#allocation12 + $0x228] sm:$0xff] %v5508
          %6324 = vst [vmem:[#allocation12 + $0x230] sm:$0xff] %v5652
          %6325 = vst [vmem:[#allocation12 + $0x238] sm:$0xff] %v5654
          %6326 = vst [vmem:[#allocation12 + $0x240] sm:$0xff] %v5798
          %6327 = vst [vmem:[#allocation12 + $0x248] sm:$0xff] %v5800
          %6328 = vst [vmem:[#allocation12 + $0x250] sm:$0xff] %v5944
          %6329 = vst [vmem:[#allocation12 + $0x258] sm:$0xff] %v5946
          %6330 = vst [vmem:[#allocation12 + $0x260] sm:$0xff] %v6090
          %6331 = vst [vmem:[#allocation12 + $0x268] sm:$0xff] %v6092
          %6332 = vst [vmem:[#allocation12 + $0x270] sm:$0xff] %v6236
          %6333 = vst [vmem:[#allocation12 + $0x278] sm:$0xff] %v6238
          %6334 = vst [vmem:[#allocation12 + $0x280] sm:$0xff] %v5218
          %6335 = vst [vmem:[#allocation12 + $0x288] sm:$0xff] %v5220
          %6336 = vst [vmem:[#allocation12 + $0x290] sm:$0xff] %v5364
          %6337 = vst [vmem:[#allocation12 + $0x298] sm:$0xff] %v5366
          %6338 = vst [vmem:[#allocation12 + $0x2a0] sm:$0xff] %v5510
          %6339 = vst [vmem:[#allocation12 + $0x2a8] sm:$0xff] %v5512
          %6340 = vst [vmem:[#allocation12 + $0x2b0] sm:$0xff] %v5656
          %6341 = vst [vmem:[#allocation12 + $0x2b8] sm:$0xff] %v5658
          %6342 = vst [vmem:[#allocation12 + $0x2c0] sm:$0xff] %v5802
          %6343 = vst [vmem:[#allocation12 + $0x2c8] sm:$0xff] %v5804
          %6344 = vst [vmem:[#allocation12 + $0x2d0] sm:$0xff] %v5948
          %6345 = vst [vmem:[#allocation12 + $0x2d8] sm:$0xff] %v5950
          %6346 = vst [vmem:[#allocation12 + $0x2e0] sm:$0xff] %v6094
          %6347 = vst [vmem:[#allocation12 + $0x2e8] sm:$0xff] %v6096
          %6348 = vst [vmem:[#allocation12 + $0x2f0] sm:$0xff] %v6240
          %6349 = vst [vmem:[#allocation12 + $0x2f8] sm:$0xff] %v6242
          %6350 = vst [vmem:[#allocation12 + $0x300] sm:$0xff] %v5224
          %6351 = vst [vmem:[#allocation12 + $0x308] sm:$0xff] %v5226
          %6352 = vst [vmem:[#allocation12 + $0x310] sm:$0xff] %v5370
          %6353 = vst [vmem:[#allocation12 + $0x318] sm:$0xff] %v5372
          %6354 = vst [vmem:[#allocation12 + $0x320] sm:$0xff] %v5516
          %6355 = vst [vmem:[#allocation12 + $0x328] sm:$0xff] %v5518
          %6356 = vst [vmem:[#allocation12 + $0x330] sm:$0xff] %v5662
          %6357 = vst [vmem:[#allocation12 + $0x338] sm:$0xff] %v5664
          %6358 = vst [vmem:[#allocation12 + $0x340] sm:$0xff] %v5808
          %6359 = vst [vmem:[#allocation12 + $0x348] sm:$0xff] %v5810
          %6360 = vst [vmem:[#allocation12 + $0x350] sm:$0xff] %v5954
          %6361 = vst [vmem:[#allocation12 + $0x358] sm:$0xff] %v5956
          %6362 = vst [vmem:[#allocation12 + $0x360] sm:$0xff] %v6100
          %6363 = vst [vmem:[#allocation12 + $0x368] sm:$0xff] %v6102
          %6364 = vst [vmem:[#allocation12 + $0x370] sm:$0xff] %v6246
          %6365 = vst [vmem:[#allocation12 + $0x378] sm:$0xff] %v6248
          %6366 = vst [vmem:[#allocation12 + $0x380] sm:$0xff] %v5228
          %6367 = vst [vmem:[#allocation12 + $0x388] sm:$0xff] %v5230
          %6368 = vst [vmem:[#allocation12 + $0x390] sm:$0xff] %v5374
          %6369 = vst [vmem:[#allocation12 + $0x398] sm:$0xff] %v5376
          %6370 = vst [vmem:[#allocation12 + $0x3a0] sm:$0xff] %v5520
          %6371 = vst [vmem:[#allocation12 + $0x3a8] sm:$0xff] %v5522
          %6372 = vst [vmem:[#allocation12 + $0x3b0] sm:$0xff] %v5666
          %6373 = vst [vmem:[#allocation12 + $0x3b8] sm:$0xff] %v5668
          %6374 = vst [vmem:[#allocation12 + $0x3c0] sm:$0xff] %v5812
          %6375 = vst [vmem:[#allocation12 + $0x3c8] sm:$0xff] %v5814
          %6376 = vst [vmem:[#allocation12 + $0x3d0] sm:$0xff] %v5958
          %6377 = vst [vmem:[#allocation12 + $0x3d8] sm:$0xff] %v5960
          %6378 = vst [vmem:[#allocation12 + $0x3e0] sm:$0xff] %v6104
          %6379 = vst [vmem:[#allocation12 + $0x3e8] sm:$0xff] %v6106
          %6380 = vst [vmem:[#allocation12 + $0x3f0] sm:$0xff] %v6250
          %6381 = vst [vmem:[#allocation12 + $0x3f8] sm:$0xff] %v6252
        $region68: #{tpu_custom_call.1} parent=39 // pred_fallthru
          _
        // Predicated region
        $region69: #{tpu_custom_call.1} parent=39 // pred_check
          %p6382 = pneg %p152
        $region70: #{tpu_custom_call.1} parent=39 // pred_check_branch
          %6384 = sbr.rel (%p6382) target = $region72
        $region71: #{tpu_custom_call.1} parent=39 // pred_region
          %s6386 = ssub.s32 16384, 16384
          %6387 = vsyncadd [#allocation5], %s6386
          %s6388 = sshll.u32 [#allocation12], 4
          %s6389 = int_to_ptr.vmem [resolvable:$true] %s6388
          %6394 = dma.vmem_to_hbm [thread:$0]  %s6389, 16384, %s5, [#allocation5], 2048, 2048, 128
        $region72: #{tpu_custom_call.1} parent=39 // pred_fallthru
          _
        // Predicated region
        $region73: #{tpu_custom_call.1} parent=39 // pred_check
          %p6395 = pneg %p152
        $region74: #{tpu_custom_call.1} parent=39 // pred_check_branch
          %6397 = sbr.rel (%p6395) target = $region76
        $region75: #{tpu_custom_call.1} parent=39 // pred_region
          %6398 = dma.done [#allocation5], 16384
        $region76: #{tpu_custom_call.1} parent=39 // pred_fallthru
          _
      $region40: #{tpu_custom_call.1} parent=5 // pred_fallthru
        _
      %p6399 = scmp.le.s32.totalorder 2, %s19
      // Predicated region
      $region77: #{tpu_custom_call.1} parent=5 // pred_check
        %p6400 = pneg %p6399
      $region78: #{tpu_custom_call.1} parent=5 // pred_check_branch
        %6402 = sbr.rel (%p6400) target = $region80
      $region79: #{tpu_custom_call.1} parent=5 // pred_region
        %s6403 = ssub.s32 %s19, 2
      $region80: #{tpu_custom_call.1} parent=5 // pred_fallthru
        _
    $region6: #{tpu_custom_call.1} parent=1 // loop_footer
      %s23 = sadd.s32 1, %s19
    $region7: #{tpu_custom_call.1} parent=1 // loop_footer_branch
      %18 = sbr.rel target = $region3
    $region8: #{tpu_custom_call.1} parent=1 // loop_exit
      _
    %6404 = vsyncpa [#allocation4], 1
    %s6405 = scalar_lea.sflag [#allocation4], 1
    %6406 = vsyncpa %s6405, 1
    %6407 = vsyncpa [#allocation7], 1
    %s6408 = scalar_lea.sflag [#allocation7], 1
    %6409 = vsyncpa %s6408, 1
    %6410 = vsyncpa [#allocation10], 1
    %6411 = vsyncpa [#allocation5], 1
    %s6412 = scalar_lea.sflag [#allocation5], 1
    %6413 = vsyncpa %s6412, 1

</llo_original>
